<compile_context>
chip_gen: v6e
topology: v6e:2x2x1
jax: 0.10.0
libtpu: 0.0.40
codegen_flags: <defaults>
</compile_context>

<pallas_src>
import math

import jax
import jax.numpy as jnp
from jax.experimental import pallas as pl
from jax.experimental.pallas import tpu as pltpu


# ---------------------------------------------------------------------------
# kernel-side elementwise helpers (EUP-offloaded where possible)
# ---------------------------------------------------------------------------
_ERF_A = (0.254829592, -0.284496736, 1.421413741, -1.453152027, 1.061405429)
_ERF_P = 0.3275911


def _erf_k(x):
    # Abramowitz & Stegun 7.1.26, |err| < 1.5e-7; the divide runs on the EUP.
    a1, a2, a3, a4, a5 = _ERF_A
    s = jnp.where(x < 0.0, -1.0, 1.0)
    ax = jnp.abs(x)
    t = pl.reciprocal(1.0 + _ERF_P * ax, approx=True)
    poly = ((((a5 * t + a4) * t + a3) * t + a2) * t + a1) * t
    return s * (1.0 - poly * jnp.exp(-ax * ax))


def _gelu_k(x):   # erf-form GELU (torch.nn.GELU() default), kernel version
    return 0.5 * x * (1.0 + _erf_k(x * (1.0 / math.sqrt(2.0))))


def _silu_k(x):   # SiLU with the sigmoid denominator on the EUP rcp slot
    return x * pl.reciprocal(1.0 + jnp.exp(-x), approx=True)


def _layernorm(x, g, b, eps=1e-5):
    mu = jnp.mean(x, axis=-1, keepdims=True)
    var = jnp.mean((x - mu) ** 2, axis=-1, keepdims=True)
    return (x - mu) * jax.lax.rsqrt(var + eps) * g + b


# ---------------------------------------------------------------------------
# Pallas kernel: whole forward pass for one batch tile
# ---------------------------------------------------------------------------
def feature_perspective_kernel(
    x_ref,                       # (TB, IN) f32 input tile
    w_ext, b_ext,                # fused 3x extractor:  (IN, 3*D1P) bf16 / (1, 3*D1P) f32
    w_qkv, b_qkv,                # fused self-attn QKV: (D1, 3*D1P) bf16 / (1, 3*D1P) f32
    wo, bo,                      # self-attention out_proj
    ln_g, ln_b,                  # attention LayerNorm
    wfold, bfold,                # folded wp @ cross-V @ cross-out_proj @ wr  (D1, OUT_P)
    seg, segT,                   # (D1, H) / (H, D1) exact 0/1 head-segment matrices, bf16
    out_ref,                     # (TB, OUT_P) f32
    f_scr, qk_scr, a_scr, o_scr,  # bf16 VMEM scratch (persist across grid steps)
):
    f32, bf16 = jnp.float32, jnp.bfloat16
    x = x_ref[...].astype(bf16)          # cast on the VPU; x is DMA'd once as f32
    TB = x.shape[0]
    d1 = ln_g.shape[-1]
    d1p = w_ext.shape[-1] // 3           # 128-aligned block stride (== d1 if d1%128==0)

    # 1) three "perspective" extractors as ONE wide-N matmul; lane-slice each
    #    128-aligned block, apply its activation and write straight into the
    #    (3*TB, D1) token scratch (Dropout = identity at inference).
    ext = jnp.dot(x, w_ext[...], preferred_element_type=f32) + b_ext[...]
    f_scr[0 * TB:1 * TB, :] = _gelu_k(ext[:, 0:d1]).astype(bf16)
    f_scr[1 * TB:2 * TB, :] = _silu_k(ext[:, d1p:d1p + d1]).astype(bf16)
    f_scr[2 * TB:3 * TB, :] = jnp.tanh(ext[:, 2 * d1p:2 * d1p + d1]).astype(bf16)
    f_all = f_scr[...]                                          # (3*TB, D1) bf16

    # 2) multi-head self-attention over the 3 perspective tokens.
    #    Q/K/V as ONE matmul; the 1/sqrt(head_dim) score scale is pre-folded
    #    into the Q columns of w_qkv / b_qkv.
    qkv = jnp.dot(f_all, w_qkv[...], preferred_element_type=f32) + b_qkv[...]
    qs = [qkv[i * TB:(i + 1) * TB, 0:d1] for i in range(3)]
    ks = [qkv[i * TB:(i + 1) * TB, d1p:d1p + d1] for i in range(3)]
    vs = [qkv[i * TB:(i + 1) * TB, 2 * d1p:2 * d1p + d1] for i in range(3)]

    # Per-head scores for all 9 (query i, key j) pairs with ONE segment-sum
    # matmul: (9*TB, D1) @ (D1, H).  q*k products are written bf16 into scratch
    # (f32 accumulation in the dot); max/exp/softmax stay f32.
    blk = 0
    for i in range(3):
        for j in range(3):
            qk_scr[blk * TB:(blk + 1) * TB, :] = (qs[i] * ks[j]).astype(bf16)
            blk += 1
    s_all = jnp.dot(qk_scr[...], seg[...], preferred_element_type=f32)   # (9*TB, H)

    for i in range(3):                   # softmax over the 3 keys, per query i
        s0 = s_all[(3 * i + 0) * TB:(3 * i + 1) * TB]
        s1 = s_all[(3 * i + 1) * TB:(3 * i + 2) * TB]
        s2 = s_all[(3 * i + 2) * TB:(3 * i + 3) * TB]
        m = jnp.maximum(jnp.maximum(s0, s1), s2)
        e0, e1, e2 = jnp.exp(s0 - m), jnp.exp(s1 - m), jnp.exp(s2 - m)
        inv = pl.reciprocal(e0 + e1 + e2, approx=True)
        a_scr[(3 * i + 0) * TB:(3 * i + 1) * TB, :] = (e0 * inv).astype(bf16)
        a_scr[(3 * i + 1) * TB:(3 * i + 2) * TB, :] = (e1 * inv).astype(bf16)
        a_scr[(3 * i + 2) * TB:(3 * i + 3) * TB, :] = (e2 * inv).astype(bf16)

    # Broadcast per-head weights back to D1 lanes with ONE (9*TB,H)@(H,D1) matmul.
    w_all = jnp.dot(a_scr[...], segT[...], preferred_element_type=f32)   # (9*TB, D1)
    for i in range(3):
        o_i = (w_all[(3 * i + 0) * TB:(3 * i + 1) * TB] * vs[0]
               + w_all[(3 * i + 1) * TB:(3 * i + 2) * TB] * vs[1]
               + w_all[(3 * i + 2) * TB:(3 * i + 3) * TB] * vs[2])
        o_scr[i * TB:(i + 1) * TB, :] = o_i.astype(bf16)

    tok = _layernorm(
        jnp.dot(o_scr[...], wo[...], preferred_element_type=f32) + bo[...],
        ln_g[...], ln_b[...])                                    # (3*TB, D1) f32

    # 3-5) mean over the 3 tokens, then the folded chain project_features ->
    #      cross-attn V -> cross-attn out_proj -> refinement Linear as ONE
    #      matmul (cross-attn softmax over a single kv token == 1; geo queries
    #      and the cross Q/K projections cancel exactly), then GELU.
    feat = (tok[0:TB] + tok[TB:2 * TB] + tok[2 * TB:3 * TB]) * (1.0 / 3.0)
    out_ref[...] = _gelu_k(
        jnp.dot(feat.astype(bf16), wfold[...], preferred_element_type=f32) + bfold[...])


# ---------------------------------------------------------------------------
# one-time weight preparation (hoisted out of the per-call forward)
# ---------------------------------------------------------------------------
def prepare_params(params, *, num_heads=16):
    f32, bf16 = jnp.float32, jnp.bfloat16
    D1 = params["ln_g"].shape[0]
    D2 = params["wp"].shape[0]
    OUT = params["wr"].shape[0]
    IN = params["we"][0].shape[1]
    OUT_P = ((OUT + 127) // 128) * 128            # lane-dense output slab
    D1P = ((D1 + 127) // 128) * 128               # 128-aligned fused-block stride
    H = num_heads
    scale = 1.0 / math.sqrt(D1 // H)

    def T(w):    # PyTorch (out, in) -> (in, out)
        return jnp.asarray(w, f32).T

    def B2(b):   # 1-D param -> (1, D) f32 row
        return jnp.asarray(b, f32).reshape(1, -1)

    def pack3(blocks_w, blocks_b):
        """Pack three (K, D1) weights / (D1,) biases into 128-aligned column
        blocks of one (K, 3*D1P) weight / (1, 3*D1P) bias (zero padding, so the
        padded lanes are never read in the kernel)."""
        K = blocks_w[0].shape[0]
        w = jnp.zeros((K, 3 * D1P), f32)
        b = jnp.zeros((1, 3 * D1P), f32)
        for i, (wi, bi) in enumerate(zip(blocks_w, blocks_b)):
            w = w.at[:, i * D1P:i * D1P + D1].set(wi)
            b = b.at[0, i * D1P:i * D1P + D1].set(jnp.asarray(bi, f32))
        return w, b

    # fused feature extractors: (IN, 3*D1P)
    w_ext, b_ext = pack3([T(params["we"][i]) for i in range(3)],
                         [params["be"][i] for i in range(3)])

    # fused self-attn Q|K|V (in_proj is stacked [q;k;v] rows); fold the
    # 1/sqrt(head_dim) score scale into the Q block.
    ipw, ipb = params["in_proj_w"], params["in_proj_b"]
    w_qkv, b_qkv = pack3(
        [T(ipw[:D1]) * scale, T(ipw[D1:2 * D1]), T(ipw[2 * D1:])],
        [jnp.asarray(ipb[:D1], f32) * scale, ipb[D1:2 * D1], ipb[2 * D1:]])

    # fold project_features -> cross-attn V -> cross-attn out_proj -> refinement
    # Linear into one (D1, OUT) matmul (cross-attn softmax over a single kv
    # token == 1; geo queries / cross Q/K projections cancel), pad to OUT_P.
    cipw, cipb = params["c_in_proj_w"], params["c_in_proj_b"]
    cwv, cbv = T(cipw[2 * D2:]), jnp.asarray(cipb[2 * D2:], f32)
    wp_, bp_ = T(params["wp"]), jnp.asarray(params["bp"], f32)
    cwo, cbo = T(params["c_out_proj_w"]), jnp.asarray(params["c_out_proj_b"], f32)
    wr_, br_ = T(params["wr"]), jnp.asarray(params["br"], f32)
    w_fold = wp_ @ cwv @ cwo @ wr_                                     # (D1, OUT)
    b_fold = ((bp_ @ cwv + cbv) @ cwo + cbo) @ wr_ + br_               # (OUT,)
    w_fold = jnp.zeros((D1, OUT_P), f32).at[:, :OUT].set(w_fold)
    b_fold = jnp.zeros((1, OUT_P), f32).at[0, :OUT].set(b_fold)

    head_ids = jnp.arange(D1) // (D1 // H)
    seg = (head_ids[:, None] == jnp.arange(H)[None, :]).astype(bf16)   # exact 0/1
    segT = seg.T

    weights = (
        w_ext.astype(bf16), b_ext,
        w_qkv.astype(bf16), b_qkv,
        T(params["out_proj_w"]).astype(bf16), B2(params["out_proj_b"]),
        B2(params["ln_g"]), B2(params["ln_b"]),
        w_fold.astype(bf16), b_fold,
        seg, segT,
    )
    for w in weights:                    # materialize now, not in the hot path
        w.block_until_ready()
    meta = dict(D1=D1, D1P=D1P, H=H, IN=IN, OUT=OUT, OUT_P=OUT_P)
    return weights, meta


# ---------------------------------------------------------------------------
# tiling policy
# ---------------------------------------------------------------------------
def _vmem_limit_bytes():
    """Chip-aware scoped-VMEM limit: ~3/4 of physical VMEM (v5e/v6e: 128 MiB ->
    96 MiB, v7x: 64 MiB -> 48 MiB), 48 MiB fallback if the query fails."""
    try:
        cap = int(pltpu.get_tpu_info().vmem_capacity_bytes)
    except Exception:
        cap = 64 * 1024 * 1024
    return max(32 << 20, min(cap * 3 // 4, 112 << 20))


def _pick_block_b(B, D1, D1P, H, IN, OUT_P, vmem_limit):
    """VMEM-model-based batch tile: the largest divisor of B (preferring
    multiples of 16 — bf16 sublane packing) whose activation working set fits
    in ~half the scoped VMEM limit (rest: weights, double-buffered x/out,
    compiler scratch).  grid=1 is fine on single-TC chips (v5e/v6e); on v7x the
    smaller budget caps the tile, keeping >= 2 programs for its two
    TensorCores at realistic D1 / batch sizes."""
    budget = max(vmem_limit // 2, 1 << 20)
    # f32 slabs (ext, qkv, w_all, tok, softmax temps) + bf16 scratch rows +
    # double-buffered f32 input/output rows, x1.5 for compiler temporaries.
    per_row = int(1.5 * ((3 * D1P + 9 * D1P + 9 * D1 + 3 * D1 + 6 * H) * 4
                         + (3 * D1 + 9 * D1 + 9 * H + 3 * D1) * 2
                         + 2 * 4 * (IN + OUT_P)))
    cap = max(8, budget // max(per_row, 1))
    for step in (16, 8, 1):
        cands = [b for b in range(step, min(B, 4096) + 1, step)
                 if B % b == 0 and b <= cap]
        if cands:
            return max(cands)
    return B


# ---------------------------------------------------------------------------
# forward wrapper
# ---------------------------------------------------------------------------
def feature_perspective_forward(x, prepared, *, block_b=None):
    weights, meta = prepared
    D1, D1P, H = meta["D1"], meta["D1P"], meta["H"]
    IN, OUT, OUT_P = meta["IN"], meta["OUT"], meta["OUT_P"]
    B = x.shape[0]
    assert x.shape[1] == IN

    vmem_limit = _vmem_limit_bytes()
    if block_b is None:
        block_b = _pick_block_b(B, D1, D1P, H, IN, OUT_P, vmem_limit)
    assert B % block_b == 0, (B, block_b)

    scratch_shapes = [
        pltpu.VMEM((3 * block_b, D1), jnp.bfloat16),   # perspective tokens
        pltpu.VMEM((9 * block_b, D1), jnp.bfloat16),   # q_i * k_j products
        pltpu.VMEM((9 * block_b, H), jnp.bfloat16),    # softmax weights
        pltpu.VMEM((3 * block_b, D1), jnp.bfloat16),   # attention outputs
    ]

    def run(weight_pipeline_mode):
        in_specs = [pl.BlockSpec((block_b, IN), lambda b: (b, 0))]
        for w in weights:
            # Grid-invariant weights/biases: constant index_map (DMA'd once).
            if weight_pipeline_mode is None:
                spec = pl.BlockSpec(w.shape, lambda b: (0, 0))
            else:
                spec = pl.BlockSpec(w.shape, lambda b: (0, 0),
                                    pipeline_mode=weight_pipeline_mode)
            in_specs.append(spec)
        out_specs = pl.BlockSpec((block_b, OUT_P), lambda b: (b, 0))
        return pl.pallas_call(
            feature_perspective_kernel,
            out_shape=jax.ShapeDtypeStruct((B, OUT_P), jnp.float32),
            grid=(B // block_b,),
            in_specs=in_specs,
            out_specs=out_specs,
            scratch_shapes=scratch_shapes,
            compiler_params=pltpu.CompilerParams(
                dimension_semantics=("parallel",),
                vmem_limit_bytes=vmem_limit,
            ),
        )(x, *weights)

    try:
        # Single-buffer the grid-invariant weights (they never change across
        # grid steps) — halves their VMEM footprint.
        out = run(pl.Buffered(1))
    except Exception:
        # Fallback for Pallas builds without pipeline_mode support on the
        # top-level grid: default (double-buffered) specs, identical numerics.
        out = run(None)
    return out[:, :OUT]


# ---------------------------------------------------------------------------
# deterministic parameter init (synthetic; mirrors the module's shapes)
# ---------------------------------------------------------------------------
def init_params(key, input_dim, output_dim, num_heads=16, n_geo=8):
    def ru(v, m):
        return (v + m - 1) // m * m

    D1 = ru(input_dim, num_heads)
    D2 = ru(output_dim, num_heads)
    ks = jax.random.split(key, 12)
    f32 = jnp.float32
    std_e = math.sqrt(2.0 / input_dim)          # kaiming_normal_(relu), bias=0
    params = dict(
        we=[jax.random.normal(ks[i], (D1, input_dim), f32) * std_e for i in range(3)],
        be=[jnp.zeros((D1,), f32) for _ in range(3)],
        in_proj_w=jax.random.normal(ks[3], (3 * D1, D1), f32) / math.sqrt(D1),
        in_proj_b=jnp.zeros((3 * D1,), f32),
        out_proj_w=jax.random.normal(ks[4], (D1, D1), f32) / math.sqrt(D1),
        out_proj_b=jnp.zeros((D1,), f32),
        ln_g=jnp.ones((D1,), f32),
        ln_b=jnp.zeros((D1,), f32),
        wp=jax.random.normal(ks[5], (D2, D1), f32) * math.sqrt(2.0 / D1),
        bp=jax.random.normal(ks[6], (D2,), f32) * 0.02,
        geo=jax.random.normal(ks[7], (n_geo, D2), f32) * 0.02,     # cancels exactly
        c_in_proj_w=jax.random.normal(ks[8], (3 * D2, D2), f32) / math.sqrt(D2),
        c_in_proj_b=jnp.zeros((3 * D2,), f32),
        c_out_proj_w=jax.random.normal(ks[9], (D2, D2), f32) / math.sqrt(D2),
        c_out_proj_b=jnp.zeros((D2,), f32),
        wr=jax.random.normal(ks[10], (output_dim, D2), f32) / math.sqrt(D2),
        br=jax.random.normal(ks[11], (output_dim,), f32) * 0.02,
    )
    return params, D1, D2


# ---------------------------------------------------------------------------
# pure-JAX f32 reference (full MHA with reshapes, full cross-attn incl. geo)
# ---------------------------------------------------------------------------
def _gelu_ref(x):
    return 0.5 * x * (1.0 + jax.lax.erf(x / math.sqrt(2.0)))


def _silu_ref(x):
    return x * jax.nn.sigmoid(x)


def reference_forward(x, params, num_heads=16):
    B = x.shape[0]

    def linear(a, w, b):
        return a @ w.T + b

    f0 = _gelu_ref(linear(x, params["we"][0], params["be"][0]))
    f1 = _silu_ref(linear(x, params["we"][1], params["be"][1]))
    f2 = jnp.tanh(linear(x, params["we"][2], params["be"][2]))
    feats = jnp.stack([f0, f1, f2], axis=1)

    def mha(q_in, kv_in, ipw, ipb, ow, ob, H):
        E = q_in.shape[-1]
        hd = E // H
        wq_, wk_, wv_ = ipw[:E], ipw[E:2 * E], ipw[2 * E:]
        bq_, bk_, bv_ = ipb[:E], ipb[E:2 * E], ipb[2 * E:]
        q, k, v = linear(q_in, wq_, bq_), linear(kv_in, wk_, bk_), linear(kv_in, wv_, bv_)

        def split(t):
            return t.reshape(t.shape[0], t.shape[1], H, hd).transpose(0, 2, 1, 3)

        qh, kh, vh = split(q), split(k), split(v)
        s = jnp.einsum("bhqd,bhkd->bhqk", qh, kh) / math.sqrt(hd)
        a = jax.nn.softmax(s, axis=-1)
        o = jnp.einsum("bhqk,bhkd->bhqd", a, vh).transpose(0, 2, 1, 3)
        o = o.reshape(q_in.shape[0], q_in.shape[1], E)
        return linear(o, ow, ob)

    attn = mha(feats, feats, params["in_proj_w"], params["in_proj_b"],
               params["out_proj_w"], params["out_proj_b"], num_heads)
    mu = attn.mean(-1, keepdims=True)
    var = ((attn - mu) ** 2).mean(-1, keepdims=True)
    attn = (attn - mu) / jnp.sqrt(var + 1e-5) * params["ln_g"] + params["ln_b"]
    feat = attn.mean(axis=1)
    p = linear(feat, params["wp"], params["bp"])[:, None, :]
    geo = jnp.broadcast_to(params["geo"][None], (B,) + params["geo"].shape)
    c = mha(geo, p, params["c_in_proj_w"], params["c_in_proj_b"],
            params["c_out_proj_w"], params["c_out_proj_b"], num_heads // 2)
    c = c.mean(axis=1)
    return _gelu_ref(linear(c, params["wr"], params["br"]))


if __name__ == "__main__":
    B, IN, OUT, H = 16, 32, 10, 16
    key = jax.random.PRNGKey(0)
    kx, kp = jax.random.split(key)
    x = jax.random.normal(kx, (B, IN), jnp.float32)
    params, D1, D2 = init_params(kp, IN, OUT, num_heads=H)

    prepared = prepare_params(params, num_heads=H)       # one-time weight prep
    out = feature_perspective_forward(x, prepared)       # block_b -> 16, grid=(1,)
    out = jax.block_until_ready(out)
    assert out.shape == (B, OUT), out.shape

    ref = reference_forward(x, params, num_heads=H)
    err_max = float(jnp.max(jnp.abs(out - ref)))
    err_rms = float(jnp.sqrt(jnp.mean((out - ref) ** 2)))
    # bf16 MXU operands (incl. the bf16 score-path operands sanctioned by the
    # review) with f32 accumulation, f32 max/exp/softmax/LayerNorm, and EUP
    # approx reciprocals vs. a pure-f32 reference: loose abs / tight RMS bound.
    assert err_max < 1.2e-1 and err_rms < 5e-2, (err_max, err_rms)
    print("KERNEL_OK")
</pallas_src>

<mosaic_0001>
module attributes {stable_mosaic.version = 11 : i64} {
  func.func @feature_perspective_kernel(%arg0: i32, %arg1: memref<16x32xf32, #tpu.memory_space<vmem>>, %arg2: memref<32x384xbf16, #tpu.memory_space<vmem>>, %arg3: memref<1x384xf32, #tpu.memory_space<vmem>>, %arg4: memref<32x384xbf16, #tpu.memory_space<vmem>>, %arg5: memref<1x384xf32, #tpu.memory_space<vmem>>, %arg6: memref<32x32xbf16, #tpu.memory_space<vmem>>, %arg7: memref<1x32xf32, #tpu.memory_space<vmem>>, %arg8: memref<1x32xf32, #tpu.memory_space<vmem>>, %arg9: memref<1x32xf32, #tpu.memory_space<vmem>>, %arg10: memref<32x128xbf16, #tpu.memory_space<vmem>>, %arg11: memref<1x128xf32, #tpu.memory_space<vmem>>, %arg12: memref<32x16xbf16, #tpu.memory_space<vmem>>, %arg13: memref<16x32xbf16, #tpu.memory_space<vmem>>, %arg14: memref<16x128xf32, #tpu.memory_space<vmem>>, %arg15: memref<48x32xbf16, #tpu.memory_space<vmem>>, %arg16: memref<144x32xbf16, #tpu.memory_space<vmem>>, %arg17: memref<144x16xbf16, #tpu.memory_space<vmem>>, %arg18: memref<48x32xbf16, #tpu.memory_space<vmem>>) attributes {dimension_semantics = [#tpu.dimension_semantics<parallel>], iteration_bounds = array<i64: 1>, scalar_prefetch = 0 : i64, scratch_operands = 4 : i64, tpu.core_type = #tpu.core_type<tc>, window_params = [{transform_indices = @transform_0, window_bounds = array<i64: 16, 32>}, {pipeline_mode = #tpu.pipeline_mode<synchronous>, transform_indices = @transform_1, window_bounds = array<i64: 32, 384>}, {pipeline_mode = #tpu.pipeline_mode<synchronous>, transform_indices = @transform_2, window_bounds = array<i64: 1, 384>}, {pipeline_mode = #tpu.pipeline_mode<synchronous>, transform_indices = @transform_3, window_bounds = array<i64: 32, 384>}, {pipeline_mode = #tpu.pipeline_mode<synchronous>, transform_indices = @transform_4, window_bounds = array<i64: 1, 384>}, {pipeline_mode = #tpu.pipeline_mode<synchronous>, transform_indices = @transform_5, window_bounds = array<i64: 32, 32>}, {pipeline_mode = #tpu.pipeline_mode<synchronous>, transform_indices = @transform_6, window_bounds = array<i64: 1, 32>}, {pipeline_mode = #tpu.pipeline_mode<synchronous>, transform_indices = @transform_7, window_bounds = array<i64: 1, 32>}, {pipeline_mode = #tpu.pipeline_mode<synchronous>, transform_indices = @transform_8, window_bounds = array<i64: 1, 32>}, {pipeline_mode = #tpu.pipeline_mode<synchronous>, transform_indices = @transform_9, window_bounds = array<i64: 32, 128>}, {pipeline_mode = #tpu.pipeline_mode<synchronous>, transform_indices = @transform_10, window_bounds = array<i64: 1, 128>}, {pipeline_mode = #tpu.pipeline_mode<synchronous>, transform_indices = @transform_11, window_bounds = array<i64: 32, 16>}, {pipeline_mode = #tpu.pipeline_mode<synchronous>, transform_indices = @transform_12, window_bounds = array<i64: 16, 32>}, {transform_indices = @transform_13, window_bounds = array<i64: 16, 128>}]} {
    %c0 = arith.constant 0 : index
    %c0_0 = arith.constant 0 : index
    %0 = vector.load %arg1[%c0, %c0_0] : memref<16x32xf32, #tpu.memory_space<vmem>>, vector<16x32xf32>
    %1 = arith.truncf %0 : vector<16x32xf32> to vector<16x32xbf16>
    %c0_1 = arith.constant 0 : index
    %c0_2 = arith.constant 0 : index
    %2 = vector.load %arg2[%c0_1, %c0_2] : memref<32x384xbf16, #tpu.memory_space<vmem>>, vector<32x384xbf16>
    %cst = arith.constant dense<0.000000e+00> : vector<16x384xf32>
    %3 = tpu.matmul %1, %2, %cst {dimension_numbers = #tpu.dot_dimension_numbers<[1], [0], [0], [1], [0, 0, 1, 1], [], []>} : vector<16x32xbf16>, vector<32x384xbf16>, vector<16x384xf32> -> vector<16x384xf32>
    %c0_3 = arith.constant 0 : index
    %c0_4 = arith.constant 0 : index
    %4 = vector.load %arg3[%c0_3, %c0_4] : memref<1x384xf32, #tpu.memory_space<vmem>>, vector<1x384xf32>
    %5 = vector.broadcast %4 : vector<1x384xf32> to vector<16x384xf32>
    %6 = arith.addf %3, %5 : vector<16x384xf32>
    %7 = vector.extract_strided_slice %6 {offsets = [0, 0], sizes = [16, 32], strides = [1, 1]} : vector<16x384xf32> to vector<16x32xf32>
    %cst_5 = arith.constant 5.000000e-01 : f32
    %8 = vector.broadcast %cst_5 : f32 to vector<16x32xf32>
    %9 = arith.mulf %8, %7 : vector<16x32xf32>
    %cst_6 = arith.constant 0.707106769 : f32
    %10 = vector.broadcast %cst_6 : f32 to vector<16x32xf32>
    %11 = arith.mulf %7, %10 : vector<16x32xf32>
    %cst_7 = arith.constant 0.000000e+00 : f32
    %12 = vector.broadcast %cst_7 : f32 to vector<16x32xf32>
    %13 = arith.cmpf olt, %11, %12 : vector<16x32xf32>
    %cst_8 = arith.constant -1.000000e+00 : f32
    %cst_9 = arith.constant 1.000000e+00 : f32
    %14 = vector.broadcast %cst_8 : f32 to vector<16x32xf32>
    %15 = vector.broadcast %cst_9 : f32 to vector<16x32xf32>
    %16 = arith.select %13, %14, %15 : vector<16x32xi1>, vector<16x32xf32>
    %17 = math.absf %11 : vector<16x32xf32>
    %cst_10 = arith.constant 0.327591091 : f32
    %18 = vector.broadcast %cst_10 : f32 to vector<16x32xf32>
    %19 = arith.mulf %18, %17 : vector<16x32xf32>
    %cst_11 = arith.constant 1.000000e+00 : f32
    %20 = vector.broadcast %cst_11 : f32 to vector<16x32xf32>
    %21 = arith.addf %20, %19 : vector<16x32xf32>
    %22 = tpu.reciprocal %21 {approx = true} : vector<16x32xf32> -> vector<16x32xf32>
    %cst_12 = arith.constant 1.06140542 : f32
    %23 = vector.broadcast %cst_12 : f32 to vector<16x32xf32>
    %24 = arith.mulf %23, %22 : vector<16x32xf32>
    %cst_13 = arith.constant -1.45315206 : f32
    %25 = vector.broadcast %cst_13 : f32 to vector<16x32xf32>
    %26 = arith.addf %24, %25 : vector<16x32xf32>
    %27 = arith.mulf %26, %22 : vector<16x32xf32>
    %cst_14 = arith.constant 1.42141378 : f32
    %28 = vector.broadcast %cst_14 : f32 to vector<16x32xf32>
    %29 = arith.addf %27, %28 : vector<16x32xf32>
    %30 = arith.mulf %29, %22 : vector<16x32xf32>
    %cst_15 = arith.constant -0.284496725 : f32
    %31 = vector.broadcast %cst_15 : f32 to vector<16x32xf32>
    %32 = arith.addf %30, %31 : vector<16x32xf32>
    %33 = arith.mulf %32, %22 : vector<16x32xf32>
    %cst_16 = arith.constant 0.254829586 : f32
    %34 = vector.broadcast %cst_16 : f32 to vector<16x32xf32>
    %35 = arith.addf %33, %34 : vector<16x32xf32>
    %36 = arith.mulf %35, %22 : vector<16x32xf32>
    %cst_17 = arith.constant 0.000000e+00 : f32
    %37 = vector.broadcast %cst_17 : f32 to vector<16x32xf32>
    %38 = arith.subf %37, %17 : vector<16x32xf32>
    %39 = arith.mulf %38, %17 : vector<16x32xf32>
    %40 = math.exp %39 : vector<16x32xf32>
    %41 = arith.mulf %36, %40 : vector<16x32xf32>
    %cst_18 = arith.constant 1.000000e+00 : f32
    %42 = vector.broadcast %cst_18 : f32 to vector<16x32xf32>
    %43 = arith.subf %42, %41 : vector<16x32xf32>
    %44 = arith.mulf %16, %43 : vector<16x32xf32>
    %cst_19 = arith.constant 1.000000e+00 : f32
    %45 = vector.broadcast %cst_19 : f32 to vector<16x32xf32>
    %46 = arith.addf %45, %44 : vector<16x32xf32>
    %47 = arith.mulf %9, %46 : vector<16x32xf32>
    %48 = arith.truncf %47 : vector<16x32xf32> to vector<16x32xbf16>
    %c0_20 = arith.constant 0 : index
    %c0_21 = arith.constant 0 : index
    %49 = vector.load %arg15[%c0_20, %c0_21] : memref<48x32xbf16, #tpu.memory_space<vmem>>, vector<16x32xbf16>
    tpu.vector_store %arg15[%c0_20, %c0_21], %48 {strides = array<i32>} : memref<48x32xbf16, #tpu.memory_space<vmem>>, vector<16x32xbf16>,
    %50 = vector.extract_strided_slice %6 {offsets = [0, 128], sizes = [16, 32], strides = [1, 1]} : vector<16x384xf32> to vector<16x32xf32>
    %cst_22 = arith.constant 0.000000e+00 : f32
    %51 = vector.broadcast %cst_22 : f32 to vector<16x32xf32>
    %52 = arith.subf %51, %50 : vector<16x32xf32>
    %53 = math.exp %52 : vector<16x32xf32>
    %cst_23 = arith.constant 1.000000e+00 : f32
    %54 = vector.broadcast %cst_23 : f32 to vector<16x32xf32>
    %55 = arith.addf %54, %53 : vector<16x32xf32>
    %56 = tpu.reciprocal %55 {approx = true} : vector<16x32xf32> -> vector<16x32xf32>
    %57 = arith.mulf %50, %56 : vector<16x32xf32>
    %58 = arith.truncf %57 : vector<16x32xf32> to vector<16x32xbf16>
    %c16 = arith.constant 16 : index
    %c0_24 = arith.constant 0 : index
    %59 = vector.load %arg15[%c16, %c0_24] : memref<48x32xbf16, #tpu.memory_space<vmem>>, vector<16x32xbf16>
    tpu.vector_store %arg15[%c16, %c0_24], %58 {strides = array<i32>} : memref<48x32xbf16, #tpu.memory_space<vmem>>, vector<16x32xbf16>,
    %60 = vector.extract_strided_slice %6 {offsets = [0, 256], sizes = [16, 32], strides = [1, 1]} : vector<16x384xf32> to vector<16x32xf32>
    %61 = math.tanh %60 : vector<16x32xf32>
    %62 = arith.truncf %61 : vector<16x32xf32> to vector<16x32xbf16>
    %c32 = arith.constant 32 : index
    %c0_25 = arith.constant 0 : index
    %63 = vector.load %arg15[%c32, %c0_25] : memref<48x32xbf16, #tpu.memory_space<vmem>>, vector<16x32xbf16>
    tpu.vector_store %arg15[%c32, %c0_25], %62 {strides = array<i32>} : memref<48x32xbf16, #tpu.memory_space<vmem>>, vector<16x32xbf16>,
    %c0_26 = arith.constant 0 : index
    %c0_27 = arith.constant 0 : index
    %64 = vector.load %arg15[%c0_26, %c0_27] : memref<48x32xbf16, #tpu.memory_space<vmem>>, vector<48x32xbf16>
    %c0_28 = arith.constant 0 : index
    %c0_29 = arith.constant 0 : index
    %65 = vector.load %arg4[%c0_28, %c0_29] : memref<32x384xbf16, #tpu.memory_space<vmem>>, vector<32x384xbf16>
    %cst_30 = arith.constant dense<0.000000e+00> : vector<48x384xf32>
    %66 = tpu.matmul %64, %65, %cst_30 {dimension_numbers = #tpu.dot_dimension_numbers<[1], [0], [0], [1], [0, 0, 1, 1], [], []>} : vector<48x32xbf16>, vector<32x384xbf16>, vector<48x384xf32> -> vector<48x384xf32>
    %c0_31 = arith.constant 0 : index
    %c0_32 = arith.constant 0 : index
    %67 = vector.load %arg5[%c0_31, %c0_32] : memref<1x384xf32, #tpu.memory_space<vmem>>, vector<1x384xf32>
    %68 = vector.broadcast %67 : vector<1x384xf32> to vector<48x384xf32>
    %69 = arith.addf %66, %68 : vector<48x384xf32>
    %70 = vector.extract_strided_slice %69 {offsets = [0, 0], sizes = [16, 32], strides = [1, 1]} : vector<48x384xf32> to vector<16x32xf32>
    %71 = vector.extract_strided_slice %69 {offsets = [16, 0], sizes = [16, 32], strides = [1, 1]} : vector<48x384xf32> to vector<16x32xf32>
    %72 = vector.extract_strided_slice %69 {offsets = [32, 0], sizes = [16, 32], strides = [1, 1]} : vector<48x384xf32> to vector<16x32xf32>
    %73 = vector.extract_strided_slice %69 {offsets = [0, 128], sizes = [16, 32], strides = [1, 1]} : vector<48x384xf32> to vector<16x32xf32>
    %74 = vector.extract_strided_slice %69 {offsets = [16, 128], sizes = [16, 32], strides = [1, 1]} : vector<48x384xf32> to vector<16x32xf32>
    %75 = vector.extract_strided_slice %69 {offsets = [32, 128], sizes = [16, 32], strides = [1, 1]} : vector<48x384xf32> to vector<16x32xf32>
    %76 = vector.extract_strided_slice %69 {offsets = [0, 256], sizes = [16, 32], strides = [1, 1]} : vector<48x384xf32> to vector<16x32xf32>
    %77 = vector.extract_strided_slice %69 {offsets = [16, 256], sizes = [16, 32], strides = [1, 1]} : vector<48x384xf32> to vector<16x32xf32>
    %78 = vector.extract_strided_slice %69 {offsets = [32, 256], sizes = [16, 32], strides = [1, 1]} : vector<48x384xf32> to vector<16x32xf32>
    %79 = arith.mulf %70, %73 : vector<16x32xf32>
    %80 = arith.truncf %79 : vector<16x32xf32> to vector<16x32xbf16>
    %c0_33 = arith.constant 0 : index
    %c0_34 = arith.constant 0 : index
    %81 = vector.load %arg16[%c0_33, %c0_34] : memref<144x32xbf16, #tpu.memory_space<vmem>>, vector<16x32xbf16>
    tpu.vector_store %arg16[%c0_33, %c0_34], %80 {strides = array<i32>} : memref<144x32xbf16, #tpu.memory_space<vmem>>, vector<16x32xbf16>,
    %82 = arith.mulf %70, %74 : vector<16x32xf32>
    %83 = arith.truncf %82 : vector<16x32xf32> to vector<16x32xbf16>
    %c16_35 = arith.constant 16 : index
    %c0_36 = arith.constant 0 : index
    %84 = vector.load %arg16[%c16_35, %c0_36] : memref<144x32xbf16, #tpu.memory_space<vmem>>, vector<16x32xbf16>
    tpu.vector_store %arg16[%c16_35, %c0_36], %83 {strides = array<i32>} : memref<144x32xbf16, #tpu.memory_space<vmem>>, vector<16x32xbf16>,
    %85 = arith.mulf %70, %75 : vector<16x32xf32>
    %86 = arith.truncf %85 : vector<16x32xf32> to vector<16x32xbf16>
    %c32_37 = arith.constant 32 : index
    %c0_38 = arith.constant 0 : index
    %87 = vector.load %arg16[%c32_37, %c0_38] : memref<144x32xbf16, #tpu.memory_space<vmem>>, vector<16x32xbf16>
    tpu.vector_store %arg16[%c32_37, %c0_38], %86 {strides = array<i32>} : memref<144x32xbf16, #tpu.memory_space<vmem>>, vector<16x32xbf16>,
    %88 = arith.mulf %71, %73 : vector<16x32xf32>
    %89 = arith.truncf %88 : vector<16x32xf32> to vector<16x32xbf16>
    %c48 = arith.constant 48 : index
    %c0_39 = arith.constant 0 : index
    %90 = vector.load %arg16[%c48, %c0_39] : memref<144x32xbf16, #tpu.memory_space<vmem>>, vector<16x32xbf16>
    tpu.vector_store %arg16[%c48, %c0_39], %89 {strides = array<i32>} : memref<144x32xbf16, #tpu.memory_space<vmem>>, vector<16x32xbf16>,
    %91 = arith.mulf %71, %74 : vector<16x32xf32>
    %92 = arith.truncf %91 : vector<16x32xf32> to vector<16x32xbf16>
    %c64 = arith.constant 64 : index
    %c0_40 = arith.constant 0 : index
    %93 = vector.load %arg16[%c64, %c0_40] : memref<144x32xbf16, #tpu.memory_space<vmem>>, vector<16x32xbf16>
    tpu.vector_store %arg16[%c64, %c0_40], %92 {strides = array<i32>} : memref<144x32xbf16, #tpu.memory_space<vmem>>, vector<16x32xbf16>,
    %94 = arith.mulf %71, %75 : vector<16x32xf32>
    %95 = arith.truncf %94 : vector<16x32xf32> to vector<16x32xbf16>
    %c80 = arith.constant 80 : index
    %c0_41 = arith.constant 0 : index
    %96 = vector.load %arg16[%c80, %c0_41] : memref<144x32xbf16, #tpu.memory_space<vmem>>, vector<16x32xbf16>
    tpu.vector_store %arg16[%c80, %c0_41], %95 {strides = array<i32>} : memref<144x32xbf16, #tpu.memory_space<vmem>>, vector<16x32xbf16>,
    %97 = arith.mulf %72, %73 : vector<16x32xf32>
    %98 = arith.truncf %97 : vector<16x32xf32> to vector<16x32xbf16>
    %c96 = arith.constant 96 : index
    %c0_42 = arith.constant 0 : index
    %99 = vector.load %arg16[%c96, %c0_42] : memref<144x32xbf16, #tpu.memory_space<vmem>>, vector<16x32xbf16>
    tpu.vector_store %arg16[%c96, %c0_42], %98 {strides = array<i32>} : memref<144x32xbf16, #tpu.memory_space<vmem>>, vector<16x32xbf16>,
    %100 = arith.mulf %72, %74 : vector<16x32xf32>
    %101 = arith.truncf %100 : vector<16x32xf32> to vector<16x32xbf16>
    %c112 = arith.constant 112 : index
    %c0_43 = arith.constant 0 : index
    %102 = vector.load %arg16[%c112, %c0_43] : memref<144x32xbf16, #tpu.memory_space<vmem>>, vector<16x32xbf16>
    tpu.vector_store %arg16[%c112, %c0_43], %101 {strides = array<i32>} : memref<144x32xbf16, #tpu.memory_space<vmem>>, vector<16x32xbf16>,
    %103 = arith.mulf %72, %75 : vector<16x32xf32>
    %104 = arith.truncf %103 : vector<16x32xf32> to vector<16x32xbf16>
    %c128 = arith.constant 128 : index
    %c0_44 = arith.constant 0 : index
    %105 = vector.load %arg16[%c128, %c0_44] : memref<144x32xbf16, #tpu.memory_space<vmem>>, vector<16x32xbf16>
    tpu.vector_store %arg16[%c128, %c0_44], %104 {strides = array<i32>} : memref<144x32xbf16, #tpu.memory_space<vmem>>, vector<16x32xbf16>,
    %c0_45 = arith.constant 0 : index
    %c0_46 = arith.constant 0 : index
    %106 = vector.load %arg16[%c0_45, %c0_46] : memref<144x32xbf16, #tpu.memory_space<vmem>>, vector<144x32xbf16>
    %c0_47 = arith.constant 0 : index
    %c0_48 = arith.constant 0 : index
    %107 = vector.load %arg12[%c0_47, %c0_48] : memref<32x16xbf16, #tpu.memory_space<vmem>>, vector<32x16xbf16>
    %cst_49 = arith.constant dense<0.000000e+00> : vector<144x16xf32>
    %108 = tpu.matmul %106, %107, %cst_49 {dimension_numbers = #tpu.dot_dimension_numbers<[1], [0], [0], [1], [0, 0, 1, 1], [], []>} : vector<144x32xbf16>, vector<32x16xbf16>, vector<144x16xf32> -> vector<144x16xf32>
    %109 = vector.extract_strided_slice %108 {offsets = [0, 0], sizes = [16, 16], strides = [1, 1]} : vector<144x16xf32> to vector<16x16xf32>
    %110 = vector.extract_strided_slice %108 {offsets = [16, 0], sizes = [16, 16], strides = [1, 1]} : vector<144x16xf32> to vector<16x16xf32>
    %111 = vector.extract_strided_slice %108 {offsets = [32, 0], sizes = [16, 16], strides = [1, 1]} : vector<144x16xf32> to vector<16x16xf32>
    %112 = arith.maximumf %109, %110 : vector<16x16xf32>
    %113 = arith.maximumf %112, %111 : vector<16x16xf32>
    %114 = arith.subf %109, %113 : vector<16x16xf32>
    %115 = math.exp %114 : vector<16x16xf32>
    %116 = arith.subf %110, %113 : vector<16x16xf32>
    %117 = math.exp %116 : vector<16x16xf32>
    %118 = arith.subf %111, %113 : vector<16x16xf32>
    %119 = math.exp %118 : vector<16x16xf32>
    %120 = arith.addf %115, %117 : vector<16x16xf32>
    %121 = arith.addf %120, %119 : vector<16x16xf32>
    %122 = tpu.reciprocal %121 {approx = true} : vector<16x16xf32> -> vector<16x16xf32>
    %123 = arith.mulf %115, %122 : vector<16x16xf32>
    %124 = arith.truncf %123 : vector<16x16xf32> to vector<16x16xbf16>
    %c0_50 = arith.constant 0 : index
    %c0_51 = arith.constant 0 : index
    %125 = vector.load %arg17[%c0_50, %c0_51] : memref<144x16xbf16, #tpu.memory_space<vmem>>, vector<16x16xbf16>
    tpu.vector_store %arg17[%c0_50, %c0_51], %124 {strides = array<i32>} : memref<144x16xbf16, #tpu.memory_space<vmem>>, vector<16x16xbf16>,
    %126 = arith.mulf %117, %122 : vector<16x16xf32>
    %127 = arith.truncf %126 : vector<16x16xf32> to vector<16x16xbf16>
    %c16_52 = arith.constant 16 : index
    %c0_53 = arith.constant 0 : index
    %128 = vector.load %arg17[%c16_52, %c0_53] : memref<144x16xbf16, #tpu.memory_space<vmem>>, vector<16x16xbf16>
    tpu.vector_store %arg17[%c16_52, %c0_53], %127 {strides = array<i32>} : memref<144x16xbf16, #tpu.memory_space<vmem>>, vector<16x16xbf16>,
    %129 = arith.mulf %119, %122 : vector<16x16xf32>
    %130 = arith.truncf %129 : vector<16x16xf32> to vector<16x16xbf16>
    %c32_54 = arith.constant 32 : index
    %c0_55 = arith.constant 0 : index
    %131 = vector.load %arg17[%c32_54, %c0_55] : memref<144x16xbf16, #tpu.memory_space<vmem>>, vector<16x16xbf16>
    tpu.vector_store %arg17[%c32_54, %c0_55], %130 {strides = array<i32>} : memref<144x16xbf16, #tpu.memory_space<vmem>>, vector<16x16xbf16>,
    %132 = vector.extract_strided_slice %108 {offsets = [48, 0], sizes = [16, 16], strides = [1, 1]} : vector<144x16xf32> to vector<16x16xf32>
    %133 = vector.extract_strided_slice %108 {offsets = [64, 0], sizes = [16, 16], strides = [1, 1]} : vector<144x16xf32> to vector<16x16xf32>
    %134 = vector.extract_strided_slice %108 {offsets = [80, 0], sizes = [16, 16], strides = [1, 1]} : vector<144x16xf32> to vector<16x16xf32>
    %135 = arith.maximumf %132, %133 : vector<16x16xf32>
    %136 = arith.maximumf %135, %134 : vector<16x16xf32>
    %137 = arith.subf %132, %136 : vector<16x16xf32>
    %138 = math.exp %137 : vector<16x16xf32>
    %139 = arith.subf %133, %136 : vector<16x16xf32>
    %140 = math.exp %139 : vector<16x16xf32>
    %141 = arith.subf %134, %136 : vector<16x16xf32>
    %142 = math.exp %141 : vector<16x16xf32>
    %143 = arith.addf %138, %140 : vector<16x16xf32>
    %144 = arith.addf %143, %142 : vector<16x16xf32>
    %145 = tpu.reciprocal %144 {approx = true} : vector<16x16xf32> -> vector<16x16xf32>
    %146 = arith.mulf %138, %145 : vector<16x16xf32>
    %147 = arith.truncf %146 : vector<16x16xf32> to vector<16x16xbf16>
    %c48_56 = arith.constant 48 : index
    %c0_57 = arith.constant 0 : index
    %148 = vector.load %arg17[%c48_56, %c0_57] : memref<144x16xbf16, #tpu.memory_space<vmem>>, vector<16x16xbf16>
    tpu.vector_store %arg17[%c48_56, %c0_57], %147 {strides = array<i32>} : memref<144x16xbf16, #tpu.memory_space<vmem>>, vector<16x16xbf16>,
    %149 = arith.mulf %140, %145 : vector<16x16xf32>
    %150 = arith.truncf %149 : vector<16x16xf32> to vector<16x16xbf16>
    %c64_58 = arith.constant 64 : index
    %c0_59 = arith.constant 0 : index
    %151 = vector.load %arg17[%c64_58, %c0_59] : memref<144x16xbf16, #tpu.memory_space<vmem>>, vector<16x16xbf16>
    tpu.vector_store %arg17[%c64_58, %c0_59], %150 {strides = array<i32>} : memref<144x16xbf16, #tpu.memory_space<vmem>>, vector<16x16xbf16>,
    %152 = arith.mulf %142, %145 : vector<16x16xf32>
    %153 = arith.truncf %152 : vector<16x16xf32> to vector<16x16xbf16>
    %c80_60 = arith.constant 80 : index
    %c0_61 = arith.constant 0 : index
    %154 = vector.load %arg17[%c80_60, %c0_61] : memref<144x16xbf16, #tpu.memory_space<vmem>>, vector<16x16xbf16>
    tpu.vector_store %arg17[%c80_60, %c0_61], %153 {strides = array<i32>} : memref<144x16xbf16, #tpu.memory_space<vmem>>, vector<16x16xbf16>,
    %155 = vector.extract_strided_slice %108 {offsets = [96, 0], sizes = [16, 16], strides = [1, 1]} : vector<144x16xf32> to vector<16x16xf32>
    %156 = vector.extract_strided_slice %108 {offsets = [112, 0], sizes = [16, 16], strides = [1, 1]} : vector<144x16xf32> to vector<16x16xf32>
    %157 = vector.extract_strided_slice %108 {offsets = [128, 0], sizes = [16, 16], strides = [1, 1]} : vector<144x16xf32> to vector<16x16xf32>
    %158 = arith.maximumf %155, %156 : vector<16x16xf32>
    %159 = arith.maximumf %158, %157 : vector<16x16xf32>
    %160 = arith.subf %155, %159 : vector<16x16xf32>
    %161 = math.exp %160 : vector<16x16xf32>
    %162 = arith.subf %156, %159 : vector<16x16xf32>
    %163 = math.exp %162 : vector<16x16xf32>
    %164 = arith.subf %157, %159 : vector<16x16xf32>
    %165 = math.exp %164 : vector<16x16xf32>
    %166 = arith.addf %161, %163 : vector<16x16xf32>
    %167 = arith.addf %166, %165 : vector<16x16xf32>
    %168 = tpu.reciprocal %167 {approx = true} : vector<16x16xf32> -> vector<16x16xf32>
    %169 = arith.mulf %161, %168 : vector<16x16xf32>
    %170 = arith.truncf %169 : vector<16x16xf32> to vector<16x16xbf16>
    %c96_62 = arith.constant 96 : index
    %c0_63 = arith.constant 0 : index
    %171 = vector.load %arg17[%c96_62, %c0_63] : memref<144x16xbf16, #tpu.memory_space<vmem>>, vector<16x16xbf16>
    tpu.vector_store %arg17[%c96_62, %c0_63], %170 {strides = array<i32>} : memref<144x16xbf16, #tpu.memory_space<vmem>>, vector<16x16xbf16>,
    %172 = arith.mulf %163, %168 : vector<16x16xf32>
    %173 = arith.truncf %172 : vector<16x16xf32> to vector<16x16xbf16>
    %c112_64 = arith.constant 112 : index
    %c0_65 = arith.constant 0 : index
    %174 = vector.load %arg17[%c112_64, %c0_65] : memref<144x16xbf16, #tpu.memory_space<vmem>>, vector<16x16xbf16>
    tpu.vector_store %arg17[%c112_64, %c0_65], %173 {strides = array<i32>} : memref<144x16xbf16, #tpu.memory_space<vmem>>, vector<16x16xbf16>,
    %175 = arith.mulf %165, %168 : vector<16x16xf32>
    %176 = arith.truncf %175 : vector<16x16xf32> to vector<16x16xbf16>
    %c128_66 = arith.constant 128 : index
    %c0_67 = arith.constant 0 : index
    %177 = vector.load %arg17[%c128_66, %c0_67] : memref<144x16xbf16, #tpu.memory_space<vmem>>, vector<16x16xbf16>
    tpu.vector_store %arg17[%c128_66, %c0_67], %176 {strides = array<i32>} : memref<144x16xbf16, #tpu.memory_space<vmem>>, vector<16x16xbf16>,
    %c0_68 = arith.constant 0 : index
    %c0_69 = arith.constant 0 : index
    %178 = vector.load %arg17[%c0_68, %c0_69] : memref<144x16xbf16, #tpu.memory_space<vmem>>, vector<144x16xbf16>
    %c0_70 = arith.constant 0 : index
    %c0_71 = arith.constant 0 : index
    %179 = vector.load %arg13[%c0_70, %c0_71] : memref<16x32xbf16, #tpu.memory_space<vmem>>, vector<16x32xbf16>
    %cst_72 = arith.constant dense<0.000000e+00> : vector<144x32xf32>
    %180 = tpu.matmul %178, %179, %cst_72 {dimension_numbers = #tpu.dot_dimension_numbers<[1], [0], [0], [1], [0, 0, 1, 1], [], []>} : vector<144x16xbf16>, vector<16x32xbf16>, vector<144x32xf32> -> vector<144x32xf32>
    %181 = vector.extract_strided_slice %180 {offsets = [0, 0], sizes = [16, 32], strides = [1, 1]} : vector<144x32xf32> to vector<16x32xf32>
    %182 = arith.mulf %181, %76 : vector<16x32xf32>
    %183 = vector.extract_strided_slice %180 {offsets = [16, 0], sizes = [16, 32], strides = [1, 1]} : vector<144x32xf32> to vector<16x32xf32>
    %184 = arith.mulf %183, %77 : vector<16x32xf32>
    %185 = arith.addf %182, %184 : vector<16x32xf32>
    %186 = vector.extract_strided_slice %180 {offsets = [32, 0], sizes = [16, 32], strides = [1, 1]} : vector<144x32xf32> to vector<16x32xf32>
    %187 = arith.mulf %186, %78 : vector<16x32xf32>
    %188 = arith.addf %185, %187 : vector<16x32xf32>
    %189 = arith.truncf %188 : vector<16x32xf32> to vector<16x32xbf16>
    %c0_73 = arith.constant 0 : index
    %c0_74 = arith.constant 0 : index
    %190 = vector.load %arg18[%c0_73, %c0_74] : memref<48x32xbf16, #tpu.memory_space<vmem>>, vector<16x32xbf16>
    tpu.vector_store %arg18[%c0_73, %c0_74], %189 {strides = array<i32>} : memref<48x32xbf16, #tpu.memory_space<vmem>>, vector<16x32xbf16>,
    %191 = vector.extract_strided_slice %180 {offsets = [48, 0], sizes = [16, 32], strides = [1, 1]} : vector<144x32xf32> to vector<16x32xf32>
    %192 = arith.mulf %191, %76 : vector<16x32xf32>
    %193 = vector.extract_strided_slice %180 {offsets = [64, 0], sizes = [16, 32], strides = [1, 1]} : vector<144x32xf32> to vector<16x32xf32>
    %194 = arith.mulf %193, %77 : vector<16x32xf32>
    %195 = arith.addf %192, %194 : vector<16x32xf32>
    %196 = vector.extract_strided_slice %180 {offsets = [80, 0], sizes = [16, 32], strides = [1, 1]} : vector<144x32xf32> to vector<16x32xf32>
    %197 = arith.mulf %196, %78 : vector<16x32xf32>
    %198 = arith.addf %195, %197 : vector<16x32xf32>
    %199 = arith.truncf %198 : vector<16x32xf32> to vector<16x32xbf16>
    %c16_75 = arith.constant 16 : index
    %c0_76 = arith.constant 0 : index
    %200 = vector.load %arg18[%c16_75, %c0_76] : memref<48x32xbf16, #tpu.memory_space<vmem>>, vector<16x32xbf16>
    tpu.vector_store %arg18[%c16_75, %c0_76], %199 {strides = array<i32>} : memref<48x32xbf16, #tpu.memory_space<vmem>>, vector<16x32xbf16>,
    %201 = vector.extract_strided_slice %180 {offsets = [96, 0], sizes = [16, 32], strides = [1, 1]} : vector<144x32xf32> to vector<16x32xf32>
    %202 = arith.mulf %201, %76 : vector<16x32xf32>
    %203 = vector.extract_strided_slice %180 {offsets = [112, 0], sizes = [16, 32], strides = [1, 1]} : vector<144x32xf32> to vector<16x32xf32>
    %204 = arith.mulf %203, %77 : vector<16x32xf32>
    %205 = arith.addf %202, %204 : vector<16x32xf32>
    %206 = vector.extract_strided_slice %180 {offsets = [128, 0], sizes = [16, 32], strides = [1, 1]} : vector<144x32xf32> to vector<16x32xf32>
    %207 = arith.mulf %206, %78 : vector<16x32xf32>
    %208 = arith.addf %205, %207 : vector<16x32xf32>
    %209 = arith.truncf %208 : vector<16x32xf32> to vector<16x32xbf16>
    %c32_77 = arith.constant 32 : index
    %c0_78 = arith.constant 0 : index
    %210 = vector.load %arg18[%c32_77, %c0_78] : memref<48x32xbf16, #tpu.memory_space<vmem>>, vector<16x32xbf16>
    tpu.vector_store %arg18[%c32_77, %c0_78], %209 {strides = array<i32>} : memref<48x32xbf16, #tpu.memory_space<vmem>>, vector<16x32xbf16>,
    %c0_79 = arith.constant 0 : index
    %c0_80 = arith.constant 0 : index
    %211 = vector.load %arg18[%c0_79, %c0_80] : memref<48x32xbf16, #tpu.memory_space<vmem>>, vector<48x32xbf16>
    %c0_81 = arith.constant 0 : index
    %c0_82 = arith.constant 0 : index
    %212 = vector.load %arg6[%c0_81, %c0_82] : memref<32x32xbf16, #tpu.memory_space<vmem>>, vector<32x32xbf16>
    %cst_83 = arith.constant dense<0.000000e+00> : vector<48x32xf32>
    %213 = tpu.matmul %211, %212, %cst_83 {dimension_numbers = #tpu.dot_dimension_numbers<[1], [0], [0], [1], [0, 0, 1, 1], [], []>} : vector<48x32xbf16>, vector<32x32xbf16>, vector<48x32xf32> -> vector<48x32xf32>
    %c0_84 = arith.constant 0 : index
    %c0_85 = arith.constant 0 : index
    %214 = vector.load %arg7[%c0_84, %c0_85] : memref<1x32xf32, #tpu.memory_space<vmem>>, vector<1x32xf32>
    %215 = vector.broadcast %214 : vector<1x32xf32> to vector<48x32xf32>
    %216 = arith.addf %213, %215 : vector<48x32xf32>
    %c0_86 = arith.constant 0 : index
    %c0_87 = arith.constant 0 : index
    %217 = vector.load %arg8[%c0_86, %c0_87] : memref<1x32xf32, #tpu.memory_space<vmem>>, vector<1x32xf32>
    %c0_88 = arith.constant 0 : index
    %c0_89 = arith.constant 0 : index
    %218 = vector.load %arg9[%c0_88, %c0_89] : memref<1x32xf32, #tpu.memory_space<vmem>>, vector<1x32xf32>
    %cst_90 = arith.constant dense<0.000000e+00> : vector<48xf32>
    %219 = vector.multi_reduction <add>, %216, %cst_90 [1] : vector<48x32xf32> to vector<48xf32>
    %220 = vector.shape_cast %219 : vector<48xf32> to vector<48x1xf32>
    %cst_91 = arith.constant 3.200000e+01 : f32
    %221 = vector.broadcast %cst_91 : f32 to vector<48x1xf32>
    %222 = arith.divf %220, %221 : vector<48x1xf32>
    %223 = vector.broadcast %222 : vector<48x1xf32> to vector<48x32xf32>
    %224 = arith.subf %216, %223 : vector<48x32xf32>
    %225 = arith.mulf %224, %224 : vector<48x32xf32>
    %cst_92 = arith.constant dense<0.000000e+00> : vector<48xf32>
    %226 = vector.multi_reduction <add>, %225, %cst_92 [1] : vector<48x32xf32> to vector<48xf32>
    %227 = vector.shape_cast %226 : vector<48xf32> to vector<48x1xf32>
    %cst_93 = arith.constant 3.200000e+01 : f32
    %228 = vector.broadcast %cst_93 : f32 to vector<48x1xf32>
    %229 = arith.divf %227, %228 : vector<48x1xf32>
    %230 = vector.broadcast %222 : vector<48x1xf32> to vector<48x32xf32>
    %231 = arith.subf %216, %230 : vector<48x32xf32>
    %cst_94 = arith.constant 9.99999974E-6 : f32
    %232 = vector.broadcast %cst_94 : f32 to vector<48x1xf32>
    %233 = arith.addf %229, %232 : vector<48x1xf32>
    %234 = math.rsqrt %233 : vector<48x1xf32>
    %235 = vector.broadcast %234 : vector<48x1xf32> to vector<48x32xf32>
    %236 = arith.mulf %231, %235 : vector<48x32xf32>
    %237 = vector.broadcast %217 : vector<1x32xf32> to vector<48x32xf32>
    %238 = arith.mulf %236, %237 : vector<48x32xf32>
    %239 = vector.broadcast %218 : vector<1x32xf32> to vector<48x32xf32>
    %240 = arith.addf %238, %239 : vector<48x32xf32>
    %241 = vector.extract_strided_slice %240 {offsets = [0, 0], sizes = [16, 32], strides = [1, 1]} : vector<48x32xf32> to vector<16x32xf32>
    %242 = vector.extract_strided_slice %240 {offsets = [16, 0], sizes = [16, 32], strides = [1, 1]} : vector<48x32xf32> to vector<16x32xf32>
    %243 = arith.addf %241, %242 : vector<16x32xf32>
    %244 = vector.extract_strided_slice %240 {offsets = [32, 0], sizes = [16, 32], strides = [1, 1]} : vector<48x32xf32> to vector<16x32xf32>
    %245 = arith.addf %243, %244 : vector<16x32xf32>
    %cst_95 = arith.constant 0.333333343 : f32
    %246 = vector.broadcast %cst_95 : f32 to vector<16x32xf32>
    %247 = arith.mulf %245, %246 : vector<16x32xf32>
    %248 = arith.truncf %247 : vector<16x32xf32> to vector<16x32xbf16>
    %c0_96 = arith.constant 0 : index
    %c0_97 = arith.constant 0 : index
    %249 = vector.load %arg10[%c0_96, %c0_97] : memref<32x128xbf16, #tpu.memory_space<vmem>>, vector<32x128xbf16>
    %cst_98 = arith.constant dense<0.000000e+00> : vector<16x128xf32>
    %250 = tpu.matmul %248, %249, %cst_98 {dimension_numbers = #tpu.dot_dimension_numbers<[1], [0], [0], [1], [0, 0, 1, 1], [], []>} : vector<16x32xbf16>, vector<32x128xbf16>, vector<16x128xf32> -> vector<16x128xf32>
    %c0_99 = arith.constant 0 : index
    %c0_100 = arith.constant 0 : index
    %251 = vector.load %arg11[%c0_99, %c0_100] : memref<1x128xf32, #tpu.memory_space<vmem>>, vector<1x128xf32>
    %252 = vector.broadcast %251 : vector<1x128xf32> to vector<16x128xf32>
    %253 = arith.addf %250, %252 : vector<16x128xf32>
    %cst_101 = arith.constant 5.000000e-01 : f32
    %254 = vector.broadcast %cst_101 : f32 to vector<16x128xf32>
    %255 = arith.mulf %254, %253 : vector<16x128xf32>
    %cst_102 = arith.constant 0.707106769 : f32
    %256 = vector.broadcast %cst_102 : f32 to vector<16x128xf32>
    %257 = arith.mulf %253, %256 : vector<16x128xf32>
    %cst_103 = arith.constant 0.000000e+00 : f32
    %258 = vector.broadcast %cst_103 : f32 to vector<16x128xf32>
    %259 = arith.cmpf olt, %257, %258 : vector<16x128xf32>
    %cst_104 = arith.constant -1.000000e+00 : f32
    %cst_105 = arith.constant 1.000000e+00 : f32
    %260 = vector.broadcast %cst_104 : f32 to vector<16x128xf32>
    %261 = vector.broadcast %cst_105 : f32 to vector<16x128xf32>
    %262 = arith.select %259, %260, %261 : vector<16x128xi1>, vector<16x128xf32>
    %263 = math.absf %257 : vector<16x128xf32>
    %cst_106 = arith.constant 0.327591091 : f32
    %264 = vector.broadcast %cst_106 : f32 to vector<16x128xf32>
    %265 = arith.mulf %264, %263 : vector<16x128xf32>
    %cst_107 = arith.constant 1.000000e+00 : f32
    %266 = vector.broadcast %cst_107 : f32 to vector<16x128xf32>
    %267 = arith.addf %266, %265 : vector<16x128xf32>
    %268 = tpu.reciprocal %267 {approx = true} : vector<16x128xf32> -> vector<16x128xf32>
    %cst_108 = arith.constant 1.06140542 : f32
    %269 = vector.broadcast %cst_108 : f32 to vector<16x128xf32>
    %270 = arith.mulf %269, %268 : vector<16x128xf32>
    %cst_109 = arith.constant -1.45315206 : f32
    %271 = vector.broadcast %cst_109 : f32 to vector<16x128xf32>
    %272 = arith.addf %270, %271 : vector<16x128xf32>
    %273 = arith.mulf %272, %268 : vector<16x128xf32>
    %cst_110 = arith.constant 1.42141378 : f32
    %274 = vector.broadcast %cst_110 : f32 to vector<16x128xf32>
    %275 = arith.addf %273, %274 : vector<16x128xf32>
    %276 = arith.mulf %275, %268 : vector<16x128xf32>
    %cst_111 = arith.constant -0.284496725 : f32
    %277 = vector.broadcast %cst_111 : f32 to vector<16x128xf32>
    %278 = arith.addf %276, %277 : vector<16x128xf32>
    %279 = arith.mulf %278, %268 : vector<16x128xf32>
    %cst_112 = arith.constant 0.254829586 : f32
    %280 = vector.broadcast %cst_112 : f32 to vector<16x128xf32>
    %281 = arith.addf %279, %280 : vector<16x128xf32>
    %282 = arith.mulf %281, %268 : vector<16x128xf32>
    %cst_113 = arith.constant 0.000000e+00 : f32
    %283 = vector.broadcast %cst_113 : f32 to vector<16x128xf32>
    %284 = arith.subf %283, %263 : vector<16x128xf32>
    %285 = arith.mulf %284, %263 : vector<16x128xf32>
    %286 = math.exp %285 : vector<16x128xf32>
    %287 = arith.mulf %282, %286 : vector<16x128xf32>
    %cst_114 = arith.constant 1.000000e+00 : f32
    %288 = vector.broadcast %cst_114 : f32 to vector<16x128xf32>
    %289 = arith.subf %288, %287 : vector<16x128xf32>
    %290 = arith.mulf %262, %289 : vector<16x128xf32>
    %cst_115 = arith.constant 1.000000e+00 : f32
    %291 = vector.broadcast %cst_115 : f32 to vector<16x128xf32>
    %292 = arith.addf %291, %290 : vector<16x128xf32>
    %293 = arith.mulf %255, %292 : vector<16x128xf32>
    %c0_116 = arith.constant 0 : index
    %c0_117 = arith.constant 0 : index
    %294 = vector.load %arg14[%c0_116, %c0_117] : memref<16x128xf32, #tpu.memory_space<vmem>>, vector<16x128xf32>
    tpu.vector_store %arg14[%c0_116, %c0_117], %293 {strides = array<i32>} : memref<16x128xf32, #tpu.memory_space<vmem>>, vector<16x128xf32>,
    return
  }
  func.func @transform_0(%arg0: i32) -> (i32, i32) {
    %c0_i32 = arith.constant 0 : i32
    %c0_i32_0 = arith.constant 0 : i32
    return %arg0, %c0_i32 : i32, i32
  }
  func.func @transform_1(%arg0: i32) -> (i32, i32) {
    %c0_i32 = arith.constant 0 : i32
    %c0_i32_0 = arith.constant 0 : i32
    %c0_i32_1 = arith.constant 0 : i32
    return %c0_i32, %c0_i32_0 : i32, i32
  }
  func.func @transform_2(%arg0: i32) -> (i32, i32) {
    %c0_i32 = arith.constant 0 : i32
    %c0_i32_0 = arith.constant 0 : i32
    %c0_i32_1 = arith.constant 0 : i32
    return %c0_i32, %c0_i32_0 : i32, i32
  }
  func.func @transform_3(%arg0: i32) -> (i32, i32) {
    %c0_i32 = arith.constant 0 : i32
    %c0_i32_0 = arith.constant 0 : i32
    %c0_i32_1 = arith.constant 0 : i32
    return %c0_i32, %c0_i32_0 : i32, i32
  }
  func.func @transform_4(%arg0: i32) -> (i32, i32) {
    %c0_i32 = arith.constant 0 : i32
    %c0_i32_0 = arith.constant 0 : i32
    %c0_i32_1 = arith.constant 0 : i32
    return %c0_i32, %c0_i32_0 : i32, i32
  }
  func.func @transform_5(%arg0: i32) -> (i32, i32) {
    %c0_i32 = arith.constant 0 : i32
    %c0_i32_0 = arith.constant 0 : i32
    %c0_i32_1 = arith.constant 0 : i32
    return %c0_i32, %c0_i32_0 : i32, i32
  }
  func.func @transform_6(%arg0: i32) -> (i32, i32) {
    %c0_i32 = arith.constant 0 : i32
    %c0_i32_0 = arith.constant 0 : i32
    %c0_i32_1 = arith.constant 0 : i32
    return %c0_i32, %c0_i32_0 : i32, i32
  }
  func.func @transform_7(%arg0: i32) -> (i32, i32) {
    %c0_i32 = arith.constant 0 : i32
    %c0_i32_0 = arith.constant 0 : i32
    %c0_i32_1 = arith.constant 0 : i32
    return %c0_i32, %c0_i32_0 : i32, i32
  }
  func.func @transform_8(%arg0: i32) -> (i32, i32) {
    %c0_i32 = arith.constant 0 : i32
    %c0_i32_0 = arith.constant 0 : i32
    %c0_i32_1 = arith.constant 0 : i32
    return %c0_i32, %c0_i32_0 : i32, i32
  }
  func.func @transform_9(%arg0: i32) -> (i32, i32) {
    %c0_i32 = arith.constant 0 : i32
    %c0_i32_0 = arith.constant 0 : i32
    %c0_i32_1 = arith.constant 0 : i32
    return %c0_i32, %c0_i32_0 : i32, i32
  }
  func.func @transform_10(%arg0: i32) -> (i32, i32) {
    %c0_i32 = arith.constant 0 : i32
    %c0_i32_0 = arith.constant 0 : i32
    %c0_i32_1 = arith.constant 0 : i32
    return %c0_i32, %c0_i32_0 : i32, i32
  }
  func.func @transform_11(%arg0: i32) -> (i32, i32) {
    %c0_i32 = arith.constant 0 : i32
    %c0_i32_0 = arith.constant 0 : i32
    %c0_i32_1 = arith.constant 0 : i32
    return %c0_i32, %c0_i32_0 : i32, i32
  }
  func.func @transform_12(%arg0: i32) -> (i32, i32) {
    %c0_i32 = arith.constant 0 : i32
    %c0_i32_0 = arith.constant 0 : i32
    %c0_i32_1 = arith.constant 0 : i32
    return %c0_i32, %c0_i32_0 : i32, i32
  }
  func.func @transform_13(%arg0: i32) -> (i32, i32) {
    %c0_i32 = arith.constant 0 : i32
    %c0_i32_0 = arith.constant 0 : i32
    return %arg0, %c0_i32 : i32, i32
  }
}

module attributes {stable_mosaic.version = 11 : i64} {
  func.func @feature_perspective_kernel(%arg0: i32, %arg1: memref<16x32xf32, #tpu.memory_space<vmem>>, %arg2: memref<32x384xbf16, #tpu.memory_space<vmem>>, %arg3: memref<1x384xf32, #tpu.memory_space<vmem>>, %arg4: memref<32x384xbf16, #tpu.memory_space<vmem>>, %arg5: memref<1x384xf32, #tpu.memory_space<vmem>>, %arg6: memref<32x32xbf16, #tpu.memory_space<vmem>>, %arg7: memref<1x32xf32, #tpu.memory_space<vmem>>, %arg8: memref<1x32xf32, #tpu.memory_space<vmem>>, %arg9: memref<1x32xf32, #tpu.memory_space<vmem>>, %arg10: memref<32x128xbf16, #tpu.memory_space<vmem>>, %arg11: memref<1x128xf32, #tpu.memory_space<vmem>>, %arg12: memref<32x16xbf16, #tpu.memory_space<vmem>>, %arg13: memref<16x32xbf16, #tpu.memory_space<vmem>>, %arg14: memref<16x128xf32, #tpu.memory_space<vmem>>, %arg15: memref<48x32xbf16, #tpu.memory_space<vmem>>, %arg16: memref<144x32xbf16, #tpu.memory_space<vmem>>, %arg17: memref<144x16xbf16, #tpu.memory_space<vmem>>, %arg18: memref<48x32xbf16, #tpu.memory_space<vmem>>) attributes {dimension_semantics = [#tpu.dimension_semantics<parallel>], iteration_bounds = array<i64: 1>, scalar_prefetch = 0 : i64, scratch_operands = 4 : i64, tpu.core_type = #tpu.core_type<tc>, window_params = [{transform_indices = @transform_0, window_bounds = array<i64: 16, 32>}, {pipeline_mode = #tpu.pipeline_mode<synchronous>, transform_indices = @transform_1, window_bounds = array<i64: 32, 384>}, {pipeline_mode = #tpu.pipeline_mode<synchronous>, transform_indices = @transform_2, window_bounds = array<i64: 1, 384>}, {pipeline_mode = #tpu.pipeline_mode<synchronous>, transform_indices = @transform_3, window_bounds = array<i64: 32, 384>}, {pipeline_mode = #tpu.pipeline_mode<synchronous>, transform_indices = @transform_4, window_bounds = array<i64: 1, 384>}, {pipeline_mode = #tpu.pipeline_mode<synchronous>, transform_indices = @transform_5, window_bounds = array<i64: 32, 32>}, {pipeline_mode = #tpu.pipeline_mode<synchronous>, transform_indices = @transform_6, window_bounds = array<i64: 1, 32>}, {pipeline_mode = #tpu.pipeline_mode<synchronous>, transform_indices = @transform_7, window_bounds = array<i64: 1, 32>}, {pipeline_mode = #tpu.pipeline_mode<synchronous>, transform_indices = @transform_8, window_bounds = array<i64: 1, 32>}, {pipeline_mode = #tpu.pipeline_mode<synchronous>, transform_indices = @transform_9, window_bounds = array<i64: 32, 128>}, {pipeline_mode = #tpu.pipeline_mode<synchronous>, transform_indices = @transform_10, window_bounds = array<i64: 1, 128>}, {pipeline_mode = #tpu.pipeline_mode<synchronous>, transform_indices = @transform_11, window_bounds = array<i64: 32, 16>}, {pipeline_mode = #tpu.pipeline_mode<synchronous>, transform_indices = @transform_12, window_bounds = array<i64: 16, 32>}, {transform_indices = @transform_13, window_bounds = array<i64: 16, 128>}]} {
    %c0 = arith.constant 0 : index
    %c0_0 = arith.constant 0 : index
    %0 = vector.load %arg1[%c0, %c0_0] : memref<16x32xf32, #tpu.memory_space<vmem>>, vector<16x32xf32>
    %1 = arith.truncf %0 : vector<16x32xf32> to vector<16x32xbf16>
    %c0_1 = arith.constant 0 : index
    %c0_2 = arith.constant 0 : index
    %2 = vector.load %arg2[%c0_1, %c0_2] : memref<32x384xbf16, #tpu.memory_space<vmem>>, vector<32x384xbf16>
    %cst = arith.constant dense<0.000000e+00> : vector<16x384xf32>
    %3 = tpu.matmul %1, %2, %cst {dimension_numbers = #tpu.dot_dimension_numbers<[1], [0], [0], [1], [0, 0, 1, 1], [], []>} : vector<16x32xbf16>, vector<32x384xbf16>, vector<16x384xf32> -> vector<16x384xf32>
    %c0_3 = arith.constant 0 : index
    %c0_4 = arith.constant 0 : index
    %4 = vector.load %arg3[%c0_3, %c0_4] : memref<1x384xf32, #tpu.memory_space<vmem>>, vector<1x384xf32>
    %5 = vector.broadcast %4 : vector<1x384xf32> to vector<16x384xf32>
    %6 = arith.addf %3, %5 : vector<16x384xf32>
    %7 = vector.extract_strided_slice %6 {offsets = [0, 0], sizes = [16, 32], strides = [1, 1]} : vector<16x384xf32> to vector<16x32xf32>
    %cst_5 = arith.constant 5.000000e-01 : f32
    %8 = vector.broadcast %cst_5 : f32 to vector<16x32xf32>
    %9 = arith.mulf %8, %7 : vector<16x32xf32>
    %cst_6 = arith.constant 0.707106769 : f32
    %10 = vector.broadcast %cst_6 : f32 to vector<16x32xf32>
    %11 = arith.mulf %7, %10 : vector<16x32xf32>
    %cst_7 = arith.constant 0.000000e+00 : f32
    %12 = vector.broadcast %cst_7 : f32 to vector<16x32xf32>
    %13 = arith.cmpf olt, %11, %12 : vector<16x32xf32>
    %cst_8 = arith.constant -1.000000e+00 : f32
    %cst_9 = arith.constant 1.000000e+00 : f32
    %14 = vector.broadcast %cst_8 : f32 to vector<16x32xf32>
    %15 = vector.broadcast %cst_9 : f32 to vector<16x32xf32>
    %16 = arith.select %13, %14, %15 : vector<16x32xi1>, vector<16x32xf32>
    %17 = math.absf %11 : vector<16x32xf32>
    %cst_10 = arith.constant 0.327591091 : f32
    %18 = vector.broadcast %cst_10 : f32 to vector<16x32xf32>
    %19 = arith.mulf %18, %17 : vector<16x32xf32>
    %cst_11 = arith.constant 1.000000e+00 : f32
    %20 = vector.broadcast %cst_11 : f32 to vector<16x32xf32>
    %21 = arith.addf %20, %19 : vector<16x32xf32>
    %22 = tpu.reciprocal %21 {approx = true} : vector<16x32xf32> -> vector<16x32xf32>
    %cst_12 = arith.constant 1.06140542 : f32
    %23 = vector.broadcast %cst_12 : f32 to vector<16x32xf32>
    %24 = arith.mulf %23, %22 : vector<16x32xf32>
    %cst_13 = arith.constant -1.45315206 : f32
    %25 = vector.broadcast %cst_13 : f32 to vector<16x32xf32>
    %26 = arith.addf %24, %25 : vector<16x32xf32>
    %27 = arith.mulf %26, %22 : vector<16x32xf32>
    %cst_14 = arith.constant 1.42141378 : f32
    %28 = vector.broadcast %cst_14 : f32 to vector<16x32xf32>
    %29 = arith.addf %27, %28 : vector<16x32xf32>
    %30 = arith.mulf %29, %22 : vector<16x32xf32>
    %cst_15 = arith.constant -0.284496725 : f32
    %31 = vector.broadcast %cst_15 : f32 to vector<16x32xf32>
    %32 = arith.addf %30, %31 : vector<16x32xf32>
    %33 = arith.mulf %32, %22 : vector<16x32xf32>
    %cst_16 = arith.constant 0.254829586 : f32
    %34 = vector.broadcast %cst_16 : f32 to vector<16x32xf32>
    %35 = arith.addf %33, %34 : vector<16x32xf32>
    %36 = arith.mulf %35, %22 : vector<16x32xf32>
    %cst_17 = arith.constant 0.000000e+00 : f32
    %37 = vector.broadcast %cst_17 : f32 to vector<16x32xf32>
    %38 = arith.subf %37, %17 : vector<16x32xf32>
    %39 = arith.mulf %38, %17 : vector<16x32xf32>
    %40 = math.exp %39 : vector<16x32xf32>
    %41 = arith.mulf %36, %40 : vector<16x32xf32>
    %cst_18 = arith.constant 1.000000e+00 : f32
    %42 = vector.broadcast %cst_18 : f32 to vector<16x32xf32>
    %43 = arith.subf %42, %41 : vector<16x32xf32>
    %44 = arith.mulf %16, %43 : vector<16x32xf32>
    %cst_19 = arith.constant 1.000000e+00 : f32
    %45 = vector.broadcast %cst_19 : f32 to vector<16x32xf32>
    %46 = arith.addf %45, %44 : vector<16x32xf32>
    %47 = arith.mulf %9, %46 : vector<16x32xf32>
    %48 = arith.truncf %47 : vector<16x32xf32> to vector<16x32xbf16>
    %c0_20 = arith.constant 0 : index
    %c0_21 = arith.constant 0 : index
    %49 = vector.load %arg15[%c0_20, %c0_21] : memref<48x32xbf16, #tpu.memory_space<vmem>>, vector<16x32xbf16>
    tpu.vector_store %arg15[%c0_20, %c0_21], %48 {strides = array<i32>} : memref<48x32xbf16, #tpu.memory_space<vmem>>, vector<16x32xbf16>,
    %50 = vector.extract_strided_slice %6 {offsets = [0, 128], sizes = [16, 32], strides = [1, 1]} : vector<16x384xf32> to vector<16x32xf32>
    %cst_22 = arith.constant 0.000000e+00 : f32
    %51 = vector.broadcast %cst_22 : f32 to vector<16x32xf32>
    %52 = arith.subf %51, %50 : vector<16x32xf32>
    %53 = math.exp %52 : vector<16x32xf32>
    %cst_23 = arith.constant 1.000000e+00 : f32
    %54 = vector.broadcast %cst_23 : f32 to vector<16x32xf32>
    %55 = arith.addf %54, %53 : vector<16x32xf32>
    %56 = tpu.reciprocal %55 {approx = true} : vector<16x32xf32> -> vector<16x32xf32>
    %57 = arith.mulf %50, %56 : vector<16x32xf32>
    %58 = arith.truncf %57 : vector<16x32xf32> to vector<16x32xbf16>
    %c16 = arith.constant 16 : index
    %c0_24 = arith.constant 0 : index
    %59 = vector.load %arg15[%c16, %c0_24] : memref<48x32xbf16, #tpu.memory_space<vmem>>, vector<16x32xbf16>
    tpu.vector_store %arg15[%c16, %c0_24], %58 {strides = array<i32>} : memref<48x32xbf16, #tpu.memory_space<vmem>>, vector<16x32xbf16>,
    %60 = vector.extract_strided_slice %6 {offsets = [0, 256], sizes = [16, 32], strides = [1, 1]} : vector<16x384xf32> to vector<16x32xf32>
    %61 = math.tanh %60 : vector<16x32xf32>
    %62 = arith.truncf %61 : vector<16x32xf32> to vector<16x32xbf16>
    %c32 = arith.constant 32 : index
    %c0_25 = arith.constant 0 : index
    %63 = vector.load %arg15[%c32, %c0_25] : memref<48x32xbf16, #tpu.memory_space<vmem>>, vector<16x32xbf16>
    tpu.vector_store %arg15[%c32, %c0_25], %62 {strides = array<i32>} : memref<48x32xbf16, #tpu.memory_space<vmem>>, vector<16x32xbf16>,
    %c0_26 = arith.constant 0 : index
    %c0_27 = arith.constant 0 : index
    %64 = vector.load %arg15[%c0_26, %c0_27] : memref<48x32xbf16, #tpu.memory_space<vmem>>, vector<48x32xbf16>
    %c0_28 = arith.constant 0 : index
    %c0_29 = arith.constant 0 : index
    %65 = vector.load %arg4[%c0_28, %c0_29] : memref<32x384xbf16, #tpu.memory_space<vmem>>, vector<32x384xbf16>
    %cst_30 = arith.constant dense<0.000000e+00> : vector<48x384xf32>
    %66 = tpu.matmul %64, %65, %cst_30 {dimension_numbers = #tpu.dot_dimension_numbers<[1], [0], [0], [1], [0, 0, 1, 1], [], []>} : vector<48x32xbf16>, vector<32x384xbf16>, vector<48x384xf32> -> vector<48x384xf32>
    %c0_31 = arith.constant 0 : index
    %c0_32 = arith.constant 0 : index
    %67 = vector.load %arg5[%c0_31, %c0_32] : memref<1x384xf32, #tpu.memory_space<vmem>>, vector<1x384xf32>
    %68 = vector.broadcast %67 : vector<1x384xf32> to vector<48x384xf32>
    %69 = arith.addf %66, %68 : vector<48x384xf32>
    %70 = vector.extract_strided_slice %69 {offsets = [0, 0], sizes = [16, 32], strides = [1, 1]} : vector<48x384xf32> to vector<16x32xf32>
    %71 = vector.extract_strided_slice %69 {offsets = [16, 0], sizes = [16, 32], strides = [1, 1]} : vector<48x384xf32> to vector<16x32xf32>
    %72 = vector.extract_strided_slice %69 {offsets = [32, 0], sizes = [16, 32], strides = [1, 1]} : vector<48x384xf32> to vector<16x32xf32>
    %73 = vector.extract_strided_slice %69 {offsets = [0, 128], sizes = [16, 32], strides = [1, 1]} : vector<48x384xf32> to vector<16x32xf32>
    %74 = vector.extract_strided_slice %69 {offsets = [16, 128], sizes = [16, 32], strides = [1, 1]} : vector<48x384xf32> to vector<16x32xf32>
    %75 = vector.extract_strided_slice %69 {offsets = [32, 128], sizes = [16, 32], strides = [1, 1]} : vector<48x384xf32> to vector<16x32xf32>
    %76 = vector.extract_strided_slice %69 {offsets = [0, 256], sizes = [16, 32], strides = [1, 1]} : vector<48x384xf32> to vector<16x32xf32>
    %77 = vector.extract_strided_slice %69 {offsets = [16, 256], sizes = [16, 32], strides = [1, 1]} : vector<48x384xf32> to vector<16x32xf32>
    %78 = vector.extract_strided_slice %69 {offsets = [32, 256], sizes = [16, 32], strides = [1, 1]} : vector<48x384xf32> to vector<16x32xf32>
    %79 = arith.mulf %70, %73 : vector<16x32xf32>
    %80 = arith.truncf %79 : vector<16x32xf32> to vector<16x32xbf16>
    %c0_33 = arith.constant 0 : index
    %c0_34 = arith.constant 0 : index
    %81 = vector.load %arg16[%c0_33, %c0_34] : memref<144x32xbf16, #tpu.memory_space<vmem>>, vector<16x32xbf16>
    tpu.vector_store %arg16[%c0_33, %c0_34], %80 {strides = array<i32>} : memref<144x32xbf16, #tpu.memory_space<vmem>>, vector<16x32xbf16>,
    %82 = arith.mulf %70, %74 : vector<16x32xf32>
    %83 = arith.truncf %82 : vector<16x32xf32> to vector<16x32xbf16>
    %c16_35 = arith.constant 16 : index
    %c0_36 = arith.constant 0 : index
    %84 = vector.load %arg16[%c16_35, %c0_36] : memref<144x32xbf16, #tpu.memory_space<vmem>>, vector<16x32xbf16>
    tpu.vector_store %arg16[%c16_35, %c0_36], %83 {strides = array<i32>} : memref<144x32xbf16, #tpu.memory_space<vmem>>, vector<16x32xbf16>,
    %85 = arith.mulf %70, %75 : vector<16x32xf32>
    %86 = arith.truncf %85 : vector<16x32xf32> to vector<16x32xbf16>
    %c32_37 = arith.constant 32 : index
    %c0_38 = arith.constant 0 : index
    %87 = vector.load %arg16[%c32_37, %c0_38] : memref<144x32xbf16, #tpu.memory_space<vmem>>, vector<16x32xbf16>
    tpu.vector_store %arg16[%c32_37, %c0_38], %86 {strides = array<i32>} : memref<144x32xbf16, #tpu.memory_space<vmem>>, vector<16x32xbf16>,
    %88 = arith.mulf %71, %73 : vector<16x32xf32>
    %89 = arith.truncf %88 : vector<16x32xf32> to vector<16x32xbf16>
    %c48 = arith.constant 48 : index
    %c0_39 = arith.constant 0 : index
    %90 = vector.load %arg16[%c48, %c0_39] : memref<144x32xbf16, #tpu.memory_space<vmem>>, vector<16x32xbf16>
    tpu.vector_store %arg16[%c48, %c0_39], %89 {strides = array<i32>} : memref<144x32xbf16, #tpu.memory_space<vmem>>, vector<16x32xbf16>,
    %91 = arith.mulf %71, %74 : vector<16x32xf32>
    %92 = arith.truncf %91 : vector<16x32xf32> to vector<16x32xbf16>
    %c64 = arith.constant 64 : index
    %c0_40 = arith.constant 0 : index
    %93 = vector.load %arg16[%c64, %c0_40] : memref<144x32xbf16, #tpu.memory_space<vmem>>, vector<16x32xbf16>
    tpu.vector_store %arg16[%c64, %c0_40], %92 {strides = array<i32>} : memref<144x32xbf16, #tpu.memory_space<vmem>>, vector<16x32xbf16>,
    %94 = arith.mulf %71, %75 : vector<16x32xf32>
    %95 = arith.truncf %94 : vector<16x32xf32> to vector<16x32xbf16>
    %c80 = arith.constant 80 : index
    %c0_41 = arith.constant 0 : index
    %96 = vector.load %arg16[%c80, %c0_41] : memref<144x32xbf16, #tpu.memory_space<vmem>>, vector<16x32xbf16>
    tpu.vector_store %arg16[%c80, %c0_41], %95 {strides = array<i32>} : memref<144x32xbf16, #tpu.memory_space<vmem>>, vector<16x32xbf16>,
    %97 = arith.mulf %72, %73 : vector<16x32xf32>
    %98 = arith.truncf %97 : vector<16x32xf32> to vector<16x32xbf16>
    %c96 = arith.constant 96 : index
    %c0_42 = arith.constant 0 : index
    %99 = vector.load %arg16[%c96, %c0_42] : memref<144x32xbf16, #tpu.memory_space<vmem>>, vector<16x32xbf16>
    tpu.vector_store %arg16[%c96, %c0_42], %98 {strides = array<i32>} : memref<144x32xbf16, #tpu.memory_space<vmem>>, vector<16x32xbf16>,
    %100 = arith.mulf %72, %74 : vector<16x32xf32>
    %101 = arith.truncf %100 : vector<16x32xf32> to vector<16x32xbf16>
    %c112 = arith.constant 112 : index
    %c0_43 = arith.constant 0 : index
    %102 = vector.load %arg16[%c112, %c0_43] : memref<144x32xbf16, #tpu.memory_space<vmem>>, vector<16x32xbf16>
    tpu.vector_store %arg16[%c112, %c0_43], %101 {strides = array<i32>} : memref<144x32xbf16, #tpu.memory_space<vmem>>, vector<16x32xbf16>,
    %103 = arith.mulf %72, %75 : vector<16x32xf32>
    %104 = arith.truncf %103 : vector<16x32xf32> to vector<16x32xbf16>
    %c128 = arith.constant 128 : index
    %c0_44 = arith.constant 0 : index
    %105 = vector.load %arg16[%c128, %c0_44] : memref<144x32xbf16, #tpu.memory_space<vmem>>, vector<16x32xbf16>
    tpu.vector_store %arg16[%c128, %c0_44], %104 {strides = array<i32>} : memref<144x32xbf16, #tpu.memory_space<vmem>>, vector<16x32xbf16>,
    %c0_45 = arith.constant 0 : index
    %c0_46 = arith.constant 0 : index
    %106 = vector.load %arg16[%c0_45, %c0_46] : memref<144x32xbf16, #tpu.memory_space<vmem>>, vector<144x32xbf16>
    %c0_47 = arith.constant 0 : index
    %c0_48 = arith.constant 0 : index
    %107 = vector.load %arg12[%c0_47, %c0_48] : memref<32x16xbf16, #tpu.memory_space<vmem>>, vector<32x16xbf16>
    %cst_49 = arith.constant dense<0.000000e+00> : vector<144x16xf32>
    %108 = tpu.matmul %106, %107, %cst_49 {dimension_numbers = #tpu.dot_dimension_numbers<[1], [0], [0], [1], [0, 0, 1, 1], [], []>} : vector<144x32xbf16>, vector<32x16xbf16>, vector<144x16xf32> -> vector<144x16xf32>
    %109 = vector.extract_strided_slice %108 {offsets = [0, 0], sizes = [16, 16], strides = [1, 1]} : vector<144x16xf32> to vector<16x16xf32>
    %110 = vector.extract_strided_slice %108 {offsets = [16, 0], sizes = [16, 16], strides = [1, 1]} : vector<144x16xf32> to vector<16x16xf32>
    %111 = vector.extract_strided_slice %108 {offsets = [32, 0], sizes = [16, 16], strides = [1, 1]} : vector<144x16xf32> to vector<16x16xf32>
    %112 = arith.maximumf %109, %110 : vector<16x16xf32>
    %113 = arith.maximumf %112, %111 : vector<16x16xf32>
    %114 = arith.subf %109, %113 : vector<16x16xf32>
    %115 = math.exp %114 : vector<16x16xf32>
    %116 = arith.subf %110, %113 : vector<16x16xf32>
    %117 = math.exp %116 : vector<16x16xf32>
    %118 = arith.subf %111, %113 : vector<16x16xf32>
    %119 = math.exp %118 : vector<16x16xf32>
    %120 = arith.addf %115, %117 : vector<16x16xf32>
    %121 = arith.addf %120, %119 : vector<16x16xf32>
    %122 = tpu.reciprocal %121 {approx = true} : vector<16x16xf32> -> vector<16x16xf32>
    %123 = arith.mulf %115, %122 : vector<16x16xf32>
    %124 = arith.truncf %123 : vector<16x16xf32> to vector<16x16xbf16>
    %c0_50 = arith.constant 0 : index
    %c0_51 = arith.constant 0 : index
    %125 = vector.load %arg17[%c0_50, %c0_51] : memref<144x16xbf16, #tpu.memory_space<vmem>>, vector<16x16xbf16>
    tpu.vector_store %arg17[%c0_50, %c0_51], %124 {strides = array<i32>} : memref<144x16xbf16, #tpu.memory_space<vmem>>, vector<16x16xbf16>,
    %126 = arith.mulf %117, %122 : vector<16x16xf32>
    %127 = arith.truncf %126 : vector<16x16xf32> to vector<16x16xbf16>
    %c16_52 = arith.constant 16 : index
    %c0_53 = arith.constant 0 : index
    %128 = vector.load %arg17[%c16_52, %c0_53] : memref<144x16xbf16, #tpu.memory_space<vmem>>, vector<16x16xbf16>
    tpu.vector_store %arg17[%c16_52, %c0_53], %127 {strides = array<i32>} : memref<144x16xbf16, #tpu.memory_space<vmem>>, vector<16x16xbf16>,
    %129 = arith.mulf %119, %122 : vector<16x16xf32>
    %130 = arith.truncf %129 : vector<16x16xf32> to vector<16x16xbf16>
    %c32_54 = arith.constant 32 : index
    %c0_55 = arith.constant 0 : index
    %131 = vector.load %arg17[%c32_54, %c0_55] : memref<144x16xbf16, #tpu.memory_space<vmem>>, vector<16x16xbf16>
    tpu.vector_store %arg17[%c32_54, %c0_55], %130 {strides = array<i32>} : memref<144x16xbf16, #tpu.memory_space<vmem>>, vector<16x16xbf16>,
    %132 = vector.extract_strided_slice %108 {offsets = [48, 0], sizes = [16, 16], strides = [1, 1]} : vector<144x16xf32> to vector<16x16xf32>
    %133 = vector.extract_strided_slice %108 {offsets = [64, 0], sizes = [16, 16], strides = [1, 1]} : vector<144x16xf32> to vector<16x16xf32>
    %134 = vector.extract_strided_slice %108 {offsets = [80, 0], sizes = [16, 16], strides = [1, 1]} : vector<144x16xf32> to vector<16x16xf32>
    %135 = arith.maximumf %132, %133 : vector<16x16xf32>
    %136 = arith.maximumf %135, %134 : vector<16x16xf32>
    %137 = arith.subf %132, %136 : vector<16x16xf32>
    %138 = math.exp %137 : vector<16x16xf32>
    %139 = arith.subf %133, %136 : vector<16x16xf32>
    %140 = math.exp %139 : vector<16x16xf32>
    %141 = arith.subf %134, %136 : vector<16x16xf32>
    %142 = math.exp %141 : vector<16x16xf32>
    %143 = arith.addf %138, %140 : vector<16x16xf32>
    %144 = arith.addf %143, %142 : vector<16x16xf32>
    %145 = tpu.reciprocal %144 {approx = true} : vector<16x16xf32> -> vector<16x16xf32>
    %146 = arith.mulf %138, %145 : vector<16x16xf32>
    %147 = arith.truncf %146 : vector<16x16xf32> to vector<16x16xbf16>
    %c48_56 = arith.constant 48 : index
    %c0_57 = arith.constant 0 : index
    %148 = vector.load %arg17[%c48_56, %c0_57] : memref<144x16xbf16, #tpu.memory_space<vmem>>, vector<16x16xbf16>
    tpu.vector_store %arg17[%c48_56, %c0_57], %147 {strides = array<i32>} : memref<144x16xbf16, #tpu.memory_space<vmem>>, vector<16x16xbf16>,
    %149 = arith.mulf %140, %145 : vector<16x16xf32>
    %150 = arith.truncf %149 : vector<16x16xf32> to vector<16x16xbf16>
    %c64_58 = arith.constant 64 : index
    %c0_59 = arith.constant 0 : index
    %151 = vector.load %arg17[%c64_58, %c0_59] : memref<144x16xbf16, #tpu.memory_space<vmem>>, vector<16x16xbf16>
    tpu.vector_store %arg17[%c64_58, %c0_59], %150 {strides = array<i32>} : memref<144x16xbf16, #tpu.memory_space<vmem>>, vector<16x16xbf16>,
    %152 = arith.mulf %142, %145 : vector<16x16xf32>
    %153 = arith.truncf %152 : vector<16x16xf32> to vector<16x16xbf16>
    %c80_60 = arith.constant 80 : index
    %c0_61 = arith.constant 0 : index
    %154 = vector.load %arg17[%c80_60, %c0_61] : memref<144x16xbf16, #tpu.memory_space<vmem>>, vector<16x16xbf16>
    tpu.vector_store %arg17[%c80_60, %c0_61], %153 {strides = array<i32>} : memref<144x16xbf16, #tpu.memory_space<vmem>>, vector<16x16xbf16>,
    %155 = vector.extract_strided_slice %108 {offsets = [96, 0], sizes = [16, 16], strides = [1, 1]} : vector<144x16xf32> to vector<16x16xf32>
    %156 = vector.extract_strided_slice %108 {offsets = [112, 0], sizes = [16, 16], strides = [1, 1]} : vector<144x16xf32> to vector<16x16xf32>
    %157 = vector.extract_strided_slice %108 {offsets = [128, 0], sizes = [16, 16], strides = [1, 1]} : vector<144x16xf32> to vector<16x16xf32>
    %158 = arith.maximumf %155, %156 : vector<16x16xf32>
    %159 = arith.maximumf %158, %157 : vector<16x16xf32>
    %160 = arith.subf %155, %159 : vector<16x16xf32>
    %161 = math.exp %160 : vector<16x16xf32>
    %162 = arith.subf %156, %159 : vector<16x16xf32>
    %163 = math.exp %162 : vector<16x16xf32>
    %164 = arith.subf %157, %159 : vector<16x16xf32>
    %165 = math.exp %164 : vector<16x16xf32>
    %166 = arith.addf %161, %163 : vector<16x16xf32>
    %167 = arith.addf %166, %165 : vector<16x16xf32>
    %168 = tpu.reciprocal %167 {approx = true} : vector<16x16xf32> -> vector<16x16xf32>
    %169 = arith.mulf %161, %168 : vector<16x16xf32>
    %170 = arith.truncf %169 : vector<16x16xf32> to vector<16x16xbf16>
    %c96_62 = arith.constant 96 : index
    %c0_63 = arith.constant 0 : index
    %171 = vector.load %arg17[%c96_62, %c0_63] : memref<144x16xbf16, #tpu.memory_space<vmem>>, vector<16x16xbf16>
    tpu.vector_store %arg17[%c96_62, %c0_63], %170 {strides = array<i32>} : memref<144x16xbf16, #tpu.memory_space<vmem>>, vector<16x16xbf16>,
    %172 = arith.mulf %163, %168 : vector<16x16xf32>
    %173 = arith.truncf %172 : vector<16x16xf32> to vector<16x16xbf16>
    %c112_64 = arith.constant 112 : index
    %c0_65 = arith.constant 0 : index
    %174 = vector.load %arg17[%c112_64, %c0_65] : memref<144x16xbf16, #tpu.memory_space<vmem>>, vector<16x16xbf16>
    tpu.vector_store %arg17[%c112_64, %c0_65], %173 {strides = array<i32>} : memref<144x16xbf16, #tpu.memory_space<vmem>>, vector<16x16xbf16>,
    %175 = arith.mulf %165, %168 : vector<16x16xf32>
    %176 = arith.truncf %175 : vector<16x16xf32> to vector<16x16xbf16>
    %c128_66 = arith.constant 128 : index
    %c0_67 = arith.constant 0 : index
    %177 = vector.load %arg17[%c128_66, %c0_67] : memref<144x16xbf16, #tpu.memory_space<vmem>>, vector<16x16xbf16>
    tpu.vector_store %arg17[%c128_66, %c0_67], %176 {strides = array<i32>} : memref<144x16xbf16, #tpu.memory_space<vmem>>, vector<16x16xbf16>,
    %c0_68 = arith.constant 0 : index
    %c0_69 = arith.constant 0 : index
    %178 = vector.load %arg17[%c0_68, %c0_69] : memref<144x16xbf16, #tpu.memory_space<vmem>>, vector<144x16xbf16>
    %c0_70 = arith.constant 0 : index
    %c0_71 = arith.constant 0 : index
    %179 = vector.load %arg13[%c0_70, %c0_71] : memref<16x32xbf16, #tpu.memory_space<vmem>>, vector<16x32xbf16>
    %cst_72 = arith.constant dense<0.000000e+00> : vector<144x32xf32>
    %180 = tpu.matmul %178, %179, %cst_72 {dimension_numbers = #tpu.dot_dimension_numbers<[1], [0], [0], [1], [0, 0, 1, 1], [], []>} : vector<144x16xbf16>, vector<16x32xbf16>, vector<144x32xf32> -> vector<144x32xf32>
    %181 = vector.extract_strided_slice %180 {offsets = [0, 0], sizes = [16, 32], strides = [1, 1]} : vector<144x32xf32> to vector<16x32xf32>
    %182 = arith.mulf %181, %76 : vector<16x32xf32>
    %183 = vector.extract_strided_slice %180 {offsets = [16, 0], sizes = [16, 32], strides = [1, 1]} : vector<144x32xf32> to vector<16x32xf32>
    %184 = arith.mulf %183, %77 : vector<16x32xf32>
    %185 = arith.addf %182, %184 : vector<16x32xf32>
    %186 = vector.extract_strided_slice %180 {offsets = [32, 0], sizes = [16, 32], strides = [1, 1]} : vector<144x32xf32> to vector<16x32xf32>
    %187 = arith.mulf %186, %78 : vector<16x32xf32>
    %188 = arith.addf %185, %187 : vector<16x32xf32>
    %189 = arith.truncf %188 : vector<16x32xf32> to vector<16x32xbf16>
    %c0_73 = arith.constant 0 : index
    %c0_74 = arith.constant 0 : index
    %190 = vector.load %arg18[%c0_73, %c0_74] : memref<48x32xbf16, #tpu.memory_space<vmem>>, vector<16x32xbf16>
    tpu.vector_store %arg18[%c0_73, %c0_74], %189 {strides = array<i32>} : memref<48x32xbf16, #tpu.memory_space<vmem>>, vector<16x32xbf16>,
    %191 = vector.extract_strided_slice %180 {offsets = [48, 0], sizes = [16, 32], strides = [1, 1]} : vector<144x32xf32> to vector<16x32xf32>
    %192 = arith.mulf %191, %76 : vector<16x32xf32>
    %193 = vector.extract_strided_slice %180 {offsets = [64, 0], sizes = [16, 32], strides = [1, 1]} : vector<144x32xf32> to vector<16x32xf32>
    %194 = arith.mulf %193, %77 : vector<16x32xf32>
    %195 = arith.addf %192, %194 : vector<16x32xf32>
    %196 = vector.extract_strided_slice %180 {offsets = [80, 0], sizes = [16, 32], strides = [1, 1]} : vector<144x32xf32> to vector<16x32xf32>
    %197 = arith.mulf %196, %78 : vector<16x32xf32>
    %198 = arith.addf %195, %197 : vector<16x32xf32>
    %199 = arith.truncf %198 : vector<16x32xf32> to vector<16x32xbf16>
    %c16_75 = arith.constant 16 : index
    %c0_76 = arith.constant 0 : index
    %200 = vector.load %arg18[%c16_75, %c0_76] : memref<48x32xbf16, #tpu.memory_space<vmem>>, vector<16x32xbf16>
    tpu.vector_store %arg18[%c16_75, %c0_76], %199 {strides = array<i32>} : memref<48x32xbf16, #tpu.memory_space<vmem>>, vector<16x32xbf16>,
    %201 = vector.extract_strided_slice %180 {offsets = [96, 0], sizes = [16, 32], strides = [1, 1]} : vector<144x32xf32> to vector<16x32xf32>
    %202 = arith.mulf %201, %76 : vector<16x32xf32>
    %203 = vector.extract_strided_slice %180 {offsets = [112, 0], sizes = [16, 32], strides = [1, 1]} : vector<144x32xf32> to vector<16x32xf32>
    %204 = arith.mulf %203, %77 : vector<16x32xf32>
    %205 = arith.addf %202, %204 : vector<16x32xf32>
    %206 = vector.extract_strided_slice %180 {offsets = [128, 0], sizes = [16, 32], strides = [1, 1]} : vector<144x32xf32> to vector<16x32xf32>
    %207 = arith.mulf %206, %78 : vector<16x32xf32>
    %208 = arith.addf %205, %207 : vector<16x32xf32>
    %209 = arith.truncf %208 : vector<16x32xf32> to vector<16x32xbf16>
    %c32_77 = arith.constant 32 : index
    %c0_78 = arith.constant 0 : index
    %210 = vector.load %arg18[%c32_77, %c0_78] : memref<48x32xbf16, #tpu.memory_space<vmem>>, vector<16x32xbf16>
    tpu.vector_store %arg18[%c32_77, %c0_78], %209 {strides = array<i32>} : memref<48x32xbf16, #tpu.memory_space<vmem>>, vector<16x32xbf16>,
    %c0_79 = arith.constant 0 : index
    %c0_80 = arith.constant 0 : index
    %211 = vector.load %arg18[%c0_79, %c0_80] : memref<48x32xbf16, #tpu.memory_space<vmem>>, vector<48x32xbf16>
    %c0_81 = arith.constant 0 : index
    %c0_82 = arith.constant 0 : index
    %212 = vector.load %arg6[%c0_81, %c0_82] : memref<32x32xbf16, #tpu.memory_space<vmem>>, vector<32x32xbf16>
    %cst_83 = arith.constant dense<0.000000e+00> : vector<48x32xf32>
    %213 = tpu.matmul %211, %212, %cst_83 {dimension_numbers = #tpu.dot_dimension_numbers<[1], [0], [0], [1], [0, 0, 1, 1], [], []>} : vector<48x32xbf16>, vector<32x32xbf16>, vector<48x32xf32> -> vector<48x32xf32>
    %c0_84 = arith.constant 0 : index
    %c0_85 = arith.constant 0 : index
    %214 = vector.load %arg7[%c0_84, %c0_85] : memref<1x32xf32, #tpu.memory_space<vmem>>, vector<1x32xf32>
    %215 = vector.broadcast %214 : vector<1x32xf32> to vector<48x32xf32>
    %216 = arith.addf %213, %215 : vector<48x32xf32>
    %c0_86 = arith.constant 0 : index
    %c0_87 = arith.constant 0 : index
    %217 = vector.load %arg8[%c0_86, %c0_87] : memref<1x32xf32, #tpu.memory_space<vmem>>, vector<1x32xf32>
    %c0_88 = arith.constant 0 : index
    %c0_89 = arith.constant 0 : index
    %218 = vector.load %arg9[%c0_88, %c0_89] : memref<1x32xf32, #tpu.memory_space<vmem>>, vector<1x32xf32>
    %cst_90 = arith.constant dense<0.000000e+00> : vector<48xf32>
    %219 = vector.multi_reduction <add>, %216, %cst_90 [1] : vector<48x32xf32> to vector<48xf32>
    %220 = vector.shape_cast %219 : vector<48xf32> to vector<48x1xf32>
    %cst_91 = arith.constant 3.200000e+01 : f32
    %221 = vector.broadcast %cst_91 : f32 to vector<48x1xf32>
    %222 = arith.divf %220, %221 : vector<48x1xf32>
    %223 = vector.broadcast %222 : vector<48x1xf32> to vector<48x32xf32>
    %224 = arith.subf %216, %223 : vector<48x32xf32>
    %225 = arith.mulf %224, %224 : vector<48x32xf32>
    %cst_92 = arith.constant dense<0.000000e+00> : vector<48xf32>
    %226 = vector.multi_reduction <add>, %225, %cst_92 [1] : vector<48x32xf32> to vector<48xf32>
    %227 = vector.shape_cast %226 : vector<48xf32> to vector<48x1xf32>
    %cst_93 = arith.constant 3.200000e+01 : f32
    %228 = vector.broadcast %cst_93 : f32 to vector<48x1xf32>
    %229 = arith.divf %227, %228 : vector<48x1xf32>
    %230 = vector.broadcast %222 : vector<48x1xf32> to vector<48x32xf32>
    %231 = arith.subf %216, %230 : vector<48x32xf32>
    %cst_94 = arith.constant 9.99999974E-6 : f32
    %232 = vector.broadcast %cst_94 : f32 to vector<48x1xf32>
    %233 = arith.addf %229, %232 : vector<48x1xf32>
    %234 = math.rsqrt %233 : vector<48x1xf32>
    %235 = vector.broadcast %234 : vector<48x1xf32> to vector<48x32xf32>
    %236 = arith.mulf %231, %235 : vector<48x32xf32>
    %237 = vector.broadcast %217 : vector<1x32xf32> to vector<48x32xf32>
    %238 = arith.mulf %236, %237 : vector<48x32xf32>
    %239 = vector.broadcast %218 : vector<1x32xf32> to vector<48x32xf32>
    %240 = arith.addf %238, %239 : vector<48x32xf32>
    %241 = vector.extract_strided_slice %240 {offsets = [0, 0], sizes = [16, 32], strides = [1, 1]} : vector<48x32xf32> to vector<16x32xf32>
    %242 = vector.extract_strided_slice %240 {offsets = [16, 0], sizes = [16, 32], strides = [1, 1]} : vector<48x32xf32> to vector<16x32xf32>
    %243 = arith.addf %241, %242 : vector<16x32xf32>
    %244 = vector.extract_strided_slice %240 {offsets = [32, 0], sizes = [16, 32], strides = [1, 1]} : vector<48x32xf32> to vector<16x32xf32>
    %245 = arith.addf %243, %244 : vector<16x32xf32>
    %cst_95 = arith.constant 0.333333343 : f32
    %246 = vector.broadcast %cst_95 : f32 to vector<16x32xf32>
    %247 = arith.mulf %245, %246 : vector<16x32xf32>
    %248 = arith.truncf %247 : vector<16x32xf32> to vector<16x32xbf16>
    %c0_96 = arith.constant 0 : index
    %c0_97 = arith.constant 0 : index
    %249 = vector.load %arg10[%c0_96, %c0_97] : memref<32x128xbf16, #tpu.memory_space<vmem>>, vector<32x128xbf16>
    %cst_98 = arith.constant dense<0.000000e+00> : vector<16x128xf32>
    %250 = tpu.matmul %248, %249, %cst_98 {dimension_numbers = #tpu.dot_dimension_numbers<[1], [0], [0], [1], [0, 0, 1, 1], [], []>} : vector<16x32xbf16>, vector<32x128xbf16>, vector<16x128xf32> -> vector<16x128xf32>
    %c0_99 = arith.constant 0 : index
    %c0_100 = arith.constant 0 : index
    %251 = vector.load %arg11[%c0_99, %c0_100] : memref<1x128xf32, #tpu.memory_space<vmem>>, vector<1x128xf32>
    %252 = vector.broadcast %251 : vector<1x128xf32> to vector<16x128xf32>
    %253 = arith.addf %250, %252 : vector<16x128xf32>
    %cst_101 = arith.constant 5.000000e-01 : f32
    %254 = vector.broadcast %cst_101 : f32 to vector<16x128xf32>
    %255 = arith.mulf %254, %253 : vector<16x128xf32>
    %cst_102 = arith.constant 0.707106769 : f32
    %256 = vector.broadcast %cst_102 : f32 to vector<16x128xf32>
    %257 = arith.mulf %253, %256 : vector<16x128xf32>
    %cst_103 = arith.constant 0.000000e+00 : f32
    %258 = vector.broadcast %cst_103 : f32 to vector<16x128xf32>
    %259 = arith.cmpf olt, %257, %258 : vector<16x128xf32>
    %cst_104 = arith.constant -1.000000e+00 : f32
    %cst_105 = arith.constant 1.000000e+00 : f32
    %260 = vector.broadcast %cst_104 : f32 to vector<16x128xf32>
    %261 = vector.broadcast %cst_105 : f32 to vector<16x128xf32>
    %262 = arith.select %259, %260, %261 : vector<16x128xi1>, vector<16x128xf32>
    %263 = math.absf %257 : vector<16x128xf32>
    %cst_106 = arith.constant 0.327591091 : f32
    %264 = vector.broadcast %cst_106 : f32 to vector<16x128xf32>
    %265 = arith.mulf %264, %263 : vector<16x128xf32>
    %cst_107 = arith.constant 1.000000e+00 : f32
    %266 = vector.broadcast %cst_107 : f32 to vector<16x128xf32>
    %267 = arith.addf %266, %265 : vector<16x128xf32>
    %268 = tpu.reciprocal %267 {approx = true} : vector<16x128xf32> -> vector<16x128xf32>
    %cst_108 = arith.constant 1.06140542 : f32
    %269 = vector.broadcast %cst_108 : f32 to vector<16x128xf32>
    %270 = arith.mulf %269, %268 : vector<16x128xf32>
    %cst_109 = arith.constant -1.45315206 : f32
    %271 = vector.broadcast %cst_109 : f32 to vector<16x128xf32>
    %272 = arith.addf %270, %271 : vector<16x128xf32>
    %273 = arith.mulf %272, %268 : vector<16x128xf32>
    %cst_110 = arith.constant 1.42141378 : f32
    %274 = vector.broadcast %cst_110 : f32 to vector<16x128xf32>
    %275 = arith.addf %273, %274 : vector<16x128xf32>
    %276 = arith.mulf %275, %268 : vector<16x128xf32>
    %cst_111 = arith.constant -0.284496725 : f32
    %277 = vector.broadcast %cst_111 : f32 to vector<16x128xf32>
    %278 = arith.addf %276, %277 : vector<16x128xf32>
    %279 = arith.mulf %278, %268 : vector<16x128xf32>
    %cst_112 = arith.constant 0.254829586 : f32
    %280 = vector.broadcast %cst_112 : f32 to vector<16x128xf32>
    %281 = arith.addf %279, %280 : vector<16x128xf32>
    %282 = arith.mulf %281, %268 : vector<16x128xf32>
    %cst_113 = arith.constant 0.000000e+00 : f32
    %283 = vector.broadcast %cst_113 : f32 to vector<16x128xf32>
    %284 = arith.subf %283, %263 : vector<16x128xf32>
    %285 = arith.mulf %284, %263 : vector<16x128xf32>
    %286 = math.exp %285 : vector<16x128xf32>
    %287 = arith.mulf %282, %286 : vector<16x128xf32>
    %cst_114 = arith.constant 1.000000e+00 : f32
    %288 = vector.broadcast %cst_114 : f32 to vector<16x128xf32>
    %289 = arith.subf %288, %287 : vector<16x128xf32>
    %290 = arith.mulf %262, %289 : vector<16x128xf32>
    %cst_115 = arith.constant 1.000000e+00 : f32
    %291 = vector.broadcast %cst_115 : f32 to vector<16x128xf32>
    %292 = arith.addf %291, %290 : vector<16x128xf32>
    %293 = arith.mulf %255, %292 : vector<16x128xf32>
    %c0_116 = arith.constant 0 : index
    %c0_117 = arith.constant 0 : index
    %294 = vector.load %arg14[%c0_116, %c0_117] : memref<16x128xf32, #tpu.memory_space<vmem>>, vector<16x128xf32>
    tpu.vector_store %arg14[%c0_116, %c0_117], %293 {strides = array<i32>} : memref<16x128xf32, #tpu.memory_space<vmem>>, vector<16x128xf32>,
    return
  }
  func.func @transform_0(%arg0: i32) -> (i32, i32) {
    %c0_i32 = arith.constant 0 : i32
    %c0_i32_0 = arith.constant 0 : i32
    return %arg0, %c0_i32 : i32, i32
  }
  func.func @transform_1(%arg0: i32) -> (i32, i32) {
    %c0_i32 = arith.constant 0 : i32
    %c0_i32_0 = arith.constant 0 : i32
    %c0_i32_1 = arith.constant 0 : i32
    return %c0_i32, %c0_i32_0 : i32, i32
  }
  func.func @transform_2(%arg0: i32) -> (i32, i32) {
    %c0_i32 = arith.constant 0 : i32
    %c0_i32_0 = arith.constant 0 : i32
    %c0_i32_1 = arith.constant 0 : i32
    return %c0_i32, %c0_i32_0 : i32, i32
  }
  func.func @transform_3(%arg0: i32) -> (i32, i32) {
    %c0_i32 = arith.constant 0 : i32
    %c0_i32_0 = arith.constant 0 : i32
    %c0_i32_1 = arith.constant 0 : i32
    return %c0_i32, %c0_i32_0 : i32, i32
  }
  func.func @transform_4(%arg0: i32) -> (i32, i32) {
    %c0_i32 = arith.constant 0 : i32
    %c0_i32_0 = arith.constant 0 : i32
    %c0_i32_1 = arith.constant 0 : i32
    return %c0_i32, %c0_i32_0 : i32, i32
  }
  func.func @transform_5(%arg0: i32) -> (i32, i32) {
    %c0_i32 = arith.constant 0 : i32
    %c0_i32_0 = arith.constant 0 : i32
    %c0_i32_1 = arith.constant 0 : i32
    return %c0_i32, %c0_i32_0 : i32, i32
  }
  func.func @transform_6(%arg0: i32) -> (i32, i32) {
    %c0_i32 = arith.constant 0 : i32
    %c0_i32_0 = arith.constant 0 : i32
    %c0_i32_1 = arith.constant 0 : i32
    return %c0_i32, %c0_i32_0 : i32, i32
  }
  func.func @transform_7(%arg0: i32) -> (i32, i32) {
    %c0_i32 = arith.constant 0 : i32
    %c0_i32_0 = arith.constant 0 : i32
    %c0_i32_1 = arith.constant 0 : i32
    return %c0_i32, %c0_i32_0 : i32, i32
  }
  func.func @transform_8(%arg0: i32) -> (i32, i32) {
    %c0_i32 = arith.constant 0 : i32
    %c0_i32_0 = arith.constant 0 : i32
    %c0_i32_1 = arith.constant 0 : i32
    return %c0_i32, %c0_i32_0 : i32, i32
  }
  func.func @transform_9(%arg0: i32) -> (i32, i32) {
    %c0_i32 = arith.constant 0 : i32
    %c0_i32_0 = arith.constant 0 : i32
    %c0_i32_1 = arith.constant 0 : i32
    return %c0_i32, %c0_i32_0 : i32, i32
  }
  func.func @transform_10(%arg0: i32) -> (i32, i32) {
    %c0_i32 = arith.constant 0 : i32
    %c0_i32_0 = arith.constant 0 : i32
    %c0_i32_1 = arith.constant 0 : i32
    return %c0_i32, %c0_i32_0 : i32, i32
  }
  func.func @transform_11(%arg0: i32) -> (i32, i32) {
    %c0_i32 = arith.constant 0 : i32
    %c0_i32_0 = arith.constant 0 : i32
    %c0_i32_1 = arith.constant 0 : i32
    return %c0_i32, %c0_i32_0 : i32, i32
  }
  func.func @transform_12(%arg0: i32) -> (i32, i32) {
    %c0_i32 = arith.constant 0 : i32
    %c0_i32_0 = arith.constant 0 : i32
    %c0_i32_1 = arith.constant 0 : i32
    return %c0_i32, %c0_i32_0 : i32, i32
  }
  func.func @transform_13(%arg0: i32) -> (i32, i32) {
    %c0_i32 = arith.constant 0 : i32
    %c0_i32_0 = arith.constant 0 : i32
    return %arg0, %c0_i32 : i32, i32
  }
}

</mosaic_0001>

<llo_original>
// kernel: tpu_custom_call.1
$region0: #{tpu_custom_call.1}
  #allocation0 [shape = 'u32[]', space=smem, size = 0x4, offset = 0x4, fixed_abs, tag = 'smem constant byte address 0x4 - core index']
  #allocation1 [shape = 'u32[144,128]{1,0:T(1,128)}', space=vmem, size = 0x12000, scoped, tag = 'internal scratch']
  #allocation2 [shape = 'bf16[48,32]{1,0:T(8,128)(2,1)}', space=vmem, size = 0x3000, scoped, tag = 'scratch operand']
  #allocation3 [shape = 'bf16[144,32]{1,0:T(8,128)(2,1)}', space=vmem, size = 0x9000, scoped, tag = 'scratch operand']
  #allocation4 [shape = 'bf16[144,16]{1,0:T(8,128)(2,1)}', space=vmem, size = 0x9000, scoped, tag = 'scratch operand']
  #allocation5 [shape = 'bf16[48,32]{1,0:T(8,128)(2,1)}', space=vmem, size = 0x3000, scoped, tag = 'scratch operand']
  %s0 = inlined_call_operand.vmem [shape: f32[16,32], index: 0, kind: input, shape index: {}]
  %s1 = inlined_call_operand.hbm [shape: bf16[32,384], index: 1, kind: input, shape index: {}]
  %s2 = inlined_call_operand.hbm [shape: f32[1,384], index: 2, kind: input, shape index: {}]
  %s3 = inlined_call_operand.hbm [shape: bf16[32,384], index: 3, kind: input, shape index: {}]
  %s4 = inlined_call_operand.hbm [shape: f32[1,384], index: 4, kind: input, shape index: {}]
  %s5 = inlined_call_operand.vmem [shape: bf16[32,32], index: 5, kind: input, shape index: {}]
  %s6 = inlined_call_operand.hbm [shape: f32[1,32], index: 6, kind: input, shape index: {}]
  %s7 = inlined_call_operand.hbm [shape: f32[1,32], index: 7, kind: input, shape index: {}]
  %s8 = inlined_call_operand.hbm [shape: f32[1,32], index: 8, kind: input, shape index: {}]
  %s9 = inlined_call_operand.hbm [shape: bf16[32,128], index: 9, kind: input, shape index: {}]
  %s10 = inlined_call_operand.vmem [shape: f32[1,128], index: 10, kind: input, shape index: {}]
  %s11 = inlined_call_operand.vmem [shape: bf16[32,16], index: 11, kind: input, shape index: {}]
  %s12 = inlined_call_operand.vmem [shape: bf16[16,32], index: 12, kind: input, shape index: {}]
  %s13 = inlined_call_operand.hbm [shape: f32[16,128], index: 13, kind: output, shape index: {}]
  %s14 = sld [smem:[#allocation0]]
  $region94: #{tpu_custom_call.1} parent=0
    _
  %s16 = ssub.s32 1, %s14
  %s17 = scalar_select 0, %s16, %s14
  $region1: #{tpu_custom_call.1} parent=0
    #allocation6 [shape = 'u8[24576]{0}', space=vmem, size = 0x6000, scoped, tag = 'input window, operand 1, single buffered']
    #allocation7 [shape = 's32[1]{0}', space=sflag, size = 0x4, scoped, tag = 'scoped memory for tpu_custom_call.1']
    #allocation8 [shape = 's32[1]{0}', space=sflag, size = 0x4, scoped, tag = 'scoped memory for tpu_custom_call.1']
    #allocation9 [shape = 'u8[1536]{0}', space=vmem, size = 0x800, scoped, tag = 'input window, operand 2, single buffered']
    #allocation10 [shape = 's32[1]{0}', space=sflag, size = 0x4, scoped, tag = 'scoped memory for tpu_custom_call.1']
    #allocation11 [shape = 'u8[24576]{0}', space=vmem, size = 0x6000, scoped, tag = 'input window, operand 3, single buffered']
    #allocation12 [shape = 'u8[1536]{0}', space=vmem, size = 0x800, scoped, tag = 'input window, operand 4, single buffered']
    #allocation13 [shape = 's32[1]{0}', space=sflag, size = 0x4, scoped, tag = 'scoped memory for tpu_custom_call.1']
    #allocation14 [shape = 'u8[512]{0}', space=vmem, size = 0x400, scoped, tag = 'input window, operand 6, single buffered']
    #allocation15 [shape = 'u8[512]{0}', space=vmem, size = 0x400, scoped, tag = 'input window, operand 7, single buffered']
    #allocation16 [shape = 's32[1]{0}', space=sflag, size = 0x4, scoped, tag = 'scoped memory for tpu_custom_call.1']
    #allocation17 [shape = 'u8[512]{0}', space=vmem, size = 0x400, scoped, tag = 'input window, operand 8, single buffered']
    #allocation18 [shape = 'u8[8192]{0}', space=vmem, size = 0x2000, scoped, tag = 'input window, operand 9, single buffered']
    #allocation19 [shape = 's32[1]{0}', space=sflag, size = 0x4, scoped, tag = 'scoped memory for tpu_custom_call.1']
    #allocation20 [shape = 'u8[8192]{0}', space=vmem, size = 0x2000, scoped, tag = 'output window, operand 0, single buffered']
    %18 = vsyncpa [#allocation7], 0
    %19 = vsyncpa [#allocation10], 0
    %20 = vsyncpa [#allocation13], 0
    %21 = vsyncpa [#allocation16], 0
    %22 = vsyncpa [#allocation19], 0
    %23 = vsyncpa [#allocation8], 0
    // Predicated region
    $region2: #{tpu_custom_call.1} parent=1 // pred_check
      _
    $region3: #{tpu_custom_call.1} parent=1 // pred_check_branch
      %25 = sbr.rel (0) target = $region5
    $region4: #{tpu_custom_call.1} parent=1 // pred_region
      _
    $region5: #{tpu_custom_call.1} parent=1 // pred_fallthru
      _
    // Predicated region
    $region6: #{tpu_custom_call.1} parent=1 // pred_check
      _
    $region7: #{tpu_custom_call.1} parent=1 // pred_check_branch
      %27 = sbr.rel (0) target = $region9
    $region8: #{tpu_custom_call.1} parent=1 // pred_region
      %s29 = ssub.s32 768, 768
      %30 = vsyncadd [#allocation7], %s29
      %s31 = sshll.u32 [#allocation6], 4
      %s32 = int_to_ptr.vmem [resolvable:$true] %s31
      %37 = dma.hbm_to_vmem [thread:$0]  %s1, 768, %s32, [#allocation7], 192, 192, 12
    $region9: #{tpu_custom_call.1} parent=1 // pred_fallthru
      _
    // Predicated region
    $region10: #{tpu_custom_call.1} parent=1 // pred_check
      _
    $region11: #{tpu_custom_call.1} parent=1 // pred_check_branch
      %39 = sbr.rel (0) target = $region13
    $region12: #{tpu_custom_call.1} parent=1 // pred_region
      %s41 = ssub.s32 48, 48
      %42 = vsyncadd [#allocation10], %s41
      %s44 = sshll.u32 [#allocation9], 4
      %s45 = int_to_ptr.vmem [resolvable:$true] %s44
      %47 = dma.hbm_to_vmem [thread:$0]  %s2, 48, %s45, [#allocation10]
    $region13: #{tpu_custom_call.1} parent=1 // pred_fallthru
      _
    // Predicated region
    $region14: #{tpu_custom_call.1} parent=1 // pred_check
      _
    $region15: #{tpu_custom_call.1} parent=1 // pred_check_branch
      %49 = sbr.rel (0) target = $region17
    $region16: #{tpu_custom_call.1} parent=1 // pred_region
      %s51 = ssub.s32 768, 768
      %52 = vsyncadd [#allocation10], %s51
      %s53 = sshll.u32 [#allocation11], 4
      %s54 = int_to_ptr.vmem [resolvable:$true] %s53
      %59 = dma.hbm_to_vmem [thread:$0]  %s3, 768, %s54, [#allocation10], 192, 192, 12
    $region17: #{tpu_custom_call.1} parent=1 // pred_fallthru
      _
    // Predicated region
    $region18: #{tpu_custom_call.1} parent=1 // pred_check
      _
    $region19: #{tpu_custom_call.1} parent=1 // pred_check_branch
      %61 = sbr.rel (0) target = $region21
    $region20: #{tpu_custom_call.1} parent=1 // pred_region
      %s63 = ssub.s32 48, 48
      %64 = vsyncadd [#allocation13], %s63
      %s66 = sshll.u32 [#allocation12], 4
      %s67 = int_to_ptr.vmem [resolvable:$true] %s66
      %69 = dma.hbm_to_vmem [thread:$0]  %s4, 48, %s67, [#allocation13]
    $region21: #{tpu_custom_call.1} parent=1 // pred_fallthru
      _
    // Predicated region
    $region22: #{tpu_custom_call.1} parent=1 // pred_check
      _
    $region23: #{tpu_custom_call.1} parent=1 // pred_check_branch
      %71 = sbr.rel (0) target = $region25
    $region24: #{tpu_custom_call.1} parent=1 // pred_region
      _
    $region25: #{tpu_custom_call.1} parent=1 // pred_fallthru
      _
    // Predicated region
    $region26: #{tpu_custom_call.1} parent=1 // pred_check
      _
    $region27: #{tpu_custom_call.1} parent=1 // pred_check_branch
      %73 = sbr.rel (0) target = $region29
    $region28: #{tpu_custom_call.1} parent=1 // pred_region
      %s75 = ssub.s32 16, 16
      %76 = vsyncadd [#allocation13], %s75
      %s78 = sshll.u32 [#allocation14], 4
      %s79 = int_to_ptr.vmem [resolvable:$true] %s78
      %81 = dma.hbm_to_vmem [thread:$0]  %s6, 16, %s79, [#allocation13]
    $region29: #{tpu_custom_call.1} parent=1 // pred_fallthru
      _
    // Predicated region
    $region30: #{tpu_custom_call.1} parent=1 // pred_check
      _
    $region31: #{tpu_custom_call.1} parent=1 // pred_check_branch
      %83 = sbr.rel (0) target = $region33
    $region32: #{tpu_custom_call.1} parent=1 // pred_region
      %s85 = ssub.s32 16, 16
      %86 = vsyncadd [#allocation16], %s85
      %s88 = sshll.u32 [#allocation15], 4
      %s89 = int_to_ptr.vmem [resolvable:$true] %s88
      %91 = dma.hbm_to_vmem [thread:$0]  %s7, 16, %s89, [#allocation16]
    $region33: #{tpu_custom_call.1} parent=1 // pred_fallthru
      _
    // Predicated region
    $region34: #{tpu_custom_call.1} parent=1 // pred_check
      _
    $region35: #{tpu_custom_call.1} parent=1 // pred_check_branch
      %93 = sbr.rel (0) target = $region37
    $region36: #{tpu_custom_call.1} parent=1 // pred_region
      %s95 = ssub.s32 16, 16
      %96 = vsyncadd [#allocation16], %s95
      %s98 = sshll.u32 [#allocation17], 4
      %s99 = int_to_ptr.vmem [resolvable:$true] %s98
      %101 = dma.hbm_to_vmem [thread:$0]  %s8, 16, %s99, [#allocation16]
    $region37: #{tpu_custom_call.1} parent=1 // pred_fallthru
      _
    // Predicated region
    $region38: #{tpu_custom_call.1} parent=1 // pred_check
      _
    $region39: #{tpu_custom_call.1} parent=1 // pred_check_branch
      %103 = sbr.rel (0) target = $region41
    $region40: #{tpu_custom_call.1} parent=1 // pred_region
      %s105 = ssub.s32 256, 256
      %106 = vsyncadd [#allocation19], %s105
      %s107 = sshll.u32 [#allocation18], 4
      %s108 = int_to_ptr.vmem [resolvable:$true] %s107
      %113 = dma.hbm_to_vmem [thread:$0]  %s9, 256, %s108, [#allocation19], 64, 64, 4
    $region41: #{tpu_custom_call.1} parent=1 // pred_fallthru
      _
    // Predicated region
    $region42: #{tpu_custom_call.1} parent=1 // pred_check
      _
    $region43: #{tpu_custom_call.1} parent=1 // pred_check_branch
      %115 = sbr.rel (0) target = $region45
    $region44: #{tpu_custom_call.1} parent=1 // pred_region
      _
    $region45: #{tpu_custom_call.1} parent=1 // pred_fallthru
      _
    // Predicated region
    $region46: #{tpu_custom_call.1} parent=1 // pred_check
      _
    $region47: #{tpu_custom_call.1} parent=1 // pred_check_branch
      %117 = sbr.rel (0) target = $region49
    $region48: #{tpu_custom_call.1} parent=1 // pred_region
      _
    $region49: #{tpu_custom_call.1} parent=1 // pred_fallthru
      _
    // Predicated region
    $region50: #{tpu_custom_call.1} parent=1 // pred_check
      _
    $region51: #{tpu_custom_call.1} parent=1 // pred_check_branch
      %119 = sbr.rel (0) target = $region53
    $region52: #{tpu_custom_call.1} parent=1 // pred_region
      _
    $region53: #{tpu_custom_call.1} parent=1 // pred_fallthru
      _
    // Predicated region
    $region54: #{tpu_custom_call.1} parent=1 // pred_check
      _
    $region55: #{tpu_custom_call.1} parent=1 // pred_check_branch
      %121 = sbr.rel (0) target = $region57
    $region56: #{tpu_custom_call.1} parent=1 // pred_region
      %122 = dma.done [#allocation7], 768
    $region57: #{tpu_custom_call.1} parent=1 // pred_fallthru
      _
    // Predicated region
    $region58: #{tpu_custom_call.1} parent=1 // pred_check
      _
    $region59: #{tpu_custom_call.1} parent=1 // pred_check_branch
      %124 = sbr.rel (0) target = $region61
    $region60: #{tpu_custom_call.1} parent=1 // pred_region
      %125 = dma.done [#allocation10], 48
    $region61: #{tpu_custom_call.1} parent=1 // pred_fallthru
      _
    // Predicated region
    $region62: #{tpu_custom_call.1} parent=1 // pred_check
      _
    $region63: #{tpu_custom_call.1} parent=1 // pred_check_branch
      %127 = sbr.rel (0) target = $region65
    $region64: #{tpu_custom_call.1} parent=1 // pred_region
      %128 = dma.done [#allocation10], 768
    $region65: #{tpu_custom_call.1} parent=1 // pred_fallthru
      _
    // Predicated region
    $region66: #{tpu_custom_call.1} parent=1 // pred_check
      _
    $region67: #{tpu_custom_call.1} parent=1 // pred_check_branch
      %130 = sbr.rel (0) target = $region69
    $region68: #{tpu_custom_call.1} parent=1 // pred_region
      %131 = dma.done [#allocation13], 48
    $region69: #{tpu_custom_call.1} parent=1 // pred_fallthru
      _
    // Predicated region
    $region70: #{tpu_custom_call.1} parent=1 // pred_check
      _
    $region71: #{tpu_custom_call.1} parent=1 // pred_check_branch
      %133 = sbr.rel (0) target = $region73
    $region72: #{tpu_custom_call.1} parent=1 // pred_region
      %134 = dma.done [#allocation13], 16
    $region73: #{tpu_custom_call.1} parent=1 // pred_fallthru
      _
    // Predicated region
    $region74: #{tpu_custom_call.1} parent=1 // pred_check
      _
    $region75: #{tpu_custom_call.1} parent=1 // pred_check_branch
      %136 = sbr.rel (0) target = $region77
    $region76: #{tpu_custom_call.1} parent=1 // pred_region
      %137 = dma.done [#allocation16], 16
    $region77: #{tpu_custom_call.1} parent=1 // pred_fallthru
      _
    // Predicated region
    $region78: #{tpu_custom_call.1} parent=1 // pred_check
      _
    $region79: #{tpu_custom_call.1} parent=1 // pred_check_branch
      %139 = sbr.rel (0) target = $region81
    $region80: #{tpu_custom_call.1} parent=1 // pred_region
      %140 = dma.done [#allocation16], 16
    $region81: #{tpu_custom_call.1} parent=1 // pred_fallthru
      _
    // Predicated region
    $region82: #{tpu_custom_call.1} parent=1 // pred_check
      _
    $region83: #{tpu_custom_call.1} parent=1 // pred_check_branch
      %142 = sbr.rel (0) target = $region85
    $region84: #{tpu_custom_call.1} parent=1 // pred_region
      %143 = dma.done [#allocation19], 256
    $region85: #{tpu_custom_call.1} parent=1 // pred_fallthru
      _
    %v145 = vld [vmem:[%s0] sm:$0xff]
    %v146 = vld [vmem:[%s0 + $0x8] sm:$0xff]
    %v147 = vpack.c.bf16 %v146, %v145
    %v148 = vld [vmem:[#allocation6] sm:$0xff]
    %v149 = vld [vmem:[#allocation6 + $0x8] sm:$0xf]
    %v150 = vld [vmem:[#allocation6 + $0xc] sm:$0xff]
    %v151 = vld [vmem:[#allocation6 + $0x14] sm:$0xf]
    %v152 = vld [vmem:[#allocation6 + $0x18] sm:$0xff]
    %v153 = vld [vmem:[#allocation6 + $0x20] sm:$0xf]
    %v154 = vld [vmem:[#allocation6 + $0x24] sm:$0xff]
    %v155 = vld [vmem:[#allocation6 + $0x2c] sm:$0xf]
    %v156 = vld [vmem:[#allocation9] sm:$0x7]
    %v158 = vlaneseq
    %v159 = vshrl.u32 %v158, 7
    %v160 = vsub.s32 0, %v159
    %v161 = vrot.slane %v156, %v160
    %v162 = vlaneseq
    %v163 = vshrl.u32 %v162, 7
    %v164 = vsub.s32 1, %v163
    %v165 = vrot.slane %v156, %v164
    %v166 = vlaneseq
    %v167 = vshrl.u32 %v166, 7
    %v168 = vsub.s32 2, %v167
    %v169 = vrot.slane %v156, %v168
    %v181 = vunpack.c.l.b16 %v148
    %v182 = vunpack.c.h.b16 %v148
    %v183 = vunpack.c.l.b16 %v149
    %v184 = vunpack.c.l.b16 %v150
    %v185 = vunpack.c.h.b16 %v150
    %v186 = vunpack.c.l.b16 %v151
    %v187 = vunpack.c.l.b16 %v152
    %v188 = vunpack.c.h.b16 %v152
    %v189 = vunpack.c.l.b16 %v153
    %v190 = vunpack.c.l.b16 %v154
    %v191 = vunpack.c.h.b16 %v154
    %v192 = vunpack.c.l.b16 %v155
    %v193 = vpack.c.b16 %v184, %v181
    %v194 = vpack.c.b16 %v185, %v182
    %v195 = vpack.c.b16 %v186, %v183
    %v196 = vpack.c.b16 %v190, %v187
    %v197 = vpack.c.b16 %v191, %v188
    %v198 = vpack.c.b16 %v192, %v189
    %vm205 = vcmask 261120
    %v207 = vsel %vm205, %v147, 0
    %209 = vmatprep.subr.bf16.mxu0 0
    %210 = vmatpush1.bf16.msra.mxu0 0
    %211 = vmatprep.subr.bf16.mxu0 0
    %212 = vmatpush1.bf16.msra.mxu0 0
    %213 = vmatprep.subr.bf16.mxu0 0
    %214 = vmatpush1.bf16.msra.mxu0 0
    %215 = vmatprep.subr.bf16.mxu0 0
    %216 = vmatpush1.bf16.msra.mxu0 0
    %217 = vmatprep.subr.bf16.mxu0 0
    %218 = vmatpush1.bf16.msra.mxu0 0
    %219 = vmatprep.subr.bf16.mxu0 0
    %220 = vmatpush1.bf16.msra.mxu0 0
    %221 = vmatprep.subr.bf16.mxu0 %v197
    %222 = vmatpush1.bf16.msra.mxu0 %v196
    %223 = vmatprep.subr.bf16.mxu0 %v194
    %224 = vmatpush1.bf16.msra.mxu0 %v193
    %225 = vmatprep.subr.bf16.mxu0 0
    %226 = vmatpush2.bf16.msra.mxu0 0
    %227 = vmatprep.subr.bf16.mxu0 0
    %228 = vmatpush2.bf16.msra.mxu0 0
    %229 = vmatprep.subr.bf16.mxu0 0
    %230 = vmatpush2.bf16.msra.mxu0 0
    %231 = vmatprep.subr.bf16.mxu0 0
    %232 = vmatpush2.bf16.msra.mxu0 0
    %233 = vmatprep.subr.bf16.mxu0 0
    %234 = vmatpush2.bf16.msra.mxu0 0
    %235 = vmatprep.subr.bf16.mxu0 0
    %236 = vmatpush2.bf16.msra.mxu0 0
    %237 = vmatprep.subr.bf16.mxu0 0
    %238 = vmatpush2.bf16.msra.mxu0 0
    %239 = vmatprep.subr.bf16.mxu0 0
    %240 = vmatpush2.bf16.msra.mxu0 0
    %241 = vmatprep.mubr.bf16.mxu0 0
    %242 = vmatmul.mubr.bf16.gmra.mxu0 %v207
    %v243 = vpop.f32.mrf.mxu0
    %v244 = vadd.f32 %v161, %v243
    %v245 = vpop.f32.mrf.mxu0
    %v246 = vadd.f32 %v165, %v245
    %v247 = vpop.f32.mrf.mxu0
    %v248 = vadd.f32 %v161, %v247
    %v249 = vpop.f32.mrf.mxu0
    %v250 = vadd.f32 %v165, %v249
    %251 = vdwg.mxu0
    %252 = vmatprep.subr.bf16.mxu0 0
    %253 = vmatpush1.bf16.msra.mxu0 0
    %254 = vmatprep.subr.bf16.mxu0 0
    %255 = vmatpush1.bf16.msra.mxu0 0
    %256 = vmatprep.subr.bf16.mxu0 0
    %257 = vmatpush1.bf16.msra.mxu0 0
    %258 = vmatprep.subr.bf16.mxu0 0
    %259 = vmatpush1.bf16.msra.mxu0 0
    %260 = vmatprep.subr.bf16.mxu0 0
    %261 = vmatpush1.bf16.msra.mxu0 0
    %262 = vmatprep.subr.bf16.mxu0 0
    %263 = vmatpush1.bf16.msra.mxu0 0
    %264 = vmatprep.subr.bf16.mxu0 0
    %265 = vmatpush1.bf16.msra.mxu0 %v198
    %266 = vmatprep.subr.bf16.mxu0 0
    %267 = vmatpush1.bf16.msra.mxu0 %v195
    %268 = vmatprep.subr.bf16.mxu0 0
    %269 = vmatpush2.bf16.msra.mxu0 0
    %270 = vmatprep.subr.bf16.mxu0 0
    %271 = vmatpush2.bf16.msra.mxu0 0
    %272 = vmatprep.subr.bf16.mxu0 0
    %273 = vmatpush2.bf16.msra.mxu0 0
    %274 = vmatprep.subr.bf16.mxu0 0
    %275 = vmatpush2.bf16.msra.mxu0 0
    %276 = vmatprep.subr.bf16.mxu0 0
    %277 = vmatpush2.bf16.msra.mxu0 0
    %278 = vmatprep.subr.bf16.mxu0 0
    %279 = vmatpush2.bf16.msra.mxu0 0
    %280 = vmatprep.subr.bf16.mxu0 0
    %281 = vmatpush2.bf16.msra.mxu0 0
    %282 = vmatprep.subr.bf16.mxu0 0
    %283 = vmatpush2.bf16.msra.mxu0 0
    %284 = vmatprep.mubr.bf16.mxu0 0
    %285 = vmatmul.mubr.bf16.gmra.mxu0 %v207
    %v286 = vpop.f32.mrf.mxu0
    %v287 = vadd.f32 %v169, %v286
    %v288 = vpop.f32.mrf.mxu0
    %v289 = vpop.f32.mrf.mxu0
    %v290 = vadd.f32 %v169, %v289
    %v291 = vpop.f32.mrf.mxu0
    %292 = vdwg.mxu0
    %v293 = vmul.f32 %v244, 0.5
    %v294 = vmul.f32 %v248, 0.5
    %v295 = vmul.f32 %v244, 0.70710677
    %v296 = vmul.f32 %v248, 0.70710677
    %vm297 = vcmp.lt.f32.partialorder %v295, 0.0
    %vm298 = vcmp.lt.f32.partialorder %v296, 0.0
    %v299 = vsel %vm297, -1.0, 1.0
    %v300 = vsel %vm298, -1.0, 1.0
    %v301 = vand.u32 2147483647, %v295
    %v302 = vand.u32 2147483647, %v296
    %v303 = vmul.f32 %v301, 0.3275911
    %v304 = vmul.f32 %v302, 0.3275911
    %v305 = vadd.f32 %v303, 1.0
    %v306 = vadd.f32 %v304, 1.0
    %v307 = vrcp.pop %v305
    %v308 = vrcp.pop %v306
    %v309 = vmul.f32 %v307, 1.0614054
    %v310 = vmul.f32 %v308, 1.0614054
    %v311 = vadd.f32 %v309, -1.4531521
    %v312 = vadd.f32 %v310, -1.4531521
    %v313 = vmul.f32 %v311, %v307
    %v314 = vmul.f32 %v312, %v308
    %v315 = vadd.f32 %v313, 1.4214138
    %v316 = vadd.f32 %v314, 1.4214138
    %v317 = vmul.f32 %v315, %v307
    %v318 = vmul.f32 %v316, %v308
    %v319 = vadd.f32 %v317, -0.28449672
    %v320 = vadd.f32 %v318, -0.28449672
    %v321 = vmul.f32 %v319, %v307
    %v322 = vmul.f32 %v320, %v308
    %v323 = vadd.f32 %v321, 0.2548296
    %v324 = vadd.f32 %v322, 0.2548296
    %v325 = vmul.f32 %v323, %v307
    %v326 = vmul.f32 %v324, %v308
    %v327 = vsub.f32 0.0, %v301
    %v328 = vsub.f32 0.0, %v302
    %v329 = vmul.f32 %v327, %v301
    %v330 = vmul.f32 %v328, %v302
    %v331 = vmul.f32 %v329, 1.442695
    %v332 = vpow.pop %v331
    %v333 = vmul.f32 %v330, 1.442695
    %v334 = vpow.pop %v333
    %v335 = vmul.f32 %v325, %v332
    %v336 = vmul.f32 %v326, %v334
    %v337 = vsub.f32 1.0, %v335
    %v338 = vsub.f32 1.0, %v336
    %v339 = vmul.f32 %v299, %v337
    %v340 = vmul.f32 %v300, %v338
    %v341 = vadd.f32 %v339, 1.0
    %v342 = vadd.f32 %v340, 1.0
    %v343 = vmul.f32 %v293, %v341
    %v344 = vmul.f32 %v294, %v342
    %v345 = vpack.c.bf16 %v344, %v343
    %v347 = vunpack.c.l.b16 %v345
    %v348 = vunpack.c.h.b16 %v345
    %v349 = vpack.c.b16 %v347, %v347
    %v350 = vpack.c.b16 %v348, %v348
    %vm353 = vcmask 257024
    %354 = vst.msk [vmem:[#allocation2] sm:$0xf] %vm353, %v349
    %355 = vst.msk [vmem:[#allocation2 + $0x4] sm:$0xf] %vm353, %v350
    %v356 = vsub.f32 0.0, %v246
    %v357 = vsub.f32 0.0, %v250
    %v358 = vmul.f32 %v356, 1.442695
    %v359 = vpow.pop %v358
    %v360 = vmul.f32 %v357, 1.442695
    %v361 = vpow.pop %v360
    %v362 = vadd.f32 %v359, 1.0
    %v363 = vadd.f32 %v361, 1.0
    %v364 = vrcp.pop %v362
    %v365 = vrcp.pop %v363
    %v366 = vmul.f32 %v246, %v364
    %v367 = vmul.f32 %v250, %v365
    %v368 = vpack.c.bf16 %v367, %v366
    %v370 = vunpack.c.l.b16 %v368
    %v371 = vunpack.c.h.b16 %v368
    %v372 = vpack.c.b16 %v370, %v370
    %v373 = vpack.c.b16 %v371, %v371
    %376 = vst.msk [vmem:[#allocation2 + $0x8] sm:$0xf] %vm353, %v372
    %377 = vst.msk [vmem:[#allocation2 + $0xc] sm:$0xf] %vm353, %v373
    %v378 = vtanh.pop %v287
    %v379 = vtanh.pop %v290
    %v380 = vpack.c.bf16 %v379, %v378
    %v382 = vunpack.c.l.b16 %v380
    %v383 = vunpack.c.h.b16 %v380
    %v384 = vpack.c.b16 %v382, %v382
    %v385 = vpack.c.b16 %v383, %v383
    %388 = vst.msk [vmem:[#allocation2 + $0x10] sm:$0xf] %vm353, %v384
    %389 = vst.msk [vmem:[#allocation2 + $0x14] sm:$0xf] %vm353, %v385
    %v390 = vld [vmem:[#allocation2] sm:$0xf]
    %v391 = vld [vmem:[#allocation2 + $0x4] sm:$0xf]
    %v392 = vld [vmem:[#allocation2 + $0x8] sm:$0xf]
    %v393 = vld [vmem:[#allocation2 + $0xc] sm:$0xf]
    %v394 = vld [vmem:[#allocation2 + $0x10] sm:$0xf]
    %v395 = vld [vmem:[#allocation2 + $0x14] sm:$0xf]
    %v396 = vld [vmem:[#allocation11] sm:$0xff]
    %v397 = vld [vmem:[#allocation11 + $0x8] sm:$0xf]
    %v398 = vld [vmem:[#allocation11 + $0xc] sm:$0xff]
    %v399 = vld [vmem:[#allocation11 + $0x14] sm:$0xf]
    %v400 = vld [vmem:[#allocation11 + $0x18] sm:$0xff]
    %v401 = vld [vmem:[#allocation11 + $0x20] sm:$0xf]
    %v402 = vld [vmem:[#allocation11 + $0x24] sm:$0xff]
    %v403 = vld [vmem:[#allocation11 + $0x2c] sm:$0xf]
    %v404 = vld [vmem:[#allocation12] sm:$0x7]
    %v406 = vlaneseq
    %v407 = vshrl.u32 %v406, 7
    %v408 = vsub.s32 0, %v407
    %v409 = vrot.slane %v404, %v408
    %v410 = vlaneseq
    %v411 = vshrl.u32 %v410, 7
    %v412 = vsub.s32 1, %v411
    %v413 = vrot.slane %v404, %v412
    %v414 = vlaneseq
    %v415 = vshrl.u32 %v414, 7
    %v416 = vsub.s32 2, %v415
    %v417 = vrot.slane %v404, %v416
    %v427 = vunpack.c.l.b16 %v390
    %v428 = vunpack.c.l.b16 %v391
    %v429 = vunpack.c.l.b16 %v392
    %v430 = vunpack.c.l.b16 %v393
    %v431 = vunpack.c.l.b16 %v394
    %v432 = vunpack.c.l.b16 %v395
    %v433 = vpack.c.b16 %v428, %v427
    %v434 = vpack.c.b16 %v430, %v429
    %v435 = vpack.c.b16 %v432, %v431
    %v444 = vunpack.c.l.b16 %v396
    %v445 = vunpack.c.h.b16 %v396
    %v446 = vunpack.c.l.b16 %v397
    %v447 = vunpack.c.l.b16 %v398
    %v448 = vunpack.c.h.b16 %v398
    %v449 = vunpack.c.l.b16 %v399
    %v450 = vunpack.c.l.b16 %v400
    %v451 = vunpack.c.h.b16 %v400
    %v452 = vunpack.c.l.b16 %v401
    %v453 = vunpack.c.l.b16 %v402
    %v454 = vunpack.c.h.b16 %v402
    %v455 = vunpack.c.l.b16 %v403
    %v456 = vpack.c.b16 %v447, %v444
    %v457 = vpack.c.b16 %v448, %v445
    %v458 = vpack.c.b16 %v449, %v446
    %v459 = vpack.c.b16 %v453, %v450
    %v460 = vpack.c.b16 %v454, %v451
    %v461 = vpack.c.b16 %v455, %v452
    %v469 = vsel %vm205, %v433, 0
    %v472 = vsel %vm205, %v434, 0
    %v475 = vsel %vm205, %v435, 0
    %477 = vmatprep.subr.bf16.mxu0 0
    %478 = vmatpush1.bf16.msra.mxu0 0
    %479 = vmatprep.subr.bf16.mxu0 0
    %480 = vmatpush1.bf16.msra.mxu0 0
    %481 = vmatprep.subr.bf16.mxu0 0
    %482 = vmatpush1.bf16.msra.mxu0 0
    %483 = vmatprep.subr.bf16.mxu0 0
    %484 = vmatpush1.bf16.msra.mxu0 0
    %485 = vmatprep.subr.bf16.mxu0 0
    %486 = vmatpush1.bf16.msra.mxu0 0
    %487 = vmatprep.subr.bf16.mxu0 0
    %488 = vmatpush1.bf16.msra.mxu0 0
    %489 = vmatprep.subr.bf16.mxu0 %v460
    %490 = vmatpush1.bf16.msra.mxu0 %v459
    %491 = vmatprep.subr.bf16.mxu0 %v457
    %492 = vmatpush1.bf16.msra.mxu0 %v456
    %493 = vmatprep.subr.bf16.mxu0 0
    %494 = vmatpush2.bf16.msra.mxu0 0
    %495 = vmatprep.subr.bf16.mxu0 0
    %496 = vmatpush2.bf16.msra.mxu0 0
    %497 = vmatprep.subr.bf16.mxu0 0
    %498 = vmatpush2.bf16.msra.mxu0 0
    %499 = vmatprep.subr.bf16.mxu0 0
    %500 = vmatpush2.bf16.msra.mxu0 0
    %501 = vmatprep.subr.bf16.mxu0 0
    %502 = vmatpush2.bf16.msra.mxu0 0
    %503 = vmatprep.subr.bf16.mxu0 0
    %504 = vmatpush2.bf16.msra.mxu0 0
    %505 = vmatprep.subr.bf16.mxu0 0
    %506 = vmatpush2.bf16.msra.mxu0 0
    %507 = vmatprep.subr.bf16.mxu0 0
    %508 = vmatpush2.bf16.msra.mxu0 0
    %509 = vmatprep.mubr.bf16.mxu0 0
    %510 = vmatmul.mubr.bf16.gmra.mxu0 %v469
    %v511 = vpop.f32.mrf.mxu0
    %v512 = vadd.f32 %v409, %v511
    %v513 = vpop.f32.mrf.mxu0
    %v514 = vadd.f32 %v413, %v513
    %v515 = vpop.f32.mrf.mxu0
    %v516 = vadd.f32 %v409, %v515
    %v517 = vpop.f32.mrf.mxu0
    %v518 = vadd.f32 %v413, %v517
    %519 = vmatprep.mubr.bf16.mxu0 0
    %520 = vmatmul.mubr.bf16.gmra.mxu0 %v472
    %v521 = vpop.f32.mrf.mxu0
    %v522 = vadd.f32 %v409, %v521
    %v523 = vpop.f32.mrf.mxu0
    %v524 = vadd.f32 %v413, %v523
    %v525 = vpop.f32.mrf.mxu0
    %v526 = vadd.f32 %v409, %v525
    %v527 = vpop.f32.mrf.mxu0
    %v528 = vadd.f32 %v413, %v527
    %529 = vmatprep.mubr.bf16.mxu0 0
    %530 = vmatmul.mubr.bf16.gmra.mxu0 %v475
    %v531 = vpop.f32.mrf.mxu0
    %v532 = vadd.f32 %v409, %v531
    %v533 = vpop.f32.mrf.mxu0
    %v534 = vadd.f32 %v413, %v533
    %v535 = vpop.f32.mrf.mxu0
    %v536 = vadd.f32 %v409, %v535
    %v537 = vpop.f32.mrf.mxu0
    %v538 = vadd.f32 %v413, %v537
    %539 = vdwg.mxu0
    %540 = vmatprep.subr.bf16.mxu0 0
    %541 = vmatpush1.bf16.msra.mxu0 0
    %542 = vmatprep.subr.bf16.mxu0 0
    %543 = vmatpush1.bf16.msra.mxu0 0
    %544 = vmatprep.subr.bf16.mxu0 0
    %545 = vmatpush1.bf16.msra.mxu0 0
    %546 = vmatprep.subr.bf16.mxu0 0
    %547 = vmatpush1.bf16.msra.mxu0 0
    %548 = vmatprep.subr.bf16.mxu0 0
    %549 = vmatpush1.bf16.msra.mxu0 0
    %550 = vmatprep.subr.bf16.mxu0 0
    %551 = vmatpush1.bf16.msra.mxu0 0
    %552 = vmatprep.subr.bf16.mxu0 0
    %553 = vmatpush1.bf16.msra.mxu0 %v461
    %554 = vmatprep.subr.bf16.mxu0 0
    %555 = vmatpush1.bf16.msra.mxu0 %v458
    %556 = vmatprep.subr.bf16.mxu0 0
    %557 = vmatpush2.bf16.msra.mxu0 0
    %558 = vmatprep.subr.bf16.mxu0 0
    %559 = vmatpush2.bf16.msra.mxu0 0
    %560 = vmatprep.subr.bf16.mxu0 0
    %561 = vmatpush2.bf16.msra.mxu0 0
    %562 = vmatprep.subr.bf16.mxu0 0
    %563 = vmatpush2.bf16.msra.mxu0 0
    %564 = vmatprep.subr.bf16.mxu0 0
    %565 = vmatpush2.bf16.msra.mxu0 0
    %566 = vmatprep.subr.bf16.mxu0 0
    %567 = vmatpush2.bf16.msra.mxu0 0
    %568 = vmatprep.subr.bf16.mxu0 0
    %569 = vmatpush2.bf16.msra.mxu0 0
    %570 = vmatprep.subr.bf16.mxu0 0
    %571 = vmatpush2.bf16.msra.mxu0 0
    %572 = vmatprep.mubr.bf16.mxu0 0
    %573 = vmatmul.mubr.bf16.gmra.mxu0 %v469
    %v574 = vpop.f32.mrf.mxu0
    %v575 = vadd.f32 %v417, %v574
    %v576 = vpop.f32.mrf.mxu0
    %v577 = vpop.f32.mrf.mxu0
    %v578 = vadd.f32 %v417, %v577
    %v579 = vpop.f32.mrf.mxu0
    %580 = vmatprep.mubr.bf16.mxu0 0
    %581 = vmatmul.mubr.bf16.gmra.mxu0 %v472
    %v582 = vpop.f32.mrf.mxu0
    %v583 = vadd.f32 %v417, %v582
    %v584 = vpop.f32.mrf.mxu0
    %v585 = vpop.f32.mrf.mxu0
    %v586 = vadd.f32 %v417, %v585
    %v587 = vpop.f32.mrf.mxu0
    %588 = vmatprep.mubr.bf16.mxu0 0
    %589 = vmatmul.mubr.bf16.gmra.mxu0 %v475
    %v590 = vpop.f32.mrf.mxu0
    %v591 = vadd.f32 %v417, %v590
    %v592 = vpop.f32.mrf.mxu0
    %v593 = vpop.f32.mrf.mxu0
    %v594 = vadd.f32 %v417, %v593
    %v595 = vpop.f32.mrf.mxu0
    %596 = vdwg.mxu0
    %v597 = vmul.f32 %v512, %v514
    %v598 = vmul.f32 %v516, %v518
    %v599 = vpack.c.bf16 %v598, %v597
    %v601 = vunpack.c.l.b16 %v599
    %v602 = vunpack.c.h.b16 %v599
    %v603 = vpack.c.b16 %v601, %v601
    %v604 = vpack.c.b16 %v602, %v602
    %607 = vst.msk [vmem:[#allocation3] sm:$0xf] %vm353, %v603
    %608 = vst.msk [vmem:[#allocation3 + $0x4] sm:$0xf] %vm353, %v604
    %v609 = vmul.f32 %v512, %v524
    %v610 = vmul.f32 %v516, %v528
    %v611 = vpack.c.bf16 %v610, %v609
    %v613 = vunpack.c.l.b16 %v611
    %v614 = vunpack.c.h.b16 %v611
    %v615 = vpack.c.b16 %v613, %v613
    %v616 = vpack.c.b16 %v614, %v614
    %619 = vst.msk [vmem:[#allocation3 + $0x8] sm:$0xf] %vm353, %v615
    %620 = vst.msk [vmem:[#allocation3 + $0xc] sm:$0xf] %vm353, %v616
    %v621 = vmul.f32 %v512, %v534
    %v622 = vmul.f32 %v516, %v538
    %v623 = vpack.c.bf16 %v622, %v621
    %v625 = vunpack.c.l.b16 %v623
    %v626 = vunpack.c.h.b16 %v623
    %v627 = vpack.c.b16 %v625, %v625
    %v628 = vpack.c.b16 %v626, %v626
    %631 = vst.msk [vmem:[#allocation3 + $0x10] sm:$0xf] %vm353, %v627
    %632 = vst.msk [vmem:[#allocation3 + $0x14] sm:$0xf] %vm353, %v628
    %v633 = vmul.f32 %v522, %v514
    %v634 = vmul.f32 %v526, %v518
    %v635 = vpack.c.bf16 %v634, %v633
    %v637 = vunpack.c.l.b16 %v635
    %v638 = vunpack.c.h.b16 %v635
    %v639 = vpack.c.b16 %v637, %v637
    %v640 = vpack.c.b16 %v638, %v638
    %643 = vst.msk [vmem:[#allocation3 + $0x18] sm:$0xf] %vm353, %v639
    %644 = vst.msk [vmem:[#allocation3 + $0x1c] sm:$0xf] %vm353, %v640
    %v645 = vmul.f32 %v522, %v524
    %v646 = vmul.f32 %v526, %v528
    %v647 = vpack.c.bf16 %v646, %v645
    %v649 = vunpack.c.l.b16 %v647
    %v650 = vunpack.c.h.b16 %v647
    %v651 = vpack.c.b16 %v649, %v649
    %v652 = vpack.c.b16 %v650, %v650
    %655 = vst.msk [vmem:[#allocation3 + $0x20] sm:$0xf] %vm353, %v651
    %656 = vst.msk [vmem:[#allocation3 + $0x24] sm:$0xf] %vm353, %v652
    %v657 = vmul.f32 %v522, %v534
    %v658 = vmul.f32 %v526, %v538
    %v659 = vpack.c.bf16 %v658, %v657
    %v661 = vunpack.c.l.b16 %v659
    %v662 = vunpack.c.h.b16 %v659
    %v663 = vpack.c.b16 %v661, %v661
    %v664 = vpack.c.b16 %v662, %v662
    %667 = vst.msk [vmem:[#allocation3 + $0x28] sm:$0xf] %vm353, %v663
    %668 = vst.msk [vmem:[#allocation3 + $0x2c] sm:$0xf] %vm353, %v664
    %v669 = vmul.f32 %v532, %v514
    %v670 = vmul.f32 %v536, %v518
    %v671 = vpack.c.bf16 %v670, %v669
    %v673 = vunpack.c.l.b16 %v671
    %v674 = vunpack.c.h.b16 %v671
    %v675 = vpack.c.b16 %v673, %v673
    %v676 = vpack.c.b16 %v674, %v674
    %679 = vst.msk [vmem:[#allocation3 + $0x30] sm:$0xf] %vm353, %v675
    %680 = vst.msk [vmem:[#allocation3 + $0x34] sm:$0xf] %vm353, %v676
    %v681 = vmul.f32 %v532, %v524
    %v682 = vmul.f32 %v536, %v528
    %v683 = vpack.c.bf16 %v682, %v681
    %v685 = vunpack.c.l.b16 %v683
    %v686 = vunpack.c.h.b16 %v683
    %v687 = vpack.c.b16 %v685, %v685
    %v688 = vpack.c.b16 %v686, %v686
    %691 = vst.msk [vmem:[#allocation3 + $0x38] sm:$0xf] %vm353, %v687
    %692 = vst.msk [vmem:[#allocation3 + $0x3c] sm:$0xf] %vm353, %v688
    %v693 = vmul.f32 %v532, %v534
    %v694 = vmul.f32 %v536, %v538
    %v695 = vpack.c.bf16 %v694, %v693
    %v697 = vunpack.c.l.b16 %v695
    %v698 = vunpack.c.h.b16 %v695
    %v699 = vpack.c.b16 %v697, %v697
    %v700 = vpack.c.b16 %v698, %v698
    %703 = vst.msk [vmem:[#allocation3 + $0x40] sm:$0xf] %vm353, %v699
    %704 = vst.msk [vmem:[#allocation3 + $0x44] sm:$0xf] %vm353, %v700
    %v705 = vld [vmem:[#allocation3] sm:$0xf]
    %v706 = vld [vmem:[#allocation3 + $0x4] sm:$0xf]
    %v707 = vld [vmem:[#allocation3 + $0x8] sm:$0xf]
    %v708 = vld [vmem:[#allocation3 + $0xc] sm:$0xf]
    %v709 = vld [vmem:[#allocation3 + $0x10] sm:$0xf]
    %v710 = vld [vmem:[#allocation3 + $0x14] sm:$0xf]
    %v711 = vld [vmem:[#allocation3 + $0x18] sm:$0xf]
    %v712 = vld [vmem:[#allocation3 + $0x1c] sm:$0xf]
    %v713 = vld [vmem:[#allocation3 + $0x20] sm:$0xf]
    %v714 = vld [vmem:[#allocation3 + $0x24] sm:$0xf]
    %v715 = vld [vmem:[#allocation3 + $0x28] sm:$0xf]
    %v716 = vld [vmem:[#allocation3 + $0x2c] sm:$0xf]
    %v717 = vld [vmem:[#allocation3 + $0x30] sm:$0xf]
    %v718 = vld [vmem:[#allocation3 + $0x34] sm:$0xf]
    %v719 = vld [vmem:[#allocation3 + $0x38] sm:$0xf]
    %v720 = vld [vmem:[#allocation3 + $0x3c] sm:$0xf]
    %v721 = vld [vmem:[#allocation3 + $0x40] sm:$0xf]
    %v722 = vld [vmem:[#allocation3 + $0x44] sm:$0xf]
    %v723 = vld [vmem:[%s11] sm:$0xf]
    %v724 = vld [vmem:[%s11 + $0x4] sm:$0xf]
    %v725 = vld [vmem:[%s11 + $0x8] sm:$0xf]
    %v726 = vld [vmem:[%s11 + $0xc] sm:$0xf]
    %v745 = vunpack.c.l.b16 %v705
    %v746 = vunpack.c.l.b16 %v706
    %v747 = vunpack.c.l.b16 %v707
    %v748 = vunpack.c.l.b16 %v708
    %v749 = vunpack.c.l.b16 %v709
    %v750 = vunpack.c.l.b16 %v710
    %v751 = vunpack.c.l.b16 %v711
    %v752 = vunpack.c.l.b16 %v712
    %v753 = vunpack.c.l.b16 %v713
    %v754 = vunpack.c.l.b16 %v714
    %v755 = vunpack.c.l.b16 %v715
    %v756 = vunpack.c.l.b16 %v716
    %v757 = vunpack.c.l.b16 %v717
    %v758 = vunpack.c.l.b16 %v718
    %v759 = vunpack.c.l.b16 %v719
    %v760 = vunpack.c.l.b16 %v720
    %v761 = vunpack.c.l.b16 %v721
    %v762 = vunpack.c.l.b16 %v722
    %v763 = vpack.c.b16 %v746, %v745
    %v764 = vpack.c.b16 %v748, %v747
    %v765 = vpack.c.b16 %v750, %v749
    %v766 = vpack.c.b16 %v752, %v751
    %v767 = vpack.c.b16 %v754, %v753
    %v768 = vpack.c.b16 %v756, %v755
    %v769 = vpack.c.b16 %v758, %v757
    %v770 = vpack.c.b16 %v760, %v759
    %v771 = vpack.c.b16 %v762, %v761
    %v776 = vunpack.c.l.b16 %v723
    %v777 = vunpack.c.l.b16 %v724
    %v778 = vunpack.c.l.b16 %v725
    %v779 = vunpack.c.l.b16 %v726
    %v780 = vpack.c.b16 %v777, %v776
    %v781 = vpack.c.b16 %v779, %v778
    %v785 = vsel %vm205, %v763, 0
    %v788 = vsel %vm205, %v764, 0
    %v791 = vsel %vm205, %v765, 0
    %v794 = vsel %vm205, %v766, 0
    %v797 = vsel %vm205, %v767, 0
    %v800 = vsel %vm205, %v768, 0
    %v803 = vsel %vm205, %v769, 0
    %v806 = vsel %vm205, %v770, 0
    %v809 = vsel %vm205, %v771, 0
    %811 = vmatprep.subr.bf16.mxu0 0
    %812 = vmatpush1.bf16.msra.mxu0 0
    %813 = vmatprep.subr.bf16.mxu0 0
    %814 = vmatpush1.bf16.msra.mxu0 0
    %815 = vmatprep.subr.bf16.mxu0 0
    %816 = vmatpush1.bf16.msra.mxu0 0
    %817 = vmatprep.subr.bf16.mxu0 0
    %818 = vmatpush1.bf16.msra.mxu0 0
    %819 = vmatprep.subr.bf16.mxu0 0
    %820 = vmatpush1.bf16.msra.mxu0 0
    %821 = vmatprep.subr.bf16.mxu0 0
    %822 = vmatpush1.bf16.msra.mxu0 0
    %823 = vmatprep.subr.bf16.mxu0 0
    %824 = vmatpush1.bf16.msra.mxu0 %v781
    %825 = vmatprep.subr.bf16.mxu0 0
    %826 = vmatpush1.bf16.msra.mxu0 %v780
    %827 = vmatprep.subr.bf16.mxu0 0
    %828 = vmatpush2.bf16.msra.mxu0 0
    %829 = vmatprep.subr.bf16.mxu0 0
    %830 = vmatpush2.bf16.msra.mxu0 0
    %831 = vmatprep.subr.bf16.mxu0 0
    %832 = vmatpush2.bf16.msra.mxu0 0
    %833 = vmatprep.subr.bf16.mxu0 0
    %834 = vmatpush2.bf16.msra.mxu0 0
    %835 = vmatprep.subr.bf16.mxu0 0
    %836 = vmatpush2.bf16.msra.mxu0 0
    %837 = vmatprep.subr.bf16.mxu0 0
    %838 = vmatpush2.bf16.msra.mxu0 0
    %839 = vmatprep.subr.bf16.mxu0 0
    %840 = vmatpush2.bf16.msra.mxu0 0
    %841 = vmatprep.subr.bf16.mxu0 0
    %842 = vmatpush2.bf16.msra.mxu0 0
    %843 = vmatprep.mubr.bf16.mxu0 0
    %844 = vmatmul.mubr.bf16.gmra.mxu0 %v785
    %v845 = vpop.f32.mrf.mxu0
    %v846 = vadd.f32 0.0, %v845
    %v847 = vpop.f32.mrf.mxu0
    %v848 = vpop.f32.mrf.mxu0
    %v849 = vadd.f32 0.0, %v848
    %v850 = vpop.f32.mrf.mxu0
    %851 = vmatprep.mubr.bf16.mxu0 0
    %852 = vmatmul.mubr.bf16.gmra.mxu0 %v788
    %v853 = vpop.f32.mrf.mxu0
    %v854 = vadd.f32 0.0, %v853
    %v855 = vpop.f32.mrf.mxu0
    %v856 = vpop.f32.mrf.mxu0
    %v857 = vadd.f32 0.0, %v856
    %v858 = vpop.f32.mrf.mxu0
    %859 = vmatprep.mubr.bf16.mxu0 0
    %860 = vmatmul.mubr.bf16.gmra.mxu0 %v791
    %v861 = vpop.f32.mrf.mxu0
    %v862 = vadd.f32 0.0, %v861
    %v863 = vpop.f32.mrf.mxu0
    %v864 = vpop.f32.mrf.mxu0
    %v865 = vadd.f32 0.0, %v864
    %v866 = vpop.f32.mrf.mxu0
    %867 = vmatprep.mubr.bf16.mxu0 0
    %868 = vmatmul.mubr.bf16.gmra.mxu0 %v794
    %v869 = vpop.f32.mrf.mxu0
    %v870 = vadd.f32 0.0, %v869
    %v871 = vpop.f32.mrf.mxu0
    %v872 = vpop.f32.mrf.mxu0
    %v873 = vadd.f32 0.0, %v872
    %v874 = vpop.f32.mrf.mxu0
    %875 = vmatprep.mubr.bf16.mxu0 0
    %876 = vmatmul.mubr.bf16.gmra.mxu0 %v797
    %v877 = vpop.f32.mrf.mxu0
    %v878 = vadd.f32 0.0, %v877
    %v879 = vpop.f32.mrf.mxu0
    %v880 = vpop.f32.mrf.mxu0
    %v881 = vadd.f32 0.0, %v880
    %v882 = vpop.f32.mrf.mxu0
    %883 = vmatprep.mubr.bf16.mxu0 0
    %884 = vmatmul.mubr.bf16.gmra.mxu0 %v800
    %v885 = vpop.f32.mrf.mxu0
    %v886 = vadd.f32 0.0, %v885
    %v887 = vpop.f32.mrf.mxu0
    %v888 = vpop.f32.mrf.mxu0
    %v889 = vadd.f32 0.0, %v888
    %v890 = vpop.f32.mrf.mxu0
    %891 = vmatprep.mubr.bf16.mxu0 0
    %892 = vmatmul.mubr.bf16.gmra.mxu0 %v803
    %v893 = vpop.f32.mrf.mxu0
    %v894 = vadd.f32 0.0, %v893
    %v895 = vpop.f32.mrf.mxu0
    %v896 = vpop.f32.mrf.mxu0
    %v897 = vadd.f32 0.0, %v896
    %v898 = vpop.f32.mrf.mxu0
    %899 = vmatprep.mubr.bf16.mxu0 0
    %900 = vmatmul.mubr.bf16.gmra.mxu0 %v806
    %v901 = vpop.f32.mrf.mxu0
    %v902 = vadd.f32 0.0, %v901
    %v903 = vpop.f32.mrf.mxu0
    %v904 = vpop.f32.mrf.mxu0
    %v905 = vadd.f32 0.0, %v904
    %v906 = vpop.f32.mrf.mxu0
    %907 = vmatprep.mubr.bf16.mxu0 0
    %908 = vmatmul.mubr.bf16.gmra.mxu0 %v809
    %v909 = vpop.f32.mrf.mxu0
    %v910 = vadd.f32 0.0, %v909
    %v911 = vpop.f32.mrf.mxu0
    %v912 = vpop.f32.mrf.mxu0
    %v913 = vadd.f32 0.0, %v912
    %v914 = vpop.f32.mrf.mxu0
    %915 = vdwg.mxu0
    %v916 = vmax.f32 %v846, %v854
    %v917 = vmax.f32 %v849, %v857
    %v918 = vmax.f32 %v916, %v862
    %v919 = vmax.f32 %v917, %v865
    %v920 = vsub.f32 %v846, %v918
    %v921 = vsub.f32 %v849, %v919
    %v922 = vmul.f32 %v920, 1.442695
    %v923 = vpow.pop %v922
    %v924 = vmul.f32 %v921, 1.442695
    %v925 = vpow.pop %v924
    %v926 = vsub.f32 %v854, %v918
    %v927 = vsub.f32 %v857, %v919
    %v928 = vmul.f32 %v926, 1.442695
    %v929 = vpow.pop %v928
    %v930 = vmul.f32 %v927, 1.442695
    %v931 = vpow.pop %v930
    %v932 = vsub.f32 %v862, %v918
    %v933 = vsub.f32 %v865, %v919
    %v934 = vmul.f32 %v932, 1.442695
    %v935 = vpow.pop %v934
    %v936 = vmul.f32 %v933, 1.442695
    %v937 = vpow.pop %v936
    %v938 = vadd.f32 %v923, %v929
    %v939 = vadd.f32 %v925, %v931
    %v940 = vadd.f32 %v938, %v935
    %v941 = vadd.f32 %v939, %v937
    %v942 = vrcp.pop %v940
    %v943 = vrcp.pop %v941
    %v944 = vmul.f32 %v923, %v942
    %v945 = vmul.f32 %v925, %v943
    %v946 = vpack.c.bf16 %v945, %v944
    %v948 = vunpack.c.l.b16 %v946
    %v949 = vunpack.c.h.b16 %v946
    %v950 = vpack.c.b16 %v948, %v948
    %v951 = vpack.c.b16 %v949, %v949
    %vm954 = vcmask 125952
    %955 = vst.msk [vmem:[#allocation4] sm:$0xf] %vm954, %v950
    %956 = vst.msk [vmem:[#allocation4 + $0x4] sm:$0xf] %vm954, %v951
    %v957 = vmul.f32 %v929, %v942
    %v958 = vmul.f32 %v931, %v943
    %v959 = vpack.c.bf16 %v958, %v957
    %v961 = vunpack.c.l.b16 %v959
    %v962 = vunpack.c.h.b16 %v959
    %v963 = vpack.c.b16 %v961, %v961
    %v964 = vpack.c.b16 %v962, %v962
    %967 = vst.msk [vmem:[#allocation4 + $0x8] sm:$0xf] %vm954, %v963
    %968 = vst.msk [vmem:[#allocation4 + $0xc] sm:$0xf] %vm954, %v964
    %v969 = vmul.f32 %v935, %v942
    %v970 = vmul.f32 %v937, %v943
    %v971 = vpack.c.bf16 %v970, %v969
    %v973 = vunpack.c.l.b16 %v971
    %v974 = vunpack.c.h.b16 %v971
    %v975 = vpack.c.b16 %v973, %v973
    %v976 = vpack.c.b16 %v974, %v974
    %979 = vst.msk [vmem:[#allocation4 + $0x10] sm:$0xf] %vm954, %v975
    %980 = vst.msk [vmem:[#allocation4 + $0x14] sm:$0xf] %vm954, %v976
    %v981 = vmax.f32 %v870, %v878
    %v982 = vmax.f32 %v873, %v881
    %v983 = vmax.f32 %v981, %v886
    %v984 = vmax.f32 %v982, %v889
    %v985 = vsub.f32 %v870, %v983
    %v986 = vsub.f32 %v873, %v984
    %v987 = vmul.f32 %v985, 1.442695
    %v988 = vpow.pop %v987
    %v989 = vmul.f32 %v986, 1.442695
    %v990 = vpow.pop %v989
    %v991 = vsub.f32 %v878, %v983
    %v992 = vsub.f32 %v881, %v984
    %v993 = vmul.f32 %v991, 1.442695
    %v994 = vpow.pop %v993
    %v995 = vmul.f32 %v992, 1.442695
    %v996 = vpow.pop %v995
    %v997 = vsub.f32 %v886, %v983
    %v998 = vsub.f32 %v889, %v984
    %v999 = vmul.f32 %v997, 1.442695
    %v1000 = vpow.pop %v999
    %v1001 = vmul.f32 %v998, 1.442695
    %v1002 = vpow.pop %v1001
    %v1003 = vadd.f32 %v988, %v994
    %v1004 = vadd.f32 %v990, %v996
    %v1005 = vadd.f32 %v1003, %v1000
    %v1006 = vadd.f32 %v1004, %v1002
    %v1007 = vrcp.pop %v1005
    %v1008 = vrcp.pop %v1006
    %v1009 = vmul.f32 %v988, %v1007
    %v1010 = vmul.f32 %v990, %v1008
    %v1011 = vpack.c.bf16 %v1010, %v1009
    %v1013 = vunpack.c.l.b16 %v1011
    %v1014 = vunpack.c.h.b16 %v1011
    %v1015 = vpack.c.b16 %v1013, %v1013
    %v1016 = vpack.c.b16 %v1014, %v1014
    %1019 = vst.msk [vmem:[#allocation4 + $0x18] sm:$0xf] %vm954, %v1015
    %1020 = vst.msk [vmem:[#allocation4 + $0x1c] sm:$0xf] %vm954, %v1016
    %v1021 = vmul.f32 %v994, %v1007
    %v1022 = vmul.f32 %v996, %v1008
    %v1023 = vpack.c.bf16 %v1022, %v1021
    %v1025 = vunpack.c.l.b16 %v1023
    %v1026 = vunpack.c.h.b16 %v1023
    %v1027 = vpack.c.b16 %v1025, %v1025
    %v1028 = vpack.c.b16 %v1026, %v1026
    %1031 = vst.msk [vmem:[#allocation4 + $0x20] sm:$0xf] %vm954, %v1027
    %1032 = vst.msk [vmem:[#allocation4 + $0x24] sm:$0xf] %vm954, %v1028
    %v1033 = vmul.f32 %v1000, %v1007
    %v1034 = vmul.f32 %v1002, %v1008
    %v1035 = vpack.c.bf16 %v1034, %v1033
    %v1037 = vunpack.c.l.b16 %v1035
    %v1038 = vunpack.c.h.b16 %v1035
    %v1039 = vpack.c.b16 %v1037, %v1037
    %v1040 = vpack.c.b16 %v1038, %v1038
    %1043 = vst.msk [vmem:[#allocation4 + $0x28] sm:$0xf] %vm954, %v1039
    %1044 = vst.msk [vmem:[#allocation4 + $0x2c] sm:$0xf] %vm954, %v1040
    %v1045 = vmax.f32 %v894, %v902
    %v1046 = vmax.f32 %v897, %v905
    %v1047 = vmax.f32 %v1045, %v910
    %v1048 = vmax.f32 %v1046, %v913
    %v1049 = vsub.f32 %v894, %v1047
    %v1050 = vsub.f32 %v897, %v1048
    %v1051 = vmul.f32 %v1049, 1.442695
    %v1052 = vpow.pop %v1051
    %v1053 = vmul.f32 %v1050, 1.442695
    %v1054 = vpow.pop %v1053
    %v1055 = vsub.f32 %v902, %v1047
    %v1056 = vsub.f32 %v905, %v1048
    %v1057 = vmul.f32 %v1055, 1.442695
    %v1058 = vpow.pop %v1057
    %v1059 = vmul.f32 %v1056, 1.442695
    %v1060 = vpow.pop %v1059
    %v1061 = vsub.f32 %v910, %v1047
    %v1062 = vsub.f32 %v913, %v1048
    %v1063 = vmul.f32 %v1061, 1.442695
    %v1064 = vpow.pop %v1063
    %v1065 = vmul.f32 %v1062, 1.442695
    %v1066 = vpow.pop %v1065
    %v1067 = vadd.f32 %v1052, %v1058
    %v1068 = vadd.f32 %v1054, %v1060
    %v1069 = vadd.f32 %v1067, %v1064
    %v1070 = vadd.f32 %v1068, %v1066
    %v1071 = vrcp.pop %v1069
    %v1072 = vrcp.pop %v1070
    %v1073 = vmul.f32 %v1052, %v1071
    %v1074 = vmul.f32 %v1054, %v1072
    %v1075 = vpack.c.bf16 %v1074, %v1073
    %v1077 = vunpack.c.l.b16 %v1075
    %v1078 = vunpack.c.h.b16 %v1075
    %v1079 = vpack.c.b16 %v1077, %v1077
    %v1080 = vpack.c.b16 %v1078, %v1078
    %1083 = vst.msk [vmem:[#allocation4 + $0x30] sm:$0xf] %vm954, %v1079
    %1084 = vst.msk [vmem:[#allocation4 + $0x34] sm:$0xf] %vm954, %v1080
    %v1085 = vmul.f32 %v1058, %v1071
    %v1086 = vmul.f32 %v1060, %v1072
    %v1087 = vpack.c.bf16 %v1086, %v1085
    %v1089 = vunpack.c.l.b16 %v1087
    %v1090 = vunpack.c.h.b16 %v1087
    %v1091 = vpack.c.b16 %v1089, %v1089
    %v1092 = vpack.c.b16 %v1090, %v1090
    %1095 = vst.msk [vmem:[#allocation4 + $0x38] sm:$0xf] %vm954, %v1091
    %1096 = vst.msk [vmem:[#allocation4 + $0x3c] sm:$0xf] %vm954, %v1092
    %v1097 = vmul.f32 %v1064, %v1071
    %v1098 = vmul.f32 %v1066, %v1072
    %v1099 = vpack.c.bf16 %v1098, %v1097
    %v1101 = vunpack.c.l.b16 %v1099
    %v1102 = vunpack.c.h.b16 %v1099
    %v1103 = vpack.c.b16 %v1101, %v1101
    %v1104 = vpack.c.b16 %v1102, %v1102
    %1107 = vst.msk [vmem:[#allocation4 + $0x40] sm:$0xf] %vm954, %v1103
    %1108 = vst.msk [vmem:[#allocation4 + $0x44] sm:$0xf] %vm954, %v1104
    %v1109 = vld [vmem:[#allocation4] sm:$0xf]
    %v1110 = vld [vmem:[#allocation4 + $0x4] sm:$0xf]
    %v1111 = vld [vmem:[#allocation4 + $0x8] sm:$0xf]
    %v1112 = vld [vmem:[#allocation4 + $0xc] sm:$0xf]
    %v1113 = vld [vmem:[#allocation4 + $0x10] sm:$0xf]
    %v1114 = vld [vmem:[#allocation4 + $0x14] sm:$0xf]
    %v1115 = vld [vmem:[#allocation4 + $0x18] sm:$0xf]
    %v1116 = vld [vmem:[#allocation4 + $0x1c] sm:$0xf]
    %v1117 = vld [vmem:[#allocation4 + $0x20] sm:$0xf]
    %v1118 = vld [vmem:[#allocation4 + $0x24] sm:$0xf]
    %v1119 = vld [vmem:[#allocation4 + $0x28] sm:$0xf]
    %v1120 = vld [vmem:[#allocation4 + $0x2c] sm:$0xf]
    %v1121 = vld [vmem:[#allocation4 + $0x30] sm:$0xf]
    %v1122 = vld [vmem:[#allocation4 + $0x34] sm:$0xf]
    %v1123 = vld [vmem:[#allocation4 + $0x38] sm:$0xf]
    %v1124 = vld [vmem:[#allocation4 + $0x3c] sm:$0xf]
    %v1125 = vld [vmem:[#allocation4 + $0x40] sm:$0xf]
    %v1126 = vld [vmem:[#allocation4 + $0x44] sm:$0xf]
    %v1127 = vld [vmem:[%s12] sm:$0xf]
    %v1128 = vld [vmem:[%s12 + $0x4] sm:$0xf]
    %v1147 = vunpack.c.l.b16 %v1109
    %v1148 = vunpack.c.l.b16 %v1110
    %v1149 = vunpack.c.l.b16 %v1111
    %v1150 = vunpack.c.l.b16 %v1112
    %v1151 = vunpack.c.l.b16 %v1113
    %v1152 = vunpack.c.l.b16 %v1114
    %v1153 = vunpack.c.l.b16 %v1115
    %v1154 = vunpack.c.l.b16 %v1116
    %v1155 = vunpack.c.l.b16 %v1117
    %v1156 = vunpack.c.l.b16 %v1118
    %v1157 = vunpack.c.l.b16 %v1119
    %v1158 = vunpack.c.l.b16 %v1120
    %v1159 = vunpack.c.l.b16 %v1121
    %v1160 = vunpack.c.l.b16 %v1122
    %v1161 = vunpack.c.l.b16 %v1123
    %v1162 = vunpack.c.l.b16 %v1124
    %v1163 = vunpack.c.l.b16 %v1125
    %v1164 = vunpack.c.l.b16 %v1126
    %v1165 = vpack.c.b16 %v1148, %v1147
    %v1166 = vpack.c.b16 %v1150, %v1149
    %v1167 = vpack.c.b16 %v1152, %v1151
    %v1168 = vpack.c.b16 %v1154, %v1153
    %v1169 = vpack.c.b16 %v1156, %v1155
    %v1170 = vpack.c.b16 %v1158, %v1157
    %v1171 = vpack.c.b16 %v1160, %v1159
    %v1172 = vpack.c.b16 %v1162, %v1161
    %v1173 = vpack.c.b16 %v1164, %v1163
    %v1176 = vunpack.c.l.b16 %v1127
    %v1177 = vunpack.c.l.b16 %v1128
    %v1178 = vpack.c.b16 %v1177, %v1176
    %vm1180 = vcmask 130048
    %v1182 = vsel %vm1180, %v1165, 0
    %v1185 = vsel %vm1180, %v1166, 0
    %v1188 = vsel %vm1180, %v1167, 0
    %v1191 = vsel %vm1180, %v1168, 0
    %v1194 = vsel %vm1180, %v1169, 0
    %v1197 = vsel %vm1180, %v1170, 0
    %v1200 = vsel %vm1180, %v1171, 0
    %v1203 = vsel %vm1180, %v1172, 0
    %v1206 = vsel %vm1180, %v1173, 0
    %1208 = vmatprep.subr.bf16.mxu0 0
    %1209 = vmatpush1.bf16.msra.mxu0 0
    %1210 = vmatprep.subr.bf16.mxu0 0
    %1211 = vmatpush1.bf16.msra.mxu0 0
    %1212 = vmatprep.subr.bf16.mxu0 0
    %1213 = vmatpush1.bf16.msra.mxu0 0
    %1214 = vmatprep.subr.bf16.mxu0 0
    %1215 = vmatpush1.bf16.msra.mxu0 0
    %1216 = vmatprep.subr.bf16.mxu0 0
    %1217 = vmatpush1.bf16.msra.mxu0 0
    %1218 = vmatprep.subr.bf16.mxu0 0
    %1219 = vmatpush1.bf16.msra.mxu0 0
    %1220 = vmatprep.subr.bf16.mxu0 0
    %1221 = vmatpush1.bf16.msra.mxu0 0
    %1222 = vmatprep.subr.bf16.mxu0 0
    %1223 = vmatpush1.bf16.msra.mxu0 %v1178
    %1224 = vmatprep.subr.bf16.mxu0 0
    %1225 = vmatpush2.bf16.msra.mxu0 0
    %1226 = vmatprep.subr.bf16.mxu0 0
    %1227 = vmatpush2.bf16.msra.mxu0 0
    %1228 = vmatprep.subr.bf16.mxu0 0
    %1229 = vmatpush2.bf16.msra.mxu0 0
    %1230 = vmatprep.subr.bf16.mxu0 0
    %1231 = vmatpush2.bf16.msra.mxu0 0
    %1232 = vmatprep.subr.bf16.mxu0 0
    %1233 = vmatpush2.bf16.msra.mxu0 0
    %1234 = vmatprep.subr.bf16.mxu0 0
    %1235 = vmatpush2.bf16.msra.mxu0 0
    %1236 = vmatprep.subr.bf16.mxu0 0
    %1237 = vmatpush2.bf16.msra.mxu0 0
    %1238 = vmatprep.subr.bf16.mxu0 0
    %1239 = vmatpush2.bf16.msra.mxu0 0
    %1240 = vmatprep.mubr.bf16.mxu0 0
    %1241 = vmatmul.mubr.bf16.gmra.mxu0 %v1182
    %v1242 = vpop.f32.mrf.mxu0
    %v1243 = vadd.f32 0.0, %v1242
    %v1244 = vpop.f32.mrf.mxu0
    %v1245 = vpop.f32.mrf.mxu0
    %v1246 = vadd.f32 0.0, %v1245
    %v1247 = vpop.f32.mrf.mxu0
    %1248 = vmatprep.mubr.bf16.mxu0 0
    %1249 = vmatmul.mubr.bf16.gmra.mxu0 %v1185
    %v1250 = vpop.f32.mrf.mxu0
    %v1251 = vadd.f32 0.0, %v1250
    %v1252 = vpop.f32.mrf.mxu0
    %v1253 = vpop.f32.mrf.mxu0
    %v1254 = vadd.f32 0.0, %v1253
    %v1255 = vpop.f32.mrf.mxu0
    %1256 = vmatprep.mubr.bf16.mxu0 0
    %1257 = vmatmul.mubr.bf16.gmra.mxu0 %v1188
    %v1258 = vpop.f32.mrf.mxu0
    %v1259 = vadd.f32 0.0, %v1258
    %v1260 = vpop.f32.mrf.mxu0
    %v1261 = vpop.f32.mrf.mxu0
    %v1262 = vadd.f32 0.0, %v1261
    %v1263 = vpop.f32.mrf.mxu0
    %1264 = vmatprep.mubr.bf16.mxu0 0
    %1265 = vmatmul.mubr.bf16.gmra.mxu0 %v1191
    %v1266 = vpop.f32.mrf.mxu0
    %v1267 = vadd.f32 0.0, %v1266
    %v1268 = vpop.f32.mrf.mxu0
    %v1269 = vpop.f32.mrf.mxu0
    %v1270 = vadd.f32 0.0, %v1269
    %v1271 = vpop.f32.mrf.mxu0
    %1272 = vmatprep.mubr.bf16.mxu0 0
    %1273 = vmatmul.mubr.bf16.gmra.mxu0 %v1194
    %v1274 = vpop.f32.mrf.mxu0
    %v1275 = vadd.f32 0.0, %v1274
    %v1276 = vpop.f32.mrf.mxu0
    %v1277 = vpop.f32.mrf.mxu0
    %v1278 = vadd.f32 0.0, %v1277
    %v1279 = vpop.f32.mrf.mxu0
    %1280 = vmatprep.mubr.bf16.mxu0 0
    %1281 = vmatmul.mubr.bf16.gmra.mxu0 %v1197
    %v1282 = vpop.f32.mrf.mxu0
    %v1283 = vadd.f32 0.0, %v1282
    %v1284 = vpop.f32.mrf.mxu0
    %v1285 = vpop.f32.mrf.mxu0
    %v1286 = vadd.f32 0.0, %v1285
    %v1287 = vpop.f32.mrf.mxu0
    %1288 = vmatprep.mubr.bf16.mxu0 0
    %1289 = vmatmul.mubr.bf16.gmra.mxu0 %v1200
    %v1290 = vpop.f32.mrf.mxu0
    %v1291 = vadd.f32 0.0, %v1290
    %v1292 = vpop.f32.mrf.mxu0
    %v1293 = vpop.f32.mrf.mxu0
    %v1294 = vadd.f32 0.0, %v1293
    %v1295 = vpop.f32.mrf.mxu0
    %1296 = vmatprep.mubr.bf16.mxu0 0
    %1297 = vmatmul.mubr.bf16.gmra.mxu0 %v1203
    %v1298 = vpop.f32.mrf.mxu0
    %v1299 = vadd.f32 0.0, %v1298
    %v1300 = vpop.f32.mrf.mxu0
    %v1301 = vpop.f32.mrf.mxu0
    %v1302 = vadd.f32 0.0, %v1301
    %v1303 = vpop.f32.mrf.mxu0
    %1304 = vmatprep.mubr.bf16.mxu0 0
    %1305 = vmatmul.mubr.bf16.gmra.mxu0 %v1206
    %v1306 = vpop.f32.mrf.mxu0
    %v1307 = vadd.f32 0.0, %v1306
    %v1308 = vpop.f32.mrf.mxu0
    %v1309 = vpop.f32.mrf.mxu0
    %v1310 = vadd.f32 0.0, %v1309
    %v1311 = vpop.f32.mrf.mxu0
    %1312 = vdwg.mxu0
    %v1313 = vmul.f32 %v1243, %v575
    %v1314 = vmul.f32 %v1246, %v578
    %v1315 = vmul.f32 %v1251, %v583
    %v1316 = vmul.f32 %v1254, %v586
    %v1317 = vadd.f32 %v1313, %v1315
    %v1318 = vadd.f32 %v1314, %v1316
    %v1319 = vmul.f32 %v1259, %v591
    %v1320 = vmul.f32 %v1262, %v594
    %v1321 = vadd.f32 %v1317, %v1319
    %v1322 = vadd.f32 %v1318, %v1320
    %v1323 = vpack.c.bf16 %v1322, %v1321
    %v1325 = vunpack.c.l.b16 %v1323
    %v1326 = vunpack.c.h.b16 %v1323
    %v1327 = vpack.c.b16 %v1325, %v1325
    %v1328 = vpack.c.b16 %v1326, %v1326
    %1331 = vst.msk [vmem:[#allocation5] sm:$0xf] %vm353, %v1327
    %1332 = vst.msk [vmem:[#allocation5 + $0x4] sm:$0xf] %vm353, %v1328
    %v1333 = vmul.f32 %v1267, %v575
    %v1334 = vmul.f32 %v1270, %v578
    %v1335 = vmul.f32 %v1275, %v583
    %v1336 = vmul.f32 %v1278, %v586
    %v1337 = vadd.f32 %v1333, %v1335
    %v1338 = vadd.f32 %v1334, %v1336
    %v1339 = vmul.f32 %v1283, %v591
    %v1340 = vmul.f32 %v1286, %v594
    %v1341 = vadd.f32 %v1337, %v1339
    %v1342 = vadd.f32 %v1338, %v1340
    %v1343 = vpack.c.bf16 %v1342, %v1341
    %v1345 = vunpack.c.l.b16 %v1343
    %v1346 = vunpack.c.h.b16 %v1343
    %v1347 = vpack.c.b16 %v1345, %v1345
    %v1348 = vpack.c.b16 %v1346, %v1346
    %1351 = vst.msk [vmem:[#allocation5 + $0x8] sm:$0xf] %vm353, %v1347
    %1352 = vst.msk [vmem:[#allocation5 + $0xc] sm:$0xf] %vm353, %v1348
    %v1353 = vmul.f32 %v1291, %v575
    %v1354 = vmul.f32 %v1294, %v578
    %v1355 = vmul.f32 %v1299, %v583
    %v1356 = vmul.f32 %v1302, %v586
    %v1357 = vadd.f32 %v1353, %v1355
    %v1358 = vadd.f32 %v1354, %v1356
    %v1359 = vmul.f32 %v1307, %v591
    %v1360 = vmul.f32 %v1310, %v594
    %v1361 = vadd.f32 %v1357, %v1359
    %v1362 = vadd.f32 %v1358, %v1360
    %v1363 = vpack.c.bf16 %v1362, %v1361
    %v1365 = vunpack.c.l.b16 %v1363
    %v1366 = vunpack.c.h.b16 %v1363
    %v1367 = vpack.c.b16 %v1365, %v1365
    %v1368 = vpack.c.b16 %v1366, %v1366
    %1371 = vst.msk [vmem:[#allocation5 + $0x10] sm:$0xf] %vm353, %v1367
    %1372 = vst.msk [vmem:[#allocation5 + $0x14] sm:$0xf] %vm353, %v1368
    %v1373 = vld [vmem:[#allocation5] sm:$0xf]
    %v1374 = vld [vmem:[#allocation5 + $0x4] sm:$0xf]
    %v1375 = vld [vmem:[#allocation5 + $0x8] sm:$0xf]
    %v1376 = vld [vmem:[#allocation5 + $0xc] sm:$0xf]
    %v1377 = vld [vmem:[#allocation5 + $0x10] sm:$0xf]
    %v1378 = vld [vmem:[#allocation5 + $0x14] sm:$0xf]
    %v1379 = vld [vmem:[%s5] sm:$0xf]
    %v1380 = vld [vmem:[%s5 + $0x4] sm:$0xf]
    %v1381 = vld [vmem:[%s5 + $0x8] sm:$0xf]
    %v1382 = vld [vmem:[%s5 + $0xc] sm:$0xf]
    %v1383 = vld [vmem:[#allocation14] sm:$0x1]
    %v1385 = vlaneseq
    %v1386 = vshrl.u32 %v1385, 7
    %v1387 = vsub.s32 0, %v1386
    %v1388 = vrot.slane %v1383, %v1387
    %v1396 = vunpack.c.l.b16 %v1373
    %v1397 = vunpack.c.l.b16 %v1374
    %v1398 = vunpack.c.l.b16 %v1375
    %v1399 = vunpack.c.l.b16 %v1376
    %v1400 = vunpack.c.l.b16 %v1377
    %v1401 = vunpack.c.l.b16 %v1378
    %v1402 = vpack.c.b16 %v1397, %v1396
    %v1403 = vpack.c.b16 %v1399, %v1398
    %v1404 = vpack.c.b16 %v1401, %v1400
    %v1409 = vunpack.c.l.b16 %v1379
    %v1410 = vunpack.c.l.b16 %v1380
    %v1411 = vunpack.c.l.b16 %v1381
    %v1412 = vunpack.c.l.b16 %v1382
    %v1413 = vpack.c.b16 %v1410, %v1409
    %v1414 = vpack.c.b16 %v1412, %v1411
    %v1418 = vsel %vm205, %v1402, 0
    %v1421 = vsel %vm205, %v1403, 0
    %v1424 = vsel %vm205, %v1404, 0
    %1426 = vmatprep.subr.bf16.mxu0 0
    %1427 = vmatpush1.bf16.msra.mxu0 0
    %1428 = vmatprep.subr.bf16.mxu0 0
    %1429 = vmatpush1.bf16.msra.mxu0 0
    %1430 = vmatprep.subr.bf16.mxu0 0
    %1431 = vmatpush1.bf16.msra.mxu0 0
    %1432 = vmatprep.subr.bf16.mxu0 0
    %1433 = vmatpush1.bf16.msra.mxu0 0
    %1434 = vmatprep.subr.bf16.mxu0 0
    %1435 = vmatpush1.bf16.msra.mxu0 0
    %1436 = vmatprep.subr.bf16.mxu0 0
    %1437 = vmatpush1.bf16.msra.mxu0 0
    %1438 = vmatprep.subr.bf16.mxu0 0
    %1439 = vmatpush1.bf16.msra.mxu0 %v1414
    %1440 = vmatprep.subr.bf16.mxu0 0
    %1441 = vmatpush1.bf16.msra.mxu0 %v1413
    %1442 = vmatprep.subr.bf16.mxu0 0
    %1443 = vmatpush2.bf16.msra.mxu0 0
    %1444 = vmatprep.subr.bf16.mxu0 0
    %1445 = vmatpush2.bf16.msra.mxu0 0
    %1446 = vmatprep.subr.bf16.mxu0 0
    %1447 = vmatpush2.bf16.msra.mxu0 0
    %1448 = vmatprep.subr.bf16.mxu0 0
    %1449 = vmatpush2.bf16.msra.mxu0 0
    %1450 = vmatprep.subr.bf16.mxu0 0
    %1451 = vmatpush2.bf16.msra.mxu0 0
    %1452 = vmatprep.subr.bf16.mxu0 0
    %1453 = vmatpush2.bf16.msra.mxu0 0
    %1454 = vmatprep.subr.bf16.mxu0 0
    %1455 = vmatpush2.bf16.msra.mxu0 0
    %1456 = vmatprep.subr.bf16.mxu0 0
    %1457 = vmatpush2.bf16.msra.mxu0 0
    %1458 = vmatprep.mubr.bf16.mxu0 0
    %1459 = vmatmul.mubr.bf16.gmra.mxu0 %v1418
    %v1460 = vpop.f32.mrf.mxu0
    %v1461 = vadd.f32 %v1388, %v1460
    %v1462 = vpop.f32.mrf.mxu0
    %v1463 = vpop.f32.mrf.mxu0
    %v1464 = vadd.f32 %v1388, %v1463
    %v1465 = vpop.f32.mrf.mxu0
    %1466 = vmatprep.mubr.bf16.mxu0 0
    %1467 = vmatmul.mubr.bf16.gmra.mxu0 %v1421
    %v1468 = vpop.f32.mrf.mxu0
    %v1469 = vadd.f32 %v1388, %v1468
    %v1470 = vpop.f32.mrf.mxu0
    %v1471 = vpop.f32.mrf.mxu0
    %v1472 = vadd.f32 %v1388, %v1471
    %v1473 = vpop.f32.mrf.mxu0
    %1474 = vmatprep.mubr.bf16.mxu0 0
    %1475 = vmatmul.mubr.bf16.gmra.mxu0 %v1424
    %v1476 = vpop.f32.mrf.mxu0
    %v1477 = vadd.f32 %v1388, %v1476
    %v1478 = vpop.f32.mrf.mxu0
    %v1479 = vpop.f32.mrf.mxu0
    %v1480 = vadd.f32 %v1388, %v1479
    %v1481 = vpop.f32.mrf.mxu0
    %1482 = vdwg.mxu0
    %v1483 = vld [vmem:[#allocation15] sm:$0x1]
    %v1484 = vld [vmem:[#allocation17] sm:$0x1]
    %v1485 = vsel %vm205, %v1461, 0.0
    %1486 = vadd.xlane.f32.xlu0 %v1485
    %v1487 = vpop.xlane.xlu0 %1486
    %v1488 = vsel %vm205, %v1464, 0.0
    %1489 = vadd.xlane.f32.xlu0 %v1488
    %v1490 = vpop.xlane.xlu0 %1489
    %v1491 = vsel %vm205, %v1469, 0.0
    %1492 = vadd.xlane.f32.xlu0 %v1491
    %v1493 = vpop.xlane.xlu0 %1492
    %v1494 = vsel %vm205, %v1472, 0.0
    %1495 = vadd.xlane.f32.xlu0 %v1494
    %v1496 = vpop.xlane.xlu0 %1495
    %v1497 = vsel %vm205, %v1477, 0.0
    %1498 = vadd.xlane.f32.xlu0 %v1497
    %v1499 = vpop.xlane.xlu0 %1498
    %v1500 = vsel %vm205, %v1480, 0.0
    %1501 = vadd.xlane.f32.xlu0 %v1500
    %v1502 = vpop.xlane.xlu0 %1501
    %v1503 = vrcp.pop 32.0
    %v1504 = vmul.f32 %v1487, %v1503
    %v1505 = vmul.f32 %v1490, %v1503
    %v1506 = vmul.f32 %v1493, %v1503
    %v1507 = vmul.f32 %v1496, %v1503
    %v1508 = vmul.f32 %v1499, %v1503
    %v1509 = vmul.f32 %v1502, %v1503
    %v1510 = vsub.f32 %v1461, %v1504
    %v1511 = vsub.f32 %v1464, %v1505
    %v1512 = vsub.f32 %v1469, %v1506
    %v1513 = vsub.f32 %v1472, %v1507
    %v1514 = vsub.f32 %v1477, %v1508
    %v1515 = vsub.f32 %v1480, %v1509
    %v1516 = vmul.f32 %v1510, %v1510
    %v1517 = vmul.f32 %v1511, %v1511
    %v1518 = vmul.f32 %v1512, %v1512
    %v1519 = vmul.f32 %v1513, %v1513
    %v1520 = vmul.f32 %v1514, %v1514
    %v1521 = vmul.f32 %v1515, %v1515
    %v1522 = vsel %vm205, %v1516, 0.0
    %1523 = vadd.xlane.f32.xlu0 %v1522
    %v1524 = vpop.xlane.xlu0 %1523
    %v1525 = vsel %vm205, %v1517, 0.0
    %1526 = vadd.xlane.f32.xlu0 %v1525
    %v1527 = vpop.xlane.xlu0 %1526
    %v1528 = vsel %vm205, %v1518, 0.0
    %1529 = vadd.xlane.f32.xlu0 %v1528
    %v1530 = vpop.xlane.xlu0 %1529
    %v1531 = vsel %vm205, %v1519, 0.0
    %1532 = vadd.xlane.f32.xlu0 %v1531
    %v1533 = vpop.xlane.xlu0 %1532
    %v1534 = vsel %vm205, %v1520, 0.0
    %1535 = vadd.xlane.f32.xlu0 %v1534
    %v1536 = vpop.xlane.xlu0 %1535
    %v1537 = vsel %vm205, %v1521, 0.0
    %1538 = vadd.xlane.f32.xlu0 %v1537
    %v1539 = vpop.xlane.xlu0 %1538
    %v1540 = vmul.f32 %v1524, %v1503
    %v1541 = vmul.f32 %v1527, %v1503
    %v1542 = vmul.f32 %v1530, %v1503
    %v1543 = vmul.f32 %v1533, %v1503
    %v1544 = vmul.f32 %v1536, %v1503
    %v1545 = vmul.f32 %v1539, %v1503
    %v1546 = vadd.f32 %v1540, 1e-05
    %v1547 = vadd.f32 %v1541, 1e-05
    %v1548 = vadd.f32 %v1542, 1e-05
    %v1549 = vadd.f32 %v1543, 1e-05
    %v1550 = vadd.f32 %v1544, 1e-05
    %v1551 = vadd.f32 %v1545, 1e-05
    %v1552 = vrsqrt.pop %v1546
    %v1553 = vrsqrt.pop %v1547
    %v1554 = vrsqrt.pop %v1548
    %v1555 = vrsqrt.pop %v1549
    %v1556 = vrsqrt.pop %v1550
    %v1557 = vrsqrt.pop %v1551
    %v1558 = vmul.f32 %v1510, %v1552
    %v1559 = vmul.f32 %v1511, %v1553
    %v1560 = vmul.f32 %v1512, %v1554
    %v1561 = vmul.f32 %v1513, %v1555
    %v1562 = vmul.f32 %v1514, %v1556
    %v1563 = vmul.f32 %v1515, %v1557
    %v1565 = vlaneseq
    %v1566 = vshrl.u32 %v1565, 7
    %v1567 = vsub.s32 0, %v1566
    %v1568 = vrot.slane %v1483, %v1567
    %v1570 = vmul.f32 %v1558, %v1568
    %v1571 = vmul.f32 %v1559, %v1568
    %v1572 = vmul.f32 %v1560, %v1568
    %v1573 = vmul.f32 %v1561, %v1568
    %v1574 = vmul.f32 %v1562, %v1568
    %v1575 = vmul.f32 %v1563, %v1568
    %v1577 = vlaneseq
    %v1578 = vshrl.u32 %v1577, 7
    %v1579 = vsub.s32 0, %v1578
    %v1580 = vrot.slane %v1484, %v1579
    %v1582 = vadd.f32 %v1570, %v1580
    %v1583 = vadd.f32 %v1571, %v1580
    %v1584 = vadd.f32 %v1572, %v1580
    %v1585 = vadd.f32 %v1573, %v1580
    %v1586 = vadd.f32 %v1574, %v1580
    %v1587 = vadd.f32 %v1575, %v1580
    %v1588 = vadd.f32 %v1582, %v1584
    %v1589 = vadd.f32 %v1583, %v1585
    %v1590 = vadd.f32 %v1588, %v1586
    %v1591 = vadd.f32 %v1589, %v1587
    %v1592 = vmul.f32 %v1590, 0.33333334
    %v1593 = vmul.f32 %v1591, 0.33333334
    %v1594 = vpack.c.bf16 %v1593, %v1592
    %v1595 = vld [vmem:[#allocation18] sm:$0xf]
    %v1596 = vld [vmem:[#allocation18 + $0x4] sm:$0xf]
    %v1597 = vld [vmem:[#allocation18 + $0x8] sm:$0xf]
    %v1598 = vld [vmem:[#allocation18 + $0xc] sm:$0xf]
    %v1599 = vld [vmem:[%s10] sm:$0x1]
    %v1601 = vlaneseq
    %v1602 = vshrl.u32 %v1601, 7
    %v1603 = vsub.s32 0, %v1602
    %v1604 = vrot.slane %v1599, %v1603
    %v1610 = vunpack.c.l.b16 %v1595
    %v1611 = vunpack.c.l.b16 %v1596
    %v1612 = vunpack.c.l.b16 %v1597
    %v1613 = vunpack.c.l.b16 %v1598
    %v1614 = vpack.c.b16 %v1611, %v1610
    %v1615 = vpack.c.b16 %v1613, %v1612
    %v1619 = vsel %vm205, %v1594, 0
    %1621 = vmatprep.subr.bf16.mxu0 0
    %1622 = vmatpush1.bf16.msra.mxu0 0
    %1623 = vmatprep.subr.bf16.mxu0 0
    %1624 = vmatpush1.bf16.msra.mxu0 0
    %1625 = vmatprep.subr.bf16.mxu0 0
    %1626 = vmatpush1.bf16.msra.mxu0 0
    %1627 = vmatprep.subr.bf16.mxu0 0
    %1628 = vmatpush1.bf16.msra.mxu0 0
    %1629 = vmatprep.subr.bf16.mxu0 0
    %1630 = vmatpush1.bf16.msra.mxu0 0
    %1631 = vmatprep.subr.bf16.mxu0 0
    %1632 = vmatpush1.bf16.msra.mxu0 0
    %1633 = vmatprep.subr.bf16.mxu0 0
    %1634 = vmatpush1.bf16.msra.mxu0 %v1615
    %1635 = vmatprep.subr.bf16.mxu0 0
    %1636 = vmatpush1.bf16.msra.mxu0 %v1614
    %1637 = vmatprep.subr.bf16.mxu0 0
    %1638 = vmatpush2.bf16.msra.mxu0 0
    %1639 = vmatprep.subr.bf16.mxu0 0
    %1640 = vmatpush2.bf16.msra.mxu0 0
    %1641 = vmatprep.subr.bf16.mxu0 0
    %1642 = vmatpush2.bf16.msra.mxu0 0
    %1643 = vmatprep.subr.bf16.mxu0 0
    %1644 = vmatpush2.bf16.msra.mxu0 0
    %1645 = vmatprep.subr.bf16.mxu0 0
    %1646 = vmatpush2.bf16.msra.mxu0 0
    %1647 = vmatprep.subr.bf16.mxu0 0
    %1648 = vmatpush2.bf16.msra.mxu0 0
    %1649 = vmatprep.subr.bf16.mxu0 0
    %1650 = vmatpush2.bf16.msra.mxu0 0
    %1651 = vmatprep.subr.bf16.mxu0 0
    %1652 = vmatpush2.bf16.msra.mxu0 0
    %1653 = vmatprep.mubr.bf16.mxu0 0
    %1654 = vmatmul.mubr.bf16.gmra.mxu0 %v1619
    %v1655 = vpop.f32.mrf.mxu0
    %v1656 = vadd.f32 %v1604, %v1655
    %v1657 = vpop.f32.mrf.mxu0
    %v1658 = vpop.f32.mrf.mxu0
    %v1659 = vadd.f32 %v1604, %v1658
    %v1660 = vpop.f32.mrf.mxu0
    %1661 = vdwg.mxu0
    %v1662 = vmul.f32 %v1656, 0.5
    %v1663 = vmul.f32 %v1659, 0.5
    %v1664 = vmul.f32 %v1656, 0.70710677
    %v1665 = vmul.f32 %v1659, 0.70710677
    %vm1666 = vcmp.lt.f32.partialorder %v1664, 0.0
    %vm1667 = vcmp.lt.f32.partialorder %v1665, 0.0
    %v1668 = vsel %vm1666, -1.0, 1.0
    %v1669 = vsel %vm1667, -1.0, 1.0
    %v1670 = vand.u32 2147483647, %v1664
    %v1671 = vand.u32 2147483647, %v1665
    %v1672 = vmul.f32 %v1670, 0.3275911
    %v1673 = vmul.f32 %v1671, 0.3275911
    %v1674 = vadd.f32 %v1672, 1.0
    %v1675 = vadd.f32 %v1673, 1.0
    %v1676 = vrcp.pop %v1674
    %v1677 = vrcp.pop %v1675
    %v1678 = vmul.f32 %v1676, 1.0614054
    %v1679 = vmul.f32 %v1677, 1.0614054
    %v1680 = vadd.f32 %v1678, -1.4531521
    %v1681 = vadd.f32 %v1679, -1.4531521
    %v1682 = vmul.f32 %v1680, %v1676
    %v1683 = vmul.f32 %v1681, %v1677
    %v1684 = vadd.f32 %v1682, 1.4214138
    %v1685 = vadd.f32 %v1683, 1.4214138
    %v1686 = vmul.f32 %v1684, %v1676
    %v1687 = vmul.f32 %v1685, %v1677
    %v1688 = vadd.f32 %v1686, -0.28449672
    %v1689 = vadd.f32 %v1687, -0.28449672
    %v1690 = vmul.f32 %v1688, %v1676
    %v1691 = vmul.f32 %v1689, %v1677
    %v1692 = vadd.f32 %v1690, 0.2548296
    %v1693 = vadd.f32 %v1691, 0.2548296
    %v1694 = vmul.f32 %v1692, %v1676
    %v1695 = vmul.f32 %v1693, %v1677
    %v1696 = vsub.f32 0.0, %v1670
    %v1697 = vsub.f32 0.0, %v1671
    %v1698 = vmul.f32 %v1696, %v1670
    %v1699 = vmul.f32 %v1697, %v1671
    %v1700 = vmul.f32 %v1698, 1.442695
    %v1701 = vpow.pop %v1700
    %v1702 = vmul.f32 %v1699, 1.442695
    %v1703 = vpow.pop %v1702
    %v1704 = vmul.f32 %v1694, %v1701
    %v1705 = vmul.f32 %v1695, %v1703
    %v1706 = vsub.f32 1.0, %v1704
    %v1707 = vsub.f32 1.0, %v1705
    %v1708 = vmul.f32 %v1668, %v1706
    %v1709 = vmul.f32 %v1669, %v1707
    %v1710 = vadd.f32 %v1708, 1.0
    %v1711 = vadd.f32 %v1709, 1.0
    %v1712 = vmul.f32 %v1662, %v1710
    %v1713 = vmul.f32 %v1663, %v1711
    %1714 = vst [vmem:[#allocation20] sm:$0xff] %v1712
    %1715 = vst [vmem:[#allocation20 + $0x8] sm:$0xff] %v1713
    // Predicated region
    $region86: #{tpu_custom_call.1} parent=1 // pred_check
      _
    $region87: #{tpu_custom_call.1} parent=1 // pred_check_branch
      %1717 = sbr.rel (0) target = $region89
    $region88: #{tpu_custom_call.1} parent=1 // pred_region
      %s1719 = ssub.s32 256, 256
      %1720 = vsyncadd [#allocation8], %s1719
      %s1721 = sshll.u32 [#allocation20], 4
      %s1722 = int_to_ptr.vmem [resolvable:$true] %s1721
      %1727 = dma.vmem_to_hbm [thread:$0]  %s1722, 256, %s13, [#allocation8], 128, 128, 8
    $region89: #{tpu_custom_call.1} parent=1 // pred_fallthru
      _
    // Predicated region
    $region90: #{tpu_custom_call.1} parent=1 // pred_check
      _
    $region91: #{tpu_custom_call.1} parent=1 // pred_check_branch
      %1729 = sbr.rel (0) target = $region93
    $region92: #{tpu_custom_call.1} parent=1 // pred_region
      %1730 = dma.done [#allocation8], 256
    $region93: #{tpu_custom_call.1} parent=1 // pred_fallthru
      _
    %1731 = vsyncpa [#allocation7], 1
    %1732 = vsyncpa [#allocation10], 1
    %1733 = vsyncpa [#allocation13], 1
    %1734 = vsyncpa [#allocation16], 1
    %1735 = vsyncpa [#allocation19], 1
    %1736 = vsyncpa [#allocation8], 1

// kernel: tpu_custom_call.1
$region0: #{tpu_custom_call.1}
  #allocation0 [shape = 'u32[]', space=smem, size = 0x4, offset = 0x4, fixed_abs, tag = 'smem constant byte address 0x4 - core index']
  #allocation1 [shape = 'u32[144,128]{1,0:T(1,128)}', space=vmem, size = 0x12000, scoped, tag = 'internal scratch']
  #allocation2 [shape = 'bf16[48,32]{1,0:T(8,128)(2,1)}', space=vmem, size = 0x3000, scoped, tag = 'scratch operand']
  #allocation3 [shape = 'bf16[144,32]{1,0:T(8,128)(2,1)}', space=vmem, size = 0x9000, scoped, tag = 'scratch operand']
  #allocation4 [shape = 'bf16[144,16]{1,0:T(8,128)(2,1)}', space=vmem, size = 0x9000, scoped, tag = 'scratch operand']
  #allocation5 [shape = 'bf16[48,32]{1,0:T(8,128)(2,1)}', space=vmem, size = 0x3000, scoped, tag = 'scratch operand']
  %s0 = inlined_call_operand.vmem [shape: f32[16,32], index: 0, kind: input, shape index: {}]
  %s1 = inlined_call_operand.hbm [shape: bf16[32,384], index: 1, kind: input, shape index: {}]
  %s2 = inlined_call_operand.hbm [shape: f32[1,384], index: 2, kind: input, shape index: {}]
  %s3 = inlined_call_operand.hbm [shape: bf16[32,384], index: 3, kind: input, shape index: {}]
  %s4 = inlined_call_operand.hbm [shape: f32[1,384], index: 4, kind: input, shape index: {}]
  %s5 = inlined_call_operand.vmem [shape: bf16[32,32], index: 5, kind: input, shape index: {}]
  %s6 = inlined_call_operand.hbm [shape: f32[1,32], index: 6, kind: input, shape index: {}]
  %s7 = inlined_call_operand.hbm [shape: f32[1,32], index: 7, kind: input, shape index: {}]
  %s8 = inlined_call_operand.hbm [shape: f32[1,32], index: 8, kind: input, shape index: {}]
  %s9 = inlined_call_operand.hbm [shape: bf16[32,128], index: 9, kind: input, shape index: {}]
  %s10 = inlined_call_operand.vmem [shape: f32[1,128], index: 10, kind: input, shape index: {}]
  %s11 = inlined_call_operand.vmem [shape: bf16[32,16], index: 11, kind: input, shape index: {}]
  %s12 = inlined_call_operand.vmem [shape: bf16[16,32], index: 12, kind: input, shape index: {}]
  %s13 = inlined_call_operand.hbm [shape: f32[16,128], index: 13, kind: output, shape index: {}]
  %s14 = sld [smem:[#allocation0]]
  $region94: #{tpu_custom_call.1} parent=0
    _
  %s16 = ssub.s32 1, %s14
  %s17 = scalar_select 0, %s16, %s14
  $region1: #{tpu_custom_call.1} parent=0
    #allocation6 [shape = 'u8[24576]{0}', space=vmem, size = 0x6000, scoped, tag = 'input window, operand 1, single buffered']
    #allocation7 [shape = 's32[1]{0}', space=sflag, size = 0x4, scoped, tag = 'scoped memory for tpu_custom_call.1']
    #allocation8 [shape = 's32[1]{0}', space=sflag, size = 0x4, scoped, tag = 'scoped memory for tpu_custom_call.1']
    #allocation9 [shape = 'u8[1536]{0}', space=vmem, size = 0x800, scoped, tag = 'input window, operand 2, single buffered']
    #allocation10 [shape = 's32[1]{0}', space=sflag, size = 0x4, scoped, tag = 'scoped memory for tpu_custom_call.1']
    #allocation11 [shape = 'u8[24576]{0}', space=vmem, size = 0x6000, scoped, tag = 'input window, operand 3, single buffered']
    #allocation12 [shape = 'u8[1536]{0}', space=vmem, size = 0x800, scoped, tag = 'input window, operand 4, single buffered']
    #allocation13 [shape = 's32[1]{0}', space=sflag, size = 0x4, scoped, tag = 'scoped memory for tpu_custom_call.1']
    #allocation14 [shape = 'u8[512]{0}', space=vmem, size = 0x400, scoped, tag = 'input window, operand 6, single buffered']
    #allocation15 [shape = 'u8[512]{0}', space=vmem, size = 0x400, scoped, tag = 'input window, operand 7, single buffered']
    #allocation16 [shape = 's32[1]{0}', space=sflag, size = 0x4, scoped, tag = 'scoped memory for tpu_custom_call.1']
    #allocation17 [shape = 'u8[512]{0}', space=vmem, size = 0x400, scoped, tag = 'input window, operand 8, single buffered']
    #allocation18 [shape = 'u8[8192]{0}', space=vmem, size = 0x2000, scoped, tag = 'input window, operand 9, single buffered']
    #allocation19 [shape = 's32[1]{0}', space=sflag, size = 0x4, scoped, tag = 'scoped memory for tpu_custom_call.1']
    #allocation20 [shape = 'u8[8192]{0}', space=vmem, size = 0x2000, scoped, tag = 'output window, operand 0, single buffered']
    %18 = vsyncpa [#allocation7], 0
    %19 = vsyncpa [#allocation10], 0
    %20 = vsyncpa [#allocation13], 0
    %21 = vsyncpa [#allocation16], 0
    %22 = vsyncpa [#allocation19], 0
    %23 = vsyncpa [#allocation8], 0
    // Predicated region
    $region2: #{tpu_custom_call.1} parent=1 // pred_check
      _
    $region3: #{tpu_custom_call.1} parent=1 // pred_check_branch
      %25 = sbr.rel (0) target = $region5
    $region4: #{tpu_custom_call.1} parent=1 // pred_region
      _
    $region5: #{tpu_custom_call.1} parent=1 // pred_fallthru
      _
    // Predicated region
    $region6: #{tpu_custom_call.1} parent=1 // pred_check
      _
    $region7: #{tpu_custom_call.1} parent=1 // pred_check_branch
      %27 = sbr.rel (0) target = $region9
    $region8: #{tpu_custom_call.1} parent=1 // pred_region
      %s29 = ssub.s32 768, 768
      %30 = vsyncadd [#allocation7], %s29
      %s31 = sshll.u32 [#allocation6], 4
      %s32 = int_to_ptr.vmem [resolvable:$true] %s31
      %37 = dma.hbm_to_vmem [thread:$0]  %s1, 768, %s32, [#allocation7], 192, 192, 12
    $region9: #{tpu_custom_call.1} parent=1 // pred_fallthru
      _
    // Predicated region
    $region10: #{tpu_custom_call.1} parent=1 // pred_check
      _
    $region11: #{tpu_custom_call.1} parent=1 // pred_check_branch
      %39 = sbr.rel (0) target = $region13
    $region12: #{tpu_custom_call.1} parent=1 // pred_region
      %s41 = ssub.s32 48, 48
      %42 = vsyncadd [#allocation10], %s41
      %s44 = sshll.u32 [#allocation9], 4
      %s45 = int_to_ptr.vmem [resolvable:$true] %s44
      %47 = dma.hbm_to_vmem [thread:$0]  %s2, 48, %s45, [#allocation10]
    $region13: #{tpu_custom_call.1} parent=1 // pred_fallthru
      _
    // Predicated region
    $region14: #{tpu_custom_call.1} parent=1 // pred_check
      _
    $region15: #{tpu_custom_call.1} parent=1 // pred_check_branch
      %49 = sbr.rel (0) target = $region17
    $region16: #{tpu_custom_call.1} parent=1 // pred_region
      %s51 = ssub.s32 768, 768
      %52 = vsyncadd [#allocation10], %s51
      %s53 = sshll.u32 [#allocation11], 4
      %s54 = int_to_ptr.vmem [resolvable:$true] %s53
      %59 = dma.hbm_to_vmem [thread:$0]  %s3, 768, %s54, [#allocation10], 192, 192, 12
    $region17: #{tpu_custom_call.1} parent=1 // pred_fallthru
      _
    // Predicated region
    $region18: #{tpu_custom_call.1} parent=1 // pred_check
      _
    $region19: #{tpu_custom_call.1} parent=1 // pred_check_branch
      %61 = sbr.rel (0) target = $region21
    $region20: #{tpu_custom_call.1} parent=1 // pred_region
      %s63 = ssub.s32 48, 48
      %64 = vsyncadd [#allocation13], %s63
      %s66 = sshll.u32 [#allocation12], 4
      %s67 = int_to_ptr.vmem [resolvable:$true] %s66
      %69 = dma.hbm_to_vmem [thread:$0]  %s4, 48, %s67, [#allocation13]
    $region21: #{tpu_custom_call.1} parent=1 // pred_fallthru
      _
    // Predicated region
    $region22: #{tpu_custom_call.1} parent=1 // pred_check
      _
    $region23: #{tpu_custom_call.1} parent=1 // pred_check_branch
      %71 = sbr.rel (0) target = $region25
    $region24: #{tpu_custom_call.1} parent=1 // pred_region
      _
    $region25: #{tpu_custom_call.1} parent=1 // pred_fallthru
      _
    // Predicated region
    $region26: #{tpu_custom_call.1} parent=1 // pred_check
      _
    $region27: #{tpu_custom_call.1} parent=1 // pred_check_branch
      %73 = sbr.rel (0) target = $region29
    $region28: #{tpu_custom_call.1} parent=1 // pred_region
      %s75 = ssub.s32 16, 16
      %76 = vsyncadd [#allocation13], %s75
      %s78 = sshll.u32 [#allocation14], 4
      %s79 = int_to_ptr.vmem [resolvable:$true] %s78
      %81 = dma.hbm_to_vmem [thread:$0]  %s6, 16, %s79, [#allocation13]
    $region29: #{tpu_custom_call.1} parent=1 // pred_fallthru
      _
    // Predicated region
    $region30: #{tpu_custom_call.1} parent=1 // pred_check
      _
    $region31: #{tpu_custom_call.1} parent=1 // pred_check_branch
      %83 = sbr.rel (0) target = $region33
    $region32: #{tpu_custom_call.1} parent=1 // pred_region
      %s85 = ssub.s32 16, 16
      %86 = vsyncadd [#allocation16], %s85
      %s88 = sshll.u32 [#allocation15], 4
      %s89 = int_to_ptr.vmem [resolvable:$true] %s88
      %91 = dma.hbm_to_vmem [thread:$0]  %s7, 16, %s89, [#allocation16]
    $region33: #{tpu_custom_call.1} parent=1 // pred_fallthru
      _
    // Predicated region
    $region34: #{tpu_custom_call.1} parent=1 // pred_check
      _
    $region35: #{tpu_custom_call.1} parent=1 // pred_check_branch
      %93 = sbr.rel (0) target = $region37
    $region36: #{tpu_custom_call.1} parent=1 // pred_region
      %s95 = ssub.s32 16, 16
      %96 = vsyncadd [#allocation16], %s95
      %s98 = sshll.u32 [#allocation17], 4
      %s99 = int_to_ptr.vmem [resolvable:$true] %s98
      %101 = dma.hbm_to_vmem [thread:$0]  %s8, 16, %s99, [#allocation16]
    $region37: #{tpu_custom_call.1} parent=1 // pred_fallthru
      _
    // Predicated region
    $region38: #{tpu_custom_call.1} parent=1 // pred_check
      _
    $region39: #{tpu_custom_call.1} parent=1 // pred_check_branch
      %103 = sbr.rel (0) target = $region41
    $region40: #{tpu_custom_call.1} parent=1 // pred_region
      %s105 = ssub.s32 256, 256
      %106 = vsyncadd [#allocation19], %s105
      %s107 = sshll.u32 [#allocation18], 4
      %s108 = int_to_ptr.vmem [resolvable:$true] %s107
      %113 = dma.hbm_to_vmem [thread:$0]  %s9, 256, %s108, [#allocation19], 64, 64, 4
    $region41: #{tpu_custom_call.1} parent=1 // pred_fallthru
      _
    // Predicated region
    $region42: #{tpu_custom_call.1} parent=1 // pred_check
      _
    $region43: #{tpu_custom_call.1} parent=1 // pred_check_branch
      %115 = sbr.rel (0) target = $region45
    $region44: #{tpu_custom_call.1} parent=1 // pred_region
      _
    $region45: #{tpu_custom_call.1} parent=1 // pred_fallthru
      _
    // Predicated region
    $region46: #{tpu_custom_call.1} parent=1 // pred_check
      _
    $region47: #{tpu_custom_call.1} parent=1 // pred_check_branch
      %117 = sbr.rel (0) target = $region49
    $region48: #{tpu_custom_call.1} parent=1 // pred_region
      _
    $region49: #{tpu_custom_call.1} parent=1 // pred_fallthru
      _
    // Predicated region
    $region50: #{tpu_custom_call.1} parent=1 // pred_check
      _
    $region51: #{tpu_custom_call.1} parent=1 // pred_check_branch
      %119 = sbr.rel (0) target = $region53
    $region52: #{tpu_custom_call.1} parent=1 // pred_region
      _
    $region53: #{tpu_custom_call.1} parent=1 // pred_fallthru
      _
    // Predicated region
    $region54: #{tpu_custom_call.1} parent=1 // pred_check
      _
    $region55: #{tpu_custom_call.1} parent=1 // pred_check_branch
      %121 = sbr.rel (0) target = $region57
    $region56: #{tpu_custom_call.1} parent=1 // pred_region
      %122 = dma.done [#allocation7], 768
    $region57: #{tpu_custom_call.1} parent=1 // pred_fallthru
      _
    // Predicated region
    $region58: #{tpu_custom_call.1} parent=1 // pred_check
      _
    $region59: #{tpu_custom_call.1} parent=1 // pred_check_branch
      %124 = sbr.rel (0) target = $region61
    $region60: #{tpu_custom_call.1} parent=1 // pred_region
      %125 = dma.done [#allocation10], 48
    $region61: #{tpu_custom_call.1} parent=1 // pred_fallthru
      _
    // Predicated region
    $region62: #{tpu_custom_call.1} parent=1 // pred_check
      _
    $region63: #{tpu_custom_call.1} parent=1 // pred_check_branch
      %127 = sbr.rel (0) target = $region65
    $region64: #{tpu_custom_call.1} parent=1 // pred_region
      %128 = dma.done [#allocation10], 768
    $region65: #{tpu_custom_call.1} parent=1 // pred_fallthru
      _
    // Predicated region
    $region66: #{tpu_custom_call.1} parent=1 // pred_check
      _
    $region67: #{tpu_custom_call.1} parent=1 // pred_check_branch
      %130 = sbr.rel (0) target = $region69
    $region68: #{tpu_custom_call.1} parent=1 // pred_region
      %131 = dma.done [#allocation13], 48
    $region69: #{tpu_custom_call.1} parent=1 // pred_fallthru
      _
    // Predicated region
    $region70: #{tpu_custom_call.1} parent=1 // pred_check
      _
    $region71: #{tpu_custom_call.1} parent=1 // pred_check_branch
      %133 = sbr.rel (0) target = $region73
    $region72: #{tpu_custom_call.1} parent=1 // pred_region
      %134 = dma.done [#allocation13], 16
    $region73: #{tpu_custom_call.1} parent=1 // pred_fallthru
      _
    // Predicated region
    $region74: #{tpu_custom_call.1} parent=1 // pred_check
      _
    $region75: #{tpu_custom_call.1} parent=1 // pred_check_branch
      %136 = sbr.rel (0) target = $region77
    $region76: #{tpu_custom_call.1} parent=1 // pred_region
      %137 = dma.done [#allocation16], 16
    $region77: #{tpu_custom_call.1} parent=1 // pred_fallthru
      _
    // Predicated region
    $region78: #{tpu_custom_call.1} parent=1 // pred_check
      _
    $region79: #{tpu_custom_call.1} parent=1 // pred_check_branch
      %139 = sbr.rel (0) target = $region81
    $region80: #{tpu_custom_call.1} parent=1 // pred_region
      %140 = dma.done [#allocation16], 16
    $region81: #{tpu_custom_call.1} parent=1 // pred_fallthru
      _
    // Predicated region
    $region82: #{tpu_custom_call.1} parent=1 // pred_check
      _
    $region83: #{tpu_custom_call.1} parent=1 // pred_check_branch
      %142 = sbr.rel (0) target = $region85
    $region84: #{tpu_custom_call.1} parent=1 // pred_region
      %143 = dma.done [#allocation19], 256
    $region85: #{tpu_custom_call.1} parent=1 // pred_fallthru
      _
    %v145 = vld [vmem:[%s0] sm:$0xff]
    %v146 = vld [vmem:[%s0 + $0x8] sm:$0xff]
    %v147 = vpack.c.bf16 %v146, %v145
    %v148 = vld [vmem:[#allocation6] sm:$0xff]
    %v149 = vld [vmem:[#allocation6 + $0x8] sm:$0xf]
    %v150 = vld [vmem:[#allocation6 + $0xc] sm:$0xff]
    %v151 = vld [vmem:[#allocation6 + $0x14] sm:$0xf]
    %v152 = vld [vmem:[#allocation6 + $0x18] sm:$0xff]
    %v153 = vld [vmem:[#allocation6 + $0x20] sm:$0xf]
    %v154 = vld [vmem:[#allocation6 + $0x24] sm:$0xff]
    %v155 = vld [vmem:[#allocation6 + $0x2c] sm:$0xf]
    %v156 = vld [vmem:[#allocation9] sm:$0x7]
    %v158 = vlaneseq
    %v159 = vshrl.u32 %v158, 7
    %v160 = vsub.s32 0, %v159
    %v161 = vrot.slane %v156, %v160
    %v162 = vlaneseq
    %v163 = vshrl.u32 %v162, 7
    %v164 = vsub.s32 1, %v163
    %v165 = vrot.slane %v156, %v164
    %v166 = vlaneseq
    %v167 = vshrl.u32 %v166, 7
    %v168 = vsub.s32 2, %v167
    %v169 = vrot.slane %v156, %v168
    %v181 = vunpack.c.l.b16 %v148
    %v182 = vunpack.c.h.b16 %v148
    %v183 = vunpack.c.l.b16 %v149
    %v184 = vunpack.c.l.b16 %v150
    %v185 = vunpack.c.h.b16 %v150
    %v186 = vunpack.c.l.b16 %v151
    %v187 = vunpack.c.l.b16 %v152
    %v188 = vunpack.c.h.b16 %v152
    %v189 = vunpack.c.l.b16 %v153
    %v190 = vunpack.c.l.b16 %v154
    %v191 = vunpack.c.h.b16 %v154
    %v192 = vunpack.c.l.b16 %v155
    %v193 = vpack.c.b16 %v184, %v181
    %v194 = vpack.c.b16 %v185, %v182
    %v195 = vpack.c.b16 %v186, %v183
    %v196 = vpack.c.b16 %v190, %v187
    %v197 = vpack.c.b16 %v191, %v188
    %v198 = vpack.c.b16 %v192, %v189
    %vm205 = vcmask 261120
    %v207 = vsel %vm205, %v147, 0
    %209 = vmatprep.subr.bf16.mxu0 0
    %210 = vmatpush1.bf16.msra.mxu0 0
    %211 = vmatprep.subr.bf16.mxu0 0
    %212 = vmatpush1.bf16.msra.mxu0 0
    %213 = vmatprep.subr.bf16.mxu0 0
    %214 = vmatpush1.bf16.msra.mxu0 0
    %215 = vmatprep.subr.bf16.mxu0 0
    %216 = vmatpush1.bf16.msra.mxu0 0
    %217 = vmatprep.subr.bf16.mxu0 0
    %218 = vmatpush1.bf16.msra.mxu0 0
    %219 = vmatprep.subr.bf16.mxu0 0
    %220 = vmatpush1.bf16.msra.mxu0 0
    %221 = vmatprep.subr.bf16.mxu0 %v197
    %222 = vmatpush1.bf16.msra.mxu0 %v196
    %223 = vmatprep.subr.bf16.mxu0 %v194
    %224 = vmatpush1.bf16.msra.mxu0 %v193
    %225 = vmatprep.subr.bf16.mxu0 0
    %226 = vmatpush2.bf16.msra.mxu0 0
    %227 = vmatprep.subr.bf16.mxu0 0
    %228 = vmatpush2.bf16.msra.mxu0 0
    %229 = vmatprep.subr.bf16.mxu0 0
    %230 = vmatpush2.bf16.msra.mxu0 0
    %231 = vmatprep.subr.bf16.mxu0 0
    %232 = vmatpush2.bf16.msra.mxu0 0
    %233 = vmatprep.subr.bf16.mxu0 0
    %234 = vmatpush2.bf16.msra.mxu0 0
    %235 = vmatprep.subr.bf16.mxu0 0
    %236 = vmatpush2.bf16.msra.mxu0 0
    %237 = vmatprep.subr.bf16.mxu0 0
    %238 = vmatpush2.bf16.msra.mxu0 0
    %239 = vmatprep.subr.bf16.mxu0 0
    %240 = vmatpush2.bf16.msra.mxu0 0
    %241 = vmatprep.mubr.bf16.mxu0 0
    %242 = vmatmul.mubr.bf16.gmra.mxu0 %v207
    %v243 = vpop.f32.mrf.mxu0
    %v244 = vadd.f32 %v161, %v243
    %v245 = vpop.f32.mrf.mxu0
    %v246 = vadd.f32 %v165, %v245
    %v247 = vpop.f32.mrf.mxu0
    %v248 = vadd.f32 %v161, %v247
    %v249 = vpop.f32.mrf.mxu0
    %v250 = vadd.f32 %v165, %v249
    %251 = vdwg.mxu0
    %252 = vmatprep.subr.bf16.mxu0 0
    %253 = vmatpush1.bf16.msra.mxu0 0
    %254 = vmatprep.subr.bf16.mxu0 0
    %255 = vmatpush1.bf16.msra.mxu0 0
    %256 = vmatprep.subr.bf16.mxu0 0
    %257 = vmatpush1.bf16.msra.mxu0 0
    %258 = vmatprep.subr.bf16.mxu0 0
    %259 = vmatpush1.bf16.msra.mxu0 0
    %260 = vmatprep.subr.bf16.mxu0 0
    %261 = vmatpush1.bf16.msra.mxu0 0
    %262 = vmatprep.subr.bf16.mxu0 0
    %263 = vmatpush1.bf16.msra.mxu0 0
    %264 = vmatprep.subr.bf16.mxu0 0
    %265 = vmatpush1.bf16.msra.mxu0 %v198
    %266 = vmatprep.subr.bf16.mxu0 0
    %267 = vmatpush1.bf16.msra.mxu0 %v195
    %268 = vmatprep.subr.bf16.mxu0 0
    %269 = vmatpush2.bf16.msra.mxu0 0
    %270 = vmatprep.subr.bf16.mxu0 0
    %271 = vmatpush2.bf16.msra.mxu0 0
    %272 = vmatprep.subr.bf16.mxu0 0
    %273 = vmatpush2.bf16.msra.mxu0 0
    %274 = vmatprep.subr.bf16.mxu0 0
    %275 = vmatpush2.bf16.msra.mxu0 0
    %276 = vmatprep.subr.bf16.mxu0 0
    %277 = vmatpush2.bf16.msra.mxu0 0
    %278 = vmatprep.subr.bf16.mxu0 0
    %279 = vmatpush2.bf16.msra.mxu0 0
    %280 = vmatprep.subr.bf16.mxu0 0
    %281 = vmatpush2.bf16.msra.mxu0 0
    %282 = vmatprep.subr.bf16.mxu0 0
    %283 = vmatpush2.bf16.msra.mxu0 0
    %284 = vmatprep.mubr.bf16.mxu0 0
    %285 = vmatmul.mubr.bf16.gmra.mxu0 %v207
    %v286 = vpop.f32.mrf.mxu0
    %v287 = vadd.f32 %v169, %v286
    %v288 = vpop.f32.mrf.mxu0
    %v289 = vpop.f32.mrf.mxu0
    %v290 = vadd.f32 %v169, %v289
    %v291 = vpop.f32.mrf.mxu0
    %292 = vdwg.mxu0
    %v293 = vmul.f32 %v244, 0.5
    %v294 = vmul.f32 %v248, 0.5
    %v295 = vmul.f32 %v244, 0.70710677
    %v296 = vmul.f32 %v248, 0.70710677
    %vm297 = vcmp.lt.f32.partialorder %v295, 0.0
    %vm298 = vcmp.lt.f32.partialorder %v296, 0.0
    %v299 = vsel %vm297, -1.0, 1.0
    %v300 = vsel %vm298, -1.0, 1.0
    %v301 = vand.u32 2147483647, %v295
    %v302 = vand.u32 2147483647, %v296
    %v303 = vmul.f32 %v301, 0.3275911
    %v304 = vmul.f32 %v302, 0.3275911
    %v305 = vadd.f32 %v303, 1.0
    %v306 = vadd.f32 %v304, 1.0
    %v307 = vrcp.pop %v305
    %v308 = vrcp.pop %v306
    %v309 = vmul.f32 %v307, 1.0614054
    %v310 = vmul.f32 %v308, 1.0614054
    %v311 = vadd.f32 %v309, -1.4531521
    %v312 = vadd.f32 %v310, -1.4531521
    %v313 = vmul.f32 %v311, %v307
    %v314 = vmul.f32 %v312, %v308
    %v315 = vadd.f32 %v313, 1.4214138
    %v316 = vadd.f32 %v314, 1.4214138
    %v317 = vmul.f32 %v315, %v307
    %v318 = vmul.f32 %v316, %v308
    %v319 = vadd.f32 %v317, -0.28449672
    %v320 = vadd.f32 %v318, -0.28449672
    %v321 = vmul.f32 %v319, %v307
    %v322 = vmul.f32 %v320, %v308
    %v323 = vadd.f32 %v321, 0.2548296
    %v324 = vadd.f32 %v322, 0.2548296
    %v325 = vmul.f32 %v323, %v307
    %v326 = vmul.f32 %v324, %v308
    %v327 = vsub.f32 0.0, %v301
    %v328 = vsub.f32 0.0, %v302
    %v329 = vmul.f32 %v327, %v301
    %v330 = vmul.f32 %v328, %v302
    %v331 = vmul.f32 %v329, 1.442695
    %v332 = vpow.pop %v331
    %v333 = vmul.f32 %v330, 1.442695
    %v334 = vpow.pop %v333
    %v335 = vmul.f32 %v325, %v332
    %v336 = vmul.f32 %v326, %v334
    %v337 = vsub.f32 1.0, %v335
    %v338 = vsub.f32 1.0, %v336
    %v339 = vmul.f32 %v299, %v337
    %v340 = vmul.f32 %v300, %v338
    %v341 = vadd.f32 %v339, 1.0
    %v342 = vadd.f32 %v340, 1.0
    %v343 = vmul.f32 %v293, %v341
    %v344 = vmul.f32 %v294, %v342
    %v345 = vpack.c.bf16 %v344, %v343
    %v347 = vunpack.c.l.b16 %v345
    %v348 = vunpack.c.h.b16 %v345
    %v349 = vpack.c.b16 %v347, %v347
    %v350 = vpack.c.b16 %v348, %v348
    %vm353 = vcmask 257024
    %354 = vst.msk [vmem:[#allocation2] sm:$0xf] %vm353, %v349
    %355 = vst.msk [vmem:[#allocation2 + $0x4] sm:$0xf] %vm353, %v350
    %v356 = vsub.f32 0.0, %v246
    %v357 = vsub.f32 0.0, %v250
    %v358 = vmul.f32 %v356, 1.442695
    %v359 = vpow.pop %v358
    %v360 = vmul.f32 %v357, 1.442695
    %v361 = vpow.pop %v360
    %v362 = vadd.f32 %v359, 1.0
    %v363 = vadd.f32 %v361, 1.0
    %v364 = vrcp.pop %v362
    %v365 = vrcp.pop %v363
    %v366 = vmul.f32 %v246, %v364
    %v367 = vmul.f32 %v250, %v365
    %v368 = vpack.c.bf16 %v367, %v366
    %v370 = vunpack.c.l.b16 %v368
    %v371 = vunpack.c.h.b16 %v368
    %v372 = vpack.c.b16 %v370, %v370
    %v373 = vpack.c.b16 %v371, %v371
    %376 = vst.msk [vmem:[#allocation2 + $0x8] sm:$0xf] %vm353, %v372
    %377 = vst.msk [vmem:[#allocation2 + $0xc] sm:$0xf] %vm353, %v373
    %v378 = vtanh.pop %v287
    %v379 = vtanh.pop %v290
    %v380 = vpack.c.bf16 %v379, %v378
    %v382 = vunpack.c.l.b16 %v380
    %v383 = vunpack.c.h.b16 %v380
    %v384 = vpack.c.b16 %v382, %v382
    %v385 = vpack.c.b16 %v383, %v383
    %388 = vst.msk [vmem:[#allocation2 + $0x10] sm:$0xf] %vm353, %v384
    %389 = vst.msk [vmem:[#allocation2 + $0x14] sm:$0xf] %vm353, %v385
    %v390 = vld [vmem:[#allocation2] sm:$0xf]
    %v391 = vld [vmem:[#allocation2 + $0x4] sm:$0xf]
    %v392 = vld [vmem:[#allocation2 + $0x8] sm:$0xf]
    %v393 = vld [vmem:[#allocation2 + $0xc] sm:$0xf]
    %v394 = vld [vmem:[#allocation2 + $0x10] sm:$0xf]
    %v395 = vld [vmem:[#allocation2 + $0x14] sm:$0xf]
    %v396 = vld [vmem:[#allocation11] sm:$0xff]
    %v397 = vld [vmem:[#allocation11 + $0x8] sm:$0xf]
    %v398 = vld [vmem:[#allocation11 + $0xc] sm:$0xff]
    %v399 = vld [vmem:[#allocation11 + $0x14] sm:$0xf]
    %v400 = vld [vmem:[#allocation11 + $0x18] sm:$0xff]
    %v401 = vld [vmem:[#allocation11 + $0x20] sm:$0xf]
    %v402 = vld [vmem:[#allocation11 + $0x24] sm:$0xff]
    %v403 = vld [vmem:[#allocation11 + $0x2c] sm:$0xf]
    %v404 = vld [vmem:[#allocation12] sm:$0x7]
    %v406 = vlaneseq
    %v407 = vshrl.u32 %v406, 7
    %v408 = vsub.s32 0, %v407
    %v409 = vrot.slane %v404, %v408
    %v410 = vlaneseq
    %v411 = vshrl.u32 %v410, 7
    %v412 = vsub.s32 1, %v411
    %v413 = vrot.slane %v404, %v412
    %v414 = vlaneseq
    %v415 = vshrl.u32 %v414, 7
    %v416 = vsub.s32 2, %v415
    %v417 = vrot.slane %v404, %v416
    %v427 = vunpack.c.l.b16 %v390
    %v428 = vunpack.c.l.b16 %v391
    %v429 = vunpack.c.l.b16 %v392
    %v430 = vunpack.c.l.b16 %v393
    %v431 = vunpack.c.l.b16 %v394
    %v432 = vunpack.c.l.b16 %v395
    %v433 = vpack.c.b16 %v428, %v427
    %v434 = vpack.c.b16 %v430, %v429
    %v435 = vpack.c.b16 %v432, %v431
    %v444 = vunpack.c.l.b16 %v396
    %v445 = vunpack.c.h.b16 %v396
    %v446 = vunpack.c.l.b16 %v397
    %v447 = vunpack.c.l.b16 %v398
    %v448 = vunpack.c.h.b16 %v398
    %v449 = vunpack.c.l.b16 %v399
    %v450 = vunpack.c.l.b16 %v400
    %v451 = vunpack.c.h.b16 %v400
    %v452 = vunpack.c.l.b16 %v401
    %v453 = vunpack.c.l.b16 %v402
    %v454 = vunpack.c.h.b16 %v402
    %v455 = vunpack.c.l.b16 %v403
    %v456 = vpack.c.b16 %v447, %v444
    %v457 = vpack.c.b16 %v448, %v445
    %v458 = vpack.c.b16 %v449, %v446
    %v459 = vpack.c.b16 %v453, %v450
    %v460 = vpack.c.b16 %v454, %v451
    %v461 = vpack.c.b16 %v455, %v452
    %v469 = vsel %vm205, %v433, 0
    %v472 = vsel %vm205, %v434, 0
    %v475 = vsel %vm205, %v435, 0
    %477 = vmatprep.subr.bf16.mxu0 0
    %478 = vmatpush1.bf16.msra.mxu0 0
    %479 = vmatprep.subr.bf16.mxu0 0
    %480 = vmatpush1.bf16.msra.mxu0 0
    %481 = vmatprep.subr.bf16.mxu0 0
    %482 = vmatpush1.bf16.msra.mxu0 0
    %483 = vmatprep.subr.bf16.mxu0 0
    %484 = vmatpush1.bf16.msra.mxu0 0
    %485 = vmatprep.subr.bf16.mxu0 0
    %486 = vmatpush1.bf16.msra.mxu0 0
    %487 = vmatprep.subr.bf16.mxu0 0
    %488 = vmatpush1.bf16.msra.mxu0 0
    %489 = vmatprep.subr.bf16.mxu0 %v460
    %490 = vmatpush1.bf16.msra.mxu0 %v459
    %491 = vmatprep.subr.bf16.mxu0 %v457
    %492 = vmatpush1.bf16.msra.mxu0 %v456
    %493 = vmatprep.subr.bf16.mxu0 0
    %494 = vmatpush2.bf16.msra.mxu0 0
    %495 = vmatprep.subr.bf16.mxu0 0
    %496 = vmatpush2.bf16.msra.mxu0 0
    %497 = vmatprep.subr.bf16.mxu0 0
    %498 = vmatpush2.bf16.msra.mxu0 0
    %499 = vmatprep.subr.bf16.mxu0 0
    %500 = vmatpush2.bf16.msra.mxu0 0
    %501 = vmatprep.subr.bf16.mxu0 0
    %502 = vmatpush2.bf16.msra.mxu0 0
    %503 = vmatprep.subr.bf16.mxu0 0
    %504 = vmatpush2.bf16.msra.mxu0 0
    %505 = vmatprep.subr.bf16.mxu0 0
    %506 = vmatpush2.bf16.msra.mxu0 0
    %507 = vmatprep.subr.bf16.mxu0 0
    %508 = vmatpush2.bf16.msra.mxu0 0
    %509 = vmatprep.mubr.bf16.mxu0 0
    %510 = vmatmul.mubr.bf16.gmra.mxu0 %v469
    %v511 = vpop.f32.mrf.mxu0
    %v512 = vadd.f32 %v409, %v511
    %v513 = vpop.f32.mrf.mxu0
    %v514 = vadd.f32 %v413, %v513
    %v515 = vpop.f32.mrf.mxu0
    %v516 = vadd.f32 %v409, %v515
    %v517 = vpop.f32.mrf.mxu0
    %v518 = vadd.f32 %v413, %v517
    %519 = vmatprep.mubr.bf16.mxu0 0
    %520 = vmatmul.mubr.bf16.gmra.mxu0 %v472
    %v521 = vpop.f32.mrf.mxu0
    %v522 = vadd.f32 %v409, %v521
    %v523 = vpop.f32.mrf.mxu0
    %v524 = vadd.f32 %v413, %v523
    %v525 = vpop.f32.mrf.mxu0
    %v526 = vadd.f32 %v409, %v525
    %v527 = vpop.f32.mrf.mxu0
    %v528 = vadd.f32 %v413, %v527
    %529 = vmatprep.mubr.bf16.mxu0 0
    %530 = vmatmul.mubr.bf16.gmra.mxu0 %v475
    %v531 = vpop.f32.mrf.mxu0
    %v532 = vadd.f32 %v409, %v531
    %v533 = vpop.f32.mrf.mxu0
    %v534 = vadd.f32 %v413, %v533
    %v535 = vpop.f32.mrf.mxu0
    %v536 = vadd.f32 %v409, %v535
    %v537 = vpop.f32.mrf.mxu0
    %v538 = vadd.f32 %v413, %v537
    %539 = vdwg.mxu0
    %540 = vmatprep.subr.bf16.mxu0 0
    %541 = vmatpush1.bf16.msra.mxu0 0
    %542 = vmatprep.subr.bf16.mxu0 0
    %543 = vmatpush1.bf16.msra.mxu0 0
    %544 = vmatprep.subr.bf16.mxu0 0
    %545 = vmatpush1.bf16.msra.mxu0 0
    %546 = vmatprep.subr.bf16.mxu0 0
    %547 = vmatpush1.bf16.msra.mxu0 0
    %548 = vmatprep.subr.bf16.mxu0 0
    %549 = vmatpush1.bf16.msra.mxu0 0
    %550 = vmatprep.subr.bf16.mxu0 0
    %551 = vmatpush1.bf16.msra.mxu0 0
    %552 = vmatprep.subr.bf16.mxu0 0
    %553 = vmatpush1.bf16.msra.mxu0 %v461
    %554 = vmatprep.subr.bf16.mxu0 0
    %555 = vmatpush1.bf16.msra.mxu0 %v458
    %556 = vmatprep.subr.bf16.mxu0 0
    %557 = vmatpush2.bf16.msra.mxu0 0
    %558 = vmatprep.subr.bf16.mxu0 0
    %559 = vmatpush2.bf16.msra.mxu0 0
    %560 = vmatprep.subr.bf16.mxu0 0
    %561 = vmatpush2.bf16.msra.mxu0 0
    %562 = vmatprep.subr.bf16.mxu0 0
    %563 = vmatpush2.bf16.msra.mxu0 0
    %564 = vmatprep.subr.bf16.mxu0 0
    %565 = vmatpush2.bf16.msra.mxu0 0
    %566 = vmatprep.subr.bf16.mxu0 0
    %567 = vmatpush2.bf16.msra.mxu0 0
    %568 = vmatprep.subr.bf16.mxu0 0
    %569 = vmatpush2.bf16.msra.mxu0 0
    %570 = vmatprep.subr.bf16.mxu0 0
    %571 = vmatpush2.bf16.msra.mxu0 0
    %572 = vmatprep.mubr.bf16.mxu0 0
    %573 = vmatmul.mubr.bf16.gmra.mxu0 %v469
    %v574 = vpop.f32.mrf.mxu0
    %v575 = vadd.f32 %v417, %v574
    %v576 = vpop.f32.mrf.mxu0
    %v577 = vpop.f32.mrf.mxu0
    %v578 = vadd.f32 %v417, %v577
    %v579 = vpop.f32.mrf.mxu0
    %580 = vmatprep.mubr.bf16.mxu0 0
    %581 = vmatmul.mubr.bf16.gmra.mxu0 %v472
    %v582 = vpop.f32.mrf.mxu0
    %v583 = vadd.f32 %v417, %v582
    %v584 = vpop.f32.mrf.mxu0
    %v585 = vpop.f32.mrf.mxu0
    %v586 = vadd.f32 %v417, %v585
    %v587 = vpop.f32.mrf.mxu0
    %588 = vmatprep.mubr.bf16.mxu0 0
    %589 = vmatmul.mubr.bf16.gmra.mxu0 %v475
    %v590 = vpop.f32.mrf.mxu0
    %v591 = vadd.f32 %v417, %v590
    %v592 = vpop.f32.mrf.mxu0
    %v593 = vpop.f32.mrf.mxu0
    %v594 = vadd.f32 %v417, %v593
    %v595 = vpop.f32.mrf.mxu0
    %596 = vdwg.mxu0
    %v597 = vmul.f32 %v512, %v514
    %v598 = vmul.f32 %v516, %v518
    %v599 = vpack.c.bf16 %v598, %v597
    %v601 = vunpack.c.l.b16 %v599
    %v602 = vunpack.c.h.b16 %v599
    %v603 = vpack.c.b16 %v601, %v601
    %v604 = vpack.c.b16 %v602, %v602
    %607 = vst.msk [vmem:[#allocation3] sm:$0xf] %vm353, %v603
    %608 = vst.msk [vmem:[#allocation3 + $0x4] sm:$0xf] %vm353, %v604
    %v609 = vmul.f32 %v512, %v524
    %v610 = vmul.f32 %v516, %v528
    %v611 = vpack.c.bf16 %v610, %v609
    %v613 = vunpack.c.l.b16 %v611
    %v614 = vunpack.c.h.b16 %v611
    %v615 = vpack.c.b16 %v613, %v613
    %v616 = vpack.c.b16 %v614, %v614
    %619 = vst.msk [vmem:[#allocation3 + $0x8] sm:$0xf] %vm353, %v615
    %620 = vst.msk [vmem:[#allocation3 + $0xc] sm:$0xf] %vm353, %v616
    %v621 = vmul.f32 %v512, %v534
    %v622 = vmul.f32 %v516, %v538
    %v623 = vpack.c.bf16 %v622, %v621
    %v625 = vunpack.c.l.b16 %v623
    %v626 = vunpack.c.h.b16 %v623
    %v627 = vpack.c.b16 %v625, %v625
    %v628 = vpack.c.b16 %v626, %v626
    %631 = vst.msk [vmem:[#allocation3 + $0x10] sm:$0xf] %vm353, %v627
    %632 = vst.msk [vmem:[#allocation3 + $0x14] sm:$0xf] %vm353, %v628
    %v633 = vmul.f32 %v522, %v514
    %v634 = vmul.f32 %v526, %v518
    %v635 = vpack.c.bf16 %v634, %v633
    %v637 = vunpack.c.l.b16 %v635
    %v638 = vunpack.c.h.b16 %v635
    %v639 = vpack.c.b16 %v637, %v637
    %v640 = vpack.c.b16 %v638, %v638
    %643 = vst.msk [vmem:[#allocation3 + $0x18] sm:$0xf] %vm353, %v639
    %644 = vst.msk [vmem:[#allocation3 + $0x1c] sm:$0xf] %vm353, %v640
    %v645 = vmul.f32 %v522, %v524
    %v646 = vmul.f32 %v526, %v528
    %v647 = vpack.c.bf16 %v646, %v645
    %v649 = vunpack.c.l.b16 %v647
    %v650 = vunpack.c.h.b16 %v647
    %v651 = vpack.c.b16 %v649, %v649
    %v652 = vpack.c.b16 %v650, %v650
    %655 = vst.msk [vmem:[#allocation3 + $0x20] sm:$0xf] %vm353, %v651
    %656 = vst.msk [vmem:[#allocation3 + $0x24] sm:$0xf] %vm353, %v652
    %v657 = vmul.f32 %v522, %v534
    %v658 = vmul.f32 %v526, %v538
    %v659 = vpack.c.bf16 %v658, %v657
    %v661 = vunpack.c.l.b16 %v659
    %v662 = vunpack.c.h.b16 %v659
    %v663 = vpack.c.b16 %v661, %v661
    %v664 = vpack.c.b16 %v662, %v662
    %667 = vst.msk [vmem:[#allocation3 + $0x28] sm:$0xf] %vm353, %v663
    %668 = vst.msk [vmem:[#allocation3 + $0x2c] sm:$0xf] %vm353, %v664
    %v669 = vmul.f32 %v532, %v514
    %v670 = vmul.f32 %v536, %v518
    %v671 = vpack.c.bf16 %v670, %v669
    %v673 = vunpack.c.l.b16 %v671
    %v674 = vunpack.c.h.b16 %v671
    %v675 = vpack.c.b16 %v673, %v673
    %v676 = vpack.c.b16 %v674, %v674
    %679 = vst.msk [vmem:[#allocation3 + $0x30] sm:$0xf] %vm353, %v675
    %680 = vst.msk [vmem:[#allocation3 + $0x34] sm:$0xf] %vm353, %v676
    %v681 = vmul.f32 %v532, %v524
    %v682 = vmul.f32 %v536, %v528
    %v683 = vpack.c.bf16 %v682, %v681
    %v685 = vunpack.c.l.b16 %v683
    %v686 = vunpack.c.h.b16 %v683
    %v687 = vpack.c.b16 %v685, %v685
    %v688 = vpack.c.b16 %v686, %v686
    %691 = vst.msk [vmem:[#allocation3 + $0x38] sm:$0xf] %vm353, %v687
    %692 = vst.msk [vmem:[#allocation3 + $0x3c] sm:$0xf] %vm353, %v688
    %v693 = vmul.f32 %v532, %v534
    %v694 = vmul.f32 %v536, %v538
    %v695 = vpack.c.bf16 %v694, %v693
    %v697 = vunpack.c.l.b16 %v695
    %v698 = vunpack.c.h.b16 %v695
    %v699 = vpack.c.b16 %v697, %v697
    %v700 = vpack.c.b16 %v698, %v698
    %703 = vst.msk [vmem:[#allocation3 + $0x40] sm:$0xf] %vm353, %v699
    %704 = vst.msk [vmem:[#allocation3 + $0x44] sm:$0xf] %vm353, %v700
    %v705 = vld [vmem:[#allocation3] sm:$0xf]
    %v706 = vld [vmem:[#allocation3 + $0x4] sm:$0xf]
    %v707 = vld [vmem:[#allocation3 + $0x8] sm:$0xf]
    %v708 = vld [vmem:[#allocation3 + $0xc] sm:$0xf]
    %v709 = vld [vmem:[#allocation3 + $0x10] sm:$0xf]
    %v710 = vld [vmem:[#allocation3 + $0x14] sm:$0xf]
    %v711 = vld [vmem:[#allocation3 + $0x18] sm:$0xf]
    %v712 = vld [vmem:[#allocation3 + $0x1c] sm:$0xf]
    %v713 = vld [vmem:[#allocation3 + $0x20] sm:$0xf]
    %v714 = vld [vmem:[#allocation3 + $0x24] sm:$0xf]
    %v715 = vld [vmem:[#allocation3 + $0x28] sm:$0xf]
    %v716 = vld [vmem:[#allocation3 + $0x2c] sm:$0xf]
    %v717 = vld [vmem:[#allocation3 + $0x30] sm:$0xf]
    %v718 = vld [vmem:[#allocation3 + $0x34] sm:$0xf]
    %v719 = vld [vmem:[#allocation3 + $0x38] sm:$0xf]
    %v720 = vld [vmem:[#allocation3 + $0x3c] sm:$0xf]
    %v721 = vld [vmem:[#allocation3 + $0x40] sm:$0xf]
    %v722 = vld [vmem:[#allocation3 + $0x44] sm:$0xf]
    %v723 = vld [vmem:[%s11] sm:$0xf]
    %v724 = vld [vmem:[%s11 + $0x4] sm:$0xf]
    %v725 = vld [vmem:[%s11 + $0x8] sm:$0xf]
    %v726 = vld [vmem:[%s11 + $0xc] sm:$0xf]
    %v745 = vunpack.c.l.b16 %v705
    %v746 = vunpack.c.l.b16 %v706
    %v747 = vunpack.c.l.b16 %v707
    %v748 = vunpack.c.l.b16 %v708
    %v749 = vunpack.c.l.b16 %v709
    %v750 = vunpack.c.l.b16 %v710
    %v751 = vunpack.c.l.b16 %v711
    %v752 = vunpack.c.l.b16 %v712
    %v753 = vunpack.c.l.b16 %v713
    %v754 = vunpack.c.l.b16 %v714
    %v755 = vunpack.c.l.b16 %v715
    %v756 = vunpack.c.l.b16 %v716
    %v757 = vunpack.c.l.b16 %v717
    %v758 = vunpack.c.l.b16 %v718
    %v759 = vunpack.c.l.b16 %v719
    %v760 = vunpack.c.l.b16 %v720
    %v761 = vunpack.c.l.b16 %v721
    %v762 = vunpack.c.l.b16 %v722
    %v763 = vpack.c.b16 %v746, %v745
    %v764 = vpack.c.b16 %v748, %v747
    %v765 = vpack.c.b16 %v750, %v749
    %v766 = vpack.c.b16 %v752, %v751
    %v767 = vpack.c.b16 %v754, %v753
    %v768 = vpack.c.b16 %v756, %v755
    %v769 = vpack.c.b16 %v758, %v757
    %v770 = vpack.c.b16 %v760, %v759
    %v771 = vpack.c.b16 %v762, %v761
    %v776 = vunpack.c.l.b16 %v723
    %v777 = vunpack.c.l.b16 %v724
    %v778 = vunpack.c.l.b16 %v725
    %v779 = vunpack.c.l.b16 %v726
    %v780 = vpack.c.b16 %v777, %v776
    %v781 = vpack.c.b16 %v779, %v778
    %v785 = vsel %vm205, %v763, 0
    %v788 = vsel %vm205, %v764, 0
    %v791 = vsel %vm205, %v765, 0
    %v794 = vsel %vm205, %v766, 0
    %v797 = vsel %vm205, %v767, 0
    %v800 = vsel %vm205, %v768, 0
    %v803 = vsel %vm205, %v769, 0
    %v806 = vsel %vm205, %v770, 0
    %v809 = vsel %vm205, %v771, 0
    %811 = vmatprep.subr.bf16.mxu0 0
    %812 = vmatpush1.bf16.msra.mxu0 0
    %813 = vmatprep.subr.bf16.mxu0 0
    %814 = vmatpush1.bf16.msra.mxu0 0
    %815 = vmatprep.subr.bf16.mxu0 0
    %816 = vmatpush1.bf16.msra.mxu0 0
    %817 = vmatprep.subr.bf16.mxu0 0
    %818 = vmatpush1.bf16.msra.mxu0 0
    %819 = vmatprep.subr.bf16.mxu0 0
    %820 = vmatpush1.bf16.msra.mxu0 0
    %821 = vmatprep.subr.bf16.mxu0 0
    %822 = vmatpush1.bf16.msra.mxu0 0
    %823 = vmatprep.subr.bf16.mxu0 0
    %824 = vmatpush1.bf16.msra.mxu0 %v781
    %825 = vmatprep.subr.bf16.mxu0 0
    %826 = vmatpush1.bf16.msra.mxu0 %v780
    %827 = vmatprep.subr.bf16.mxu0 0
    %828 = vmatpush2.bf16.msra.mxu0 0
    %829 = vmatprep.subr.bf16.mxu0 0
    %830 = vmatpush2.bf16.msra.mxu0 0
    %831 = vmatprep.subr.bf16.mxu0 0
    %832 = vmatpush2.bf16.msra.mxu0 0
    %833 = vmatprep.subr.bf16.mxu0 0
    %834 = vmatpush2.bf16.msra.mxu0 0
    %835 = vmatprep.subr.bf16.mxu0 0
    %836 = vmatpush2.bf16.msra.mxu0 0
    %837 = vmatprep.subr.bf16.mxu0 0
    %838 = vmatpush2.bf16.msra.mxu0 0
    %839 = vmatprep.subr.bf16.mxu0 0
    %840 = vmatpush2.bf16.msra.mxu0 0
    %841 = vmatprep.subr.bf16.mxu0 0
    %842 = vmatpush2.bf16.msra.mxu0 0
    %843 = vmatprep.mubr.bf16.mxu0 0
    %844 = vmatmul.mubr.bf16.gmra.mxu0 %v785
    %v845 = vpop.f32.mrf.mxu0
    %v846 = vadd.f32 0.0, %v845
    %v847 = vpop.f32.mrf.mxu0
    %v848 = vpop.f32.mrf.mxu0
    %v849 = vadd.f32 0.0, %v848
    %v850 = vpop.f32.mrf.mxu0
    %851 = vmatprep.mubr.bf16.mxu0 0
    %852 = vmatmul.mubr.bf16.gmra.mxu0 %v788
    %v853 = vpop.f32.mrf.mxu0
    %v854 = vadd.f32 0.0, %v853
    %v855 = vpop.f32.mrf.mxu0
    %v856 = vpop.f32.mrf.mxu0
    %v857 = vadd.f32 0.0, %v856
    %v858 = vpop.f32.mrf.mxu0
    %859 = vmatprep.mubr.bf16.mxu0 0
    %860 = vmatmul.mubr.bf16.gmra.mxu0 %v791
    %v861 = vpop.f32.mrf.mxu0
    %v862 = vadd.f32 0.0, %v861
    %v863 = vpop.f32.mrf.mxu0
    %v864 = vpop.f32.mrf.mxu0
    %v865 = vadd.f32 0.0, %v864
    %v866 = vpop.f32.mrf.mxu0
    %867 = vmatprep.mubr.bf16.mxu0 0
    %868 = vmatmul.mubr.bf16.gmra.mxu0 %v794
    %v869 = vpop.f32.mrf.mxu0
    %v870 = vadd.f32 0.0, %v869
    %v871 = vpop.f32.mrf.mxu0
    %v872 = vpop.f32.mrf.mxu0
    %v873 = vadd.f32 0.0, %v872
    %v874 = vpop.f32.mrf.mxu0
    %875 = vmatprep.mubr.bf16.mxu0 0
    %876 = vmatmul.mubr.bf16.gmra.mxu0 %v797
    %v877 = vpop.f32.mrf.mxu0
    %v878 = vadd.f32 0.0, %v877
    %v879 = vpop.f32.mrf.mxu0
    %v880 = vpop.f32.mrf.mxu0
    %v881 = vadd.f32 0.0, %v880
    %v882 = vpop.f32.mrf.mxu0
    %883 = vmatprep.mubr.bf16.mxu0 0
    %884 = vmatmul.mubr.bf16.gmra.mxu0 %v800
    %v885 = vpop.f32.mrf.mxu0
    %v886 = vadd.f32 0.0, %v885
    %v887 = vpop.f32.mrf.mxu0
    %v888 = vpop.f32.mrf.mxu0
    %v889 = vadd.f32 0.0, %v888
    %v890 = vpop.f32.mrf.mxu0
    %891 = vmatprep.mubr.bf16.mxu0 0
    %892 = vmatmul.mubr.bf16.gmra.mxu0 %v803
    %v893 = vpop.f32.mrf.mxu0
    %v894 = vadd.f32 0.0, %v893
    %v895 = vpop.f32.mrf.mxu0
    %v896 = vpop.f32.mrf.mxu0
    %v897 = vadd.f32 0.0, %v896
    %v898 = vpop.f32.mrf.mxu0
    %899 = vmatprep.mubr.bf16.mxu0 0
    %900 = vmatmul.mubr.bf16.gmra.mxu0 %v806
    %v901 = vpop.f32.mrf.mxu0
    %v902 = vadd.f32 0.0, %v901
    %v903 = vpop.f32.mrf.mxu0
    %v904 = vpop.f32.mrf.mxu0
    %v905 = vadd.f32 0.0, %v904
    %v906 = vpop.f32.mrf.mxu0
    %907 = vmatprep.mubr.bf16.mxu0 0
    %908 = vmatmul.mubr.bf16.gmra.mxu0 %v809
    %v909 = vpop.f32.mrf.mxu0
    %v910 = vadd.f32 0.0, %v909
    %v911 = vpop.f32.mrf.mxu0
    %v912 = vpop.f32.mrf.mxu0
    %v913 = vadd.f32 0.0, %v912
    %v914 = vpop.f32.mrf.mxu0
    %915 = vdwg.mxu0
    %v916 = vmax.f32 %v846, %v854
    %v917 = vmax.f32 %v849, %v857
    %v918 = vmax.f32 %v916, %v862
    %v919 = vmax.f32 %v917, %v865
    %v920 = vsub.f32 %v846, %v918
    %v921 = vsub.f32 %v849, %v919
    %v922 = vmul.f32 %v920, 1.442695
    %v923 = vpow.pop %v922
    %v924 = vmul.f32 %v921, 1.442695
    %v925 = vpow.pop %v924
    %v926 = vsub.f32 %v854, %v918
    %v927 = vsub.f32 %v857, %v919
    %v928 = vmul.f32 %v926, 1.442695
    %v929 = vpow.pop %v928
    %v930 = vmul.f32 %v927, 1.442695
    %v931 = vpow.pop %v930
    %v932 = vsub.f32 %v862, %v918
    %v933 = vsub.f32 %v865, %v919
    %v934 = vmul.f32 %v932, 1.442695
    %v935 = vpow.pop %v934
    %v936 = vmul.f32 %v933, 1.442695
    %v937 = vpow.pop %v936
    %v938 = vadd.f32 %v923, %v929
    %v939 = vadd.f32 %v925, %v931
    %v940 = vadd.f32 %v938, %v935
    %v941 = vadd.f32 %v939, %v937
    %v942 = vrcp.pop %v940
    %v943 = vrcp.pop %v941
    %v944 = vmul.f32 %v923, %v942
    %v945 = vmul.f32 %v925, %v943
    %v946 = vpack.c.bf16 %v945, %v944
    %v948 = vunpack.c.l.b16 %v946
    %v949 = vunpack.c.h.b16 %v946
    %v950 = vpack.c.b16 %v948, %v948
    %v951 = vpack.c.b16 %v949, %v949
    %vm954 = vcmask 125952
    %955 = vst.msk [vmem:[#allocation4] sm:$0xf] %vm954, %v950
    %956 = vst.msk [vmem:[#allocation4 + $0x4] sm:$0xf] %vm954, %v951
    %v957 = vmul.f32 %v929, %v942
    %v958 = vmul.f32 %v931, %v943
    %v959 = vpack.c.bf16 %v958, %v957
    %v961 = vunpack.c.l.b16 %v959
    %v962 = vunpack.c.h.b16 %v959
    %v963 = vpack.c.b16 %v961, %v961
    %v964 = vpack.c.b16 %v962, %v962
    %967 = vst.msk [vmem:[#allocation4 + $0x8] sm:$0xf] %vm954, %v963
    %968 = vst.msk [vmem:[#allocation4 + $0xc] sm:$0xf] %vm954, %v964
    %v969 = vmul.f32 %v935, %v942
    %v970 = vmul.f32 %v937, %v943
    %v971 = vpack.c.bf16 %v970, %v969
    %v973 = vunpack.c.l.b16 %v971
    %v974 = vunpack.c.h.b16 %v971
    %v975 = vpack.c.b16 %v973, %v973
    %v976 = vpack.c.b16 %v974, %v974
    %979 = vst.msk [vmem:[#allocation4 + $0x10] sm:$0xf] %vm954, %v975
    %980 = vst.msk [vmem:[#allocation4 + $0x14] sm:$0xf] %vm954, %v976
    %v981 = vmax.f32 %v870, %v878
    %v982 = vmax.f32 %v873, %v881
    %v983 = vmax.f32 %v981, %v886
    %v984 = vmax.f32 %v982, %v889
    %v985 = vsub.f32 %v870, %v983
    %v986 = vsub.f32 %v873, %v984
    %v987 = vmul.f32 %v985, 1.442695
    %v988 = vpow.pop %v987
    %v989 = vmul.f32 %v986, 1.442695
    %v990 = vpow.pop %v989
    %v991 = vsub.f32 %v878, %v983
    %v992 = vsub.f32 %v881, %v984
    %v993 = vmul.f32 %v991, 1.442695
    %v994 = vpow.pop %v993
    %v995 = vmul.f32 %v992, 1.442695
    %v996 = vpow.pop %v995
    %v997 = vsub.f32 %v886, %v983
    %v998 = vsub.f32 %v889, %v984
    %v999 = vmul.f32 %v997, 1.442695
    %v1000 = vpow.pop %v999
    %v1001 = vmul.f32 %v998, 1.442695
    %v1002 = vpow.pop %v1001
    %v1003 = vadd.f32 %v988, %v994
    %v1004 = vadd.f32 %v990, %v996
    %v1005 = vadd.f32 %v1003, %v1000
    %v1006 = vadd.f32 %v1004, %v1002
    %v1007 = vrcp.pop %v1005
    %v1008 = vrcp.pop %v1006
    %v1009 = vmul.f32 %v988, %v1007
    %v1010 = vmul.f32 %v990, %v1008
    %v1011 = vpack.c.bf16 %v1010, %v1009
    %v1013 = vunpack.c.l.b16 %v1011
    %v1014 = vunpack.c.h.b16 %v1011
    %v1015 = vpack.c.b16 %v1013, %v1013
    %v1016 = vpack.c.b16 %v1014, %v1014
    %1019 = vst.msk [vmem:[#allocation4 + $0x18] sm:$0xf] %vm954, %v1015
    %1020 = vst.msk [vmem:[#allocation4 + $0x1c] sm:$0xf] %vm954, %v1016
    %v1021 = vmul.f32 %v994, %v1007
    %v1022 = vmul.f32 %v996, %v1008
    %v1023 = vpack.c.bf16 %v1022, %v1021
    %v1025 = vunpack.c.l.b16 %v1023
    %v1026 = vunpack.c.h.b16 %v1023
    %v1027 = vpack.c.b16 %v1025, %v1025
    %v1028 = vpack.c.b16 %v1026, %v1026
    %1031 = vst.msk [vmem:[#allocation4 + $0x20] sm:$0xf] %vm954, %v1027
    %1032 = vst.msk [vmem:[#allocation4 + $0x24] sm:$0xf] %vm954, %v1028
    %v1033 = vmul.f32 %v1000, %v1007
    %v1034 = vmul.f32 %v1002, %v1008
    %v1035 = vpack.c.bf16 %v1034, %v1033
    %v1037 = vunpack.c.l.b16 %v1035
    %v1038 = vunpack.c.h.b16 %v1035
    %v1039 = vpack.c.b16 %v1037, %v1037
    %v1040 = vpack.c.b16 %v1038, %v1038
    %1043 = vst.msk [vmem:[#allocation4 + $0x28] sm:$0xf] %vm954, %v1039
    %1044 = vst.msk [vmem:[#allocation4 + $0x2c] sm:$0xf] %vm954, %v1040
    %v1045 = vmax.f32 %v894, %v902
    %v1046 = vmax.f32 %v897, %v905
    %v1047 = vmax.f32 %v1045, %v910
    %v1048 = vmax.f32 %v1046, %v913
    %v1049 = vsub.f32 %v894, %v1047
    %v1050 = vsub.f32 %v897, %v1048
    %v1051 = vmul.f32 %v1049, 1.442695
    %v1052 = vpow.pop %v1051
    %v1053 = vmul.f32 %v1050, 1.442695
    %v1054 = vpow.pop %v1053
    %v1055 = vsub.f32 %v902, %v1047
    %v1056 = vsub.f32 %v905, %v1048
    %v1057 = vmul.f32 %v1055, 1.442695
    %v1058 = vpow.pop %v1057
    %v1059 = vmul.f32 %v1056, 1.442695
    %v1060 = vpow.pop %v1059
    %v1061 = vsub.f32 %v910, %v1047
    %v1062 = vsub.f32 %v913, %v1048
    %v1063 = vmul.f32 %v1061, 1.442695
    %v1064 = vpow.pop %v1063
    %v1065 = vmul.f32 %v1062, 1.442695
    %v1066 = vpow.pop %v1065
    %v1067 = vadd.f32 %v1052, %v1058
    %v1068 = vadd.f32 %v1054, %v1060
    %v1069 = vadd.f32 %v1067, %v1064
    %v1070 = vadd.f32 %v1068, %v1066
    %v1071 = vrcp.pop %v1069
    %v1072 = vrcp.pop %v1070
    %v1073 = vmul.f32 %v1052, %v1071
    %v1074 = vmul.f32 %v1054, %v1072
    %v1075 = vpack.c.bf16 %v1074, %v1073
    %v1077 = vunpack.c.l.b16 %v1075
    %v1078 = vunpack.c.h.b16 %v1075
    %v1079 = vpack.c.b16 %v1077, %v1077
    %v1080 = vpack.c.b16 %v1078, %v1078
    %1083 = vst.msk [vmem:[#allocation4 + $0x30] sm:$0xf] %vm954, %v1079
    %1084 = vst.msk [vmem:[#allocation4 + $0x34] sm:$0xf] %vm954, %v1080
    %v1085 = vmul.f32 %v1058, %v1071
    %v1086 = vmul.f32 %v1060, %v1072
    %v1087 = vpack.c.bf16 %v1086, %v1085
    %v1089 = vunpack.c.l.b16 %v1087
    %v1090 = vunpack.c.h.b16 %v1087
    %v1091 = vpack.c.b16 %v1089, %v1089
    %v1092 = vpack.c.b16 %v1090, %v1090
    %1095 = vst.msk [vmem:[#allocation4 + $0x38] sm:$0xf] %vm954, %v1091
    %1096 = vst.msk [vmem:[#allocation4 + $0x3c] sm:$0xf] %vm954, %v1092
    %v1097 = vmul.f32 %v1064, %v1071
    %v1098 = vmul.f32 %v1066, %v1072
    %v1099 = vpack.c.bf16 %v1098, %v1097
    %v1101 = vunpack.c.l.b16 %v1099
    %v1102 = vunpack.c.h.b16 %v1099
    %v1103 = vpack.c.b16 %v1101, %v1101
    %v1104 = vpack.c.b16 %v1102, %v1102
    %1107 = vst.msk [vmem:[#allocation4 + $0x40] sm:$0xf] %vm954, %v1103
    %1108 = vst.msk [vmem:[#allocation4 + $0x44] sm:$0xf] %vm954, %v1104
    %v1109 = vld [vmem:[#allocation4] sm:$0xf]
    %v1110 = vld [vmem:[#allocation4 + $0x4] sm:$0xf]
    %v1111 = vld [vmem:[#allocation4 + $0x8] sm:$0xf]
    %v1112 = vld [vmem:[#allocation4 + $0xc] sm:$0xf]
    %v1113 = vld [vmem:[#allocation4 + $0x10] sm:$0xf]
    %v1114 = vld [vmem:[#allocation4 + $0x14] sm:$0xf]
    %v1115 = vld [vmem:[#allocation4 + $0x18] sm:$0xf]
    %v1116 = vld [vmem:[#allocation4 + $0x1c] sm:$0xf]
    %v1117 = vld [vmem:[#allocation4 + $0x20] sm:$0xf]
    %v1118 = vld [vmem:[#allocation4 + $0x24] sm:$0xf]
    %v1119 = vld [vmem:[#allocation4 + $0x28] sm:$0xf]
    %v1120 = vld [vmem:[#allocation4 + $0x2c] sm:$0xf]
    %v1121 = vld [vmem:[#allocation4 + $0x30] sm:$0xf]
    %v1122 = vld [vmem:[#allocation4 + $0x34] sm:$0xf]
    %v1123 = vld [vmem:[#allocation4 + $0x38] sm:$0xf]
    %v1124 = vld [vmem:[#allocation4 + $0x3c] sm:$0xf]
    %v1125 = vld [vmem:[#allocation4 + $0x40] sm:$0xf]
    %v1126 = vld [vmem:[#allocation4 + $0x44] sm:$0xf]
    %v1127 = vld [vmem:[%s12] sm:$0xf]
    %v1128 = vld [vmem:[%s12 + $0x4] sm:$0xf]
    %v1147 = vunpack.c.l.b16 %v1109
    %v1148 = vunpack.c.l.b16 %v1110
    %v1149 = vunpack.c.l.b16 %v1111
    %v1150 = vunpack.c.l.b16 %v1112
    %v1151 = vunpack.c.l.b16 %v1113
    %v1152 = vunpack.c.l.b16 %v1114
    %v1153 = vunpack.c.l.b16 %v1115
    %v1154 = vunpack.c.l.b16 %v1116
    %v1155 = vunpack.c.l.b16 %v1117
    %v1156 = vunpack.c.l.b16 %v1118
    %v1157 = vunpack.c.l.b16 %v1119
    %v1158 = vunpack.c.l.b16 %v1120
    %v1159 = vunpack.c.l.b16 %v1121
    %v1160 = vunpack.c.l.b16 %v1122
    %v1161 = vunpack.c.l.b16 %v1123
    %v1162 = vunpack.c.l.b16 %v1124
    %v1163 = vunpack.c.l.b16 %v1125
    %v1164 = vunpack.c.l.b16 %v1126
    %v1165 = vpack.c.b16 %v1148, %v1147
    %v1166 = vpack.c.b16 %v1150, %v1149
    %v1167 = vpack.c.b16 %v1152, %v1151
    %v1168 = vpack.c.b16 %v1154, %v1153
    %v1169 = vpack.c.b16 %v1156, %v1155
    %v1170 = vpack.c.b16 %v1158, %v1157
    %v1171 = vpack.c.b16 %v1160, %v1159
    %v1172 = vpack.c.b16 %v1162, %v1161
    %v1173 = vpack.c.b16 %v1164, %v1163
    %v1176 = vunpack.c.l.b16 %v1127
    %v1177 = vunpack.c.l.b16 %v1128
    %v1178 = vpack.c.b16 %v1177, %v1176
    %vm1180 = vcmask 130048
    %v1182 = vsel %vm1180, %v1165, 0
    %v1185 = vsel %vm1180, %v1166, 0
    %v1188 = vsel %vm1180, %v1167, 0
    %v1191 = vsel %vm1180, %v1168, 0
    %v1194 = vsel %vm1180, %v1169, 0
    %v1197 = vsel %vm1180, %v1170, 0
    %v1200 = vsel %vm1180, %v1171, 0
    %v1203 = vsel %vm1180, %v1172, 0
    %v1206 = vsel %vm1180, %v1173, 0
    %1208 = vmatprep.subr.bf16.mxu0 0
    %1209 = vmatpush1.bf16.msra.mxu0 0
    %1210 = vmatprep.subr.bf16.mxu0 0
    %1211 = vmatpush1.bf16.msra.mxu0 0
    %1212 = vmatprep.subr.bf16.mxu0 0
    %1213 = vmatpush1.bf16.msra.mxu0 0
    %1214 = vmatprep.subr.bf16.mxu0 0
    %1215 = vmatpush1.bf16.msra.mxu0 0
    %1216 = vmatprep.subr.bf16.mxu0 0
    %1217 = vmatpush1.bf16.msra.mxu0 0
    %1218 = vmatprep.subr.bf16.mxu0 0
    %1219 = vmatpush1.bf16.msra.mxu0 0
    %1220 = vmatprep.subr.bf16.mxu0 0
    %1221 = vmatpush1.bf16.msra.mxu0 0
    %1222 = vmatprep.subr.bf16.mxu0 0
    %1223 = vmatpush1.bf16.msra.mxu0 %v1178
    %1224 = vmatprep.subr.bf16.mxu0 0
    %1225 = vmatpush2.bf16.msra.mxu0 0
    %1226 = vmatprep.subr.bf16.mxu0 0
    %1227 = vmatpush2.bf16.msra.mxu0 0
    %1228 = vmatprep.subr.bf16.mxu0 0
    %1229 = vmatpush2.bf16.msra.mxu0 0
    %1230 = vmatprep.subr.bf16.mxu0 0
    %1231 = vmatpush2.bf16.msra.mxu0 0
    %1232 = vmatprep.subr.bf16.mxu0 0
    %1233 = vmatpush2.bf16.msra.mxu0 0
    %1234 = vmatprep.subr.bf16.mxu0 0
    %1235 = vmatpush2.bf16.msra.mxu0 0
    %1236 = vmatprep.subr.bf16.mxu0 0
    %1237 = vmatpush2.bf16.msra.mxu0 0
    %1238 = vmatprep.subr.bf16.mxu0 0
    %1239 = vmatpush2.bf16.msra.mxu0 0
    %1240 = vmatprep.mubr.bf16.mxu0 0
    %1241 = vmatmul.mubr.bf16.gmra.mxu0 %v1182
    %v1242 = vpop.f32.mrf.mxu0
    %v1243 = vadd.f32 0.0, %v1242
    %v1244 = vpop.f32.mrf.mxu0
    %v1245 = vpop.f32.mrf.mxu0
    %v1246 = vadd.f32 0.0, %v1245
    %v1247 = vpop.f32.mrf.mxu0
    %1248 = vmatprep.mubr.bf16.mxu0 0
    %1249 = vmatmul.mubr.bf16.gmra.mxu0 %v1185
    %v1250 = vpop.f32.mrf.mxu0
    %v1251 = vadd.f32 0.0, %v1250
    %v1252 = vpop.f32.mrf.mxu0
    %v1253 = vpop.f32.mrf.mxu0
    %v1254 = vadd.f32 0.0, %v1253
    %v1255 = vpop.f32.mrf.mxu0
    %1256 = vmatprep.mubr.bf16.mxu0 0
    %1257 = vmatmul.mubr.bf16.gmra.mxu0 %v1188
    %v1258 = vpop.f32.mrf.mxu0
    %v1259 = vadd.f32 0.0, %v1258
    %v1260 = vpop.f32.mrf.mxu0
    %v1261 = vpop.f32.mrf.mxu0
    %v1262 = vadd.f32 0.0, %v1261
    %v1263 = vpop.f32.mrf.mxu0
    %1264 = vmatprep.mubr.bf16.mxu0 0
    %1265 = vmatmul.mubr.bf16.gmra.mxu0 %v1191
    %v1266 = vpop.f32.mrf.mxu0
    %v1267 = vadd.f32 0.0, %v1266
    %v1268 = vpop.f32.mrf.mxu0
    %v1269 = vpop.f32.mrf.mxu0
    %v1270 = vadd.f32 0.0, %v1269
    %v1271 = vpop.f32.mrf.mxu0
    %1272 = vmatprep.mubr.bf16.mxu0 0
    %1273 = vmatmul.mubr.bf16.gmra.mxu0 %v1194
    %v1274 = vpop.f32.mrf.mxu0
    %v1275 = vadd.f32 0.0, %v1274
    %v1276 = vpop.f32.mrf.mxu0
    %v1277 = vpop.f32.mrf.mxu0
    %v1278 = vadd.f32 0.0, %v1277
    %v1279 = vpop.f32.mrf.mxu0
    %1280 = vmatprep.mubr.bf16.mxu0 0
    %1281 = vmatmul.mubr.bf16.gmra.mxu0 %v1197
    %v1282 = vpop.f32.mrf.mxu0
    %v1283 = vadd.f32 0.0, %v1282
    %v1284 = vpop.f32.mrf.mxu0
    %v1285 = vpop.f32.mrf.mxu0
    %v1286 = vadd.f32 0.0, %v1285
    %v1287 = vpop.f32.mrf.mxu0
    %1288 = vmatprep.mubr.bf16.mxu0 0
    %1289 = vmatmul.mubr.bf16.gmra.mxu0 %v1200
    %v1290 = vpop.f32.mrf.mxu0
    %v1291 = vadd.f32 0.0, %v1290
    %v1292 = vpop.f32.mrf.mxu0
    %v1293 = vpop.f32.mrf.mxu0
    %v1294 = vadd.f32 0.0, %v1293
    %v1295 = vpop.f32.mrf.mxu0
    %1296 = vmatprep.mubr.bf16.mxu0 0
    %1297 = vmatmul.mubr.bf16.gmra.mxu0 %v1203
    %v1298 = vpop.f32.mrf.mxu0
    %v1299 = vadd.f32 0.0, %v1298
    %v1300 = vpop.f32.mrf.mxu0
    %v1301 = vpop.f32.mrf.mxu0
    %v1302 = vadd.f32 0.0, %v1301
    %v1303 = vpop.f32.mrf.mxu0
    %1304 = vmatprep.mubr.bf16.mxu0 0
    %1305 = vmatmul.mubr.bf16.gmra.mxu0 %v1206
    %v1306 = vpop.f32.mrf.mxu0
    %v1307 = vadd.f32 0.0, %v1306
    %v1308 = vpop.f32.mrf.mxu0
    %v1309 = vpop.f32.mrf.mxu0
    %v1310 = vadd.f32 0.0, %v1309
    %v1311 = vpop.f32.mrf.mxu0
    %1312 = vdwg.mxu0
    %v1313 = vmul.f32 %v1243, %v575
    %v1314 = vmul.f32 %v1246, %v578
    %v1315 = vmul.f32 %v1251, %v583
    %v1316 = vmul.f32 %v1254, %v586
    %v1317 = vadd.f32 %v1313, %v1315
    %v1318 = vadd.f32 %v1314, %v1316
    %v1319 = vmul.f32 %v1259, %v591
    %v1320 = vmul.f32 %v1262, %v594
    %v1321 = vadd.f32 %v1317, %v1319
    %v1322 = vadd.f32 %v1318, %v1320
    %v1323 = vpack.c.bf16 %v1322, %v1321
    %v1325 = vunpack.c.l.b16 %v1323
    %v1326 = vunpack.c.h.b16 %v1323
    %v1327 = vpack.c.b16 %v1325, %v1325
    %v1328 = vpack.c.b16 %v1326, %v1326
    %1331 = vst.msk [vmem:[#allocation5] sm:$0xf] %vm353, %v1327
    %1332 = vst.msk [vmem:[#allocation5 + $0x4] sm:$0xf] %vm353, %v1328
    %v1333 = vmul.f32 %v1267, %v575
    %v1334 = vmul.f32 %v1270, %v578
    %v1335 = vmul.f32 %v1275, %v583
    %v1336 = vmul.f32 %v1278, %v586
    %v1337 = vadd.f32 %v1333, %v1335
    %v1338 = vadd.f32 %v1334, %v1336
    %v1339 = vmul.f32 %v1283, %v591
    %v1340 = vmul.f32 %v1286, %v594
    %v1341 = vadd.f32 %v1337, %v1339
    %v1342 = vadd.f32 %v1338, %v1340
    %v1343 = vpack.c.bf16 %v1342, %v1341
    %v1345 = vunpack.c.l.b16 %v1343
    %v1346 = vunpack.c.h.b16 %v1343
    %v1347 = vpack.c.b16 %v1345, %v1345
    %v1348 = vpack.c.b16 %v1346, %v1346
    %1351 = vst.msk [vmem:[#allocation5 + $0x8] sm:$0xf] %vm353, %v1347
    %1352 = vst.msk [vmem:[#allocation5 + $0xc] sm:$0xf] %vm353, %v1348
    %v1353 = vmul.f32 %v1291, %v575
    %v1354 = vmul.f32 %v1294, %v578
    %v1355 = vmul.f32 %v1299, %v583
    %v1356 = vmul.f32 %v1302, %v586
    %v1357 = vadd.f32 %v1353, %v1355
    %v1358 = vadd.f32 %v1354, %v1356
    %v1359 = vmul.f32 %v1307, %v591
    %v1360 = vmul.f32 %v1310, %v594
    %v1361 = vadd.f32 %v1357, %v1359
    %v1362 = vadd.f32 %v1358, %v1360
    %v1363 = vpack.c.bf16 %v1362, %v1361
    %v1365 = vunpack.c.l.b16 %v1363
    %v1366 = vunpack.c.h.b16 %v1363
    %v1367 = vpack.c.b16 %v1365, %v1365
    %v1368 = vpack.c.b16 %v1366, %v1366
    %1371 = vst.msk [vmem:[#allocation5 + $0x10] sm:$0xf] %vm353, %v1367
    %1372 = vst.msk [vmem:[#allocation5 + $0x14] sm:$0xf] %vm353, %v1368
    %v1373 = vld [vmem:[#allocation5] sm:$0xf]
    %v1374 = vld [vmem:[#allocation5 + $0x4] sm:$0xf]
    %v1375 = vld [vmem:[#allocation5 + $0x8] sm:$0xf]
    %v1376 = vld [vmem:[#allocation5 + $0xc] sm:$0xf]
    %v1377 = vld [vmem:[#allocation5 + $0x10] sm:$0xf]
    %v1378 = vld [vmem:[#allocation5 + $0x14] sm:$0xf]
    %v1379 = vld [vmem:[%s5] sm:$0xf]
    %v1380 = vld [vmem:[%s5 + $0x4] sm:$0xf]
    %v1381 = vld [vmem:[%s5 + $0x8] sm:$0xf]
    %v1382 = vld [vmem:[%s5 + $0xc] sm:$0xf]
    %v1383 = vld [vmem:[#allocation14] sm:$0x1]
    %v1385 = vlaneseq
    %v1386 = vshrl.u32 %v1385, 7
    %v1387 = vsub.s32 0, %v1386
    %v1388 = vrot.slane %v1383, %v1387
    %v1396 = vunpack.c.l.b16 %v1373
    %v1397 = vunpack.c.l.b16 %v1374
    %v1398 = vunpack.c.l.b16 %v1375
    %v1399 = vunpack.c.l.b16 %v1376
    %v1400 = vunpack.c.l.b16 %v1377
    %v1401 = vunpack.c.l.b16 %v1378
    %v1402 = vpack.c.b16 %v1397, %v1396
    %v1403 = vpack.c.b16 %v1399, %v1398
    %v1404 = vpack.c.b16 %v1401, %v1400
    %v1409 = vunpack.c.l.b16 %v1379
    %v1410 = vunpack.c.l.b16 %v1380
    %v1411 = vunpack.c.l.b16 %v1381
    %v1412 = vunpack.c.l.b16 %v1382
    %v1413 = vpack.c.b16 %v1410, %v1409
    %v1414 = vpack.c.b16 %v1412, %v1411
    %v1418 = vsel %vm205, %v1402, 0
    %v1421 = vsel %vm205, %v1403, 0
    %v1424 = vsel %vm205, %v1404, 0
    %1426 = vmatprep.subr.bf16.mxu0 0
    %1427 = vmatpush1.bf16.msra.mxu0 0
    %1428 = vmatprep.subr.bf16.mxu0 0
    %1429 = vmatpush1.bf16.msra.mxu0 0
    %1430 = vmatprep.subr.bf16.mxu0 0
    %1431 = vmatpush1.bf16.msra.mxu0 0
    %1432 = vmatprep.subr.bf16.mxu0 0
    %1433 = vmatpush1.bf16.msra.mxu0 0
    %1434 = vmatprep.subr.bf16.mxu0 0
    %1435 = vmatpush1.bf16.msra.mxu0 0
    %1436 = vmatprep.subr.bf16.mxu0 0
    %1437 = vmatpush1.bf16.msra.mxu0 0
    %1438 = vmatprep.subr.bf16.mxu0 0
    %1439 = vmatpush1.bf16.msra.mxu0 %v1414
    %1440 = vmatprep.subr.bf16.mxu0 0
    %1441 = vmatpush1.bf16.msra.mxu0 %v1413
    %1442 = vmatprep.subr.bf16.mxu0 0
    %1443 = vmatpush2.bf16.msra.mxu0 0
    %1444 = vmatprep.subr.bf16.mxu0 0
    %1445 = vmatpush2.bf16.msra.mxu0 0
    %1446 = vmatprep.subr.bf16.mxu0 0
    %1447 = vmatpush2.bf16.msra.mxu0 0
    %1448 = vmatprep.subr.bf16.mxu0 0
    %1449 = vmatpush2.bf16.msra.mxu0 0
    %1450 = vmatprep.subr.bf16.mxu0 0
    %1451 = vmatpush2.bf16.msra.mxu0 0
    %1452 = vmatprep.subr.bf16.mxu0 0
    %1453 = vmatpush2.bf16.msra.mxu0 0
    %1454 = vmatprep.subr.bf16.mxu0 0
    %1455 = vmatpush2.bf16.msra.mxu0 0
    %1456 = vmatprep.subr.bf16.mxu0 0
    %1457 = vmatpush2.bf16.msra.mxu0 0
    %1458 = vmatprep.mubr.bf16.mxu0 0
    %1459 = vmatmul.mubr.bf16.gmra.mxu0 %v1418
    %v1460 = vpop.f32.mrf.mxu0
    %v1461 = vadd.f32 %v1388, %v1460
    %v1462 = vpop.f32.mrf.mxu0
    %v1463 = vpop.f32.mrf.mxu0
    %v1464 = vadd.f32 %v1388, %v1463
    %v1465 = vpop.f32.mrf.mxu0
    %1466 = vmatprep.mubr.bf16.mxu0 0
    %1467 = vmatmul.mubr.bf16.gmra.mxu0 %v1421
    %v1468 = vpop.f32.mrf.mxu0
    %v1469 = vadd.f32 %v1388, %v1468
    %v1470 = vpop.f32.mrf.mxu0
    %v1471 = vpop.f32.mrf.mxu0
    %v1472 = vadd.f32 %v1388, %v1471
    %v1473 = vpop.f32.mrf.mxu0
    %1474 = vmatprep.mubr.bf16.mxu0 0
    %1475 = vmatmul.mubr.bf16.gmra.mxu0 %v1424
    %v1476 = vpop.f32.mrf.mxu0
    %v1477 = vadd.f32 %v1388, %v1476
    %v1478 = vpop.f32.mrf.mxu0
    %v1479 = vpop.f32.mrf.mxu0
    %v1480 = vadd.f32 %v1388, %v1479
    %v1481 = vpop.f32.mrf.mxu0
    %1482 = vdwg.mxu0
    %v1483 = vld [vmem:[#allocation15] sm:$0x1]
    %v1484 = vld [vmem:[#allocation17] sm:$0x1]
    %v1485 = vsel %vm205, %v1461, 0.0
    %1486 = vadd.xlane.f32.xlu0 %v1485
    %v1487 = vpop.xlane.xlu0 %1486
    %v1488 = vsel %vm205, %v1464, 0.0
    %1489 = vadd.xlane.f32.xlu0 %v1488
    %v1490 = vpop.xlane.xlu0 %1489
    %v1491 = vsel %vm205, %v1469, 0.0
    %1492 = vadd.xlane.f32.xlu0 %v1491
    %v1493 = vpop.xlane.xlu0 %1492
    %v1494 = vsel %vm205, %v1472, 0.0
    %1495 = vadd.xlane.f32.xlu0 %v1494
    %v1496 = vpop.xlane.xlu0 %1495
    %v1497 = vsel %vm205, %v1477, 0.0
    %1498 = vadd.xlane.f32.xlu0 %v1497
    %v1499 = vpop.xlane.xlu0 %1498
    %v1500 = vsel %vm205, %v1480, 0.0
    %1501 = vadd.xlane.f32.xlu0 %v1500
    %v1502 = vpop.xlane.xlu0 %1501
    %v1503 = vrcp.pop 32.0
    %v1504 = vmul.f32 %v1487, %v1503
    %v1505 = vmul.f32 %v1490, %v1503
    %v1506 = vmul.f32 %v1493, %v1503
    %v1507 = vmul.f32 %v1496, %v1503
    %v1508 = vmul.f32 %v1499, %v1503
    %v1509 = vmul.f32 %v1502, %v1503
    %v1510 = vsub.f32 %v1461, %v1504
    %v1511 = vsub.f32 %v1464, %v1505
    %v1512 = vsub.f32 %v1469, %v1506
    %v1513 = vsub.f32 %v1472, %v1507
    %v1514 = vsub.f32 %v1477, %v1508
    %v1515 = vsub.f32 %v1480, %v1509
    %v1516 = vmul.f32 %v1510, %v1510
    %v1517 = vmul.f32 %v1511, %v1511
    %v1518 = vmul.f32 %v1512, %v1512
    %v1519 = vmul.f32 %v1513, %v1513
    %v1520 = vmul.f32 %v1514, %v1514
    %v1521 = vmul.f32 %v1515, %v1515
    %v1522 = vsel %vm205, %v1516, 0.0
    %1523 = vadd.xlane.f32.xlu0 %v1522
    %v1524 = vpop.xlane.xlu0 %1523
    %v1525 = vsel %vm205, %v1517, 0.0
    %1526 = vadd.xlane.f32.xlu0 %v1525
    %v1527 = vpop.xlane.xlu0 %1526
    %v1528 = vsel %vm205, %v1518, 0.0
    %1529 = vadd.xlane.f32.xlu0 %v1528
    %v1530 = vpop.xlane.xlu0 %1529
    %v1531 = vsel %vm205, %v1519, 0.0
    %1532 = vadd.xlane.f32.xlu0 %v1531
    %v1533 = vpop.xlane.xlu0 %1532
    %v1534 = vsel %vm205, %v1520, 0.0
    %1535 = vadd.xlane.f32.xlu0 %v1534
    %v1536 = vpop.xlane.xlu0 %1535
    %v1537 = vsel %vm205, %v1521, 0.0
    %1538 = vadd.xlane.f32.xlu0 %v1537
    %v1539 = vpop.xlane.xlu0 %1538
    %v1540 = vmul.f32 %v1524, %v1503
    %v1541 = vmul.f32 %v1527, %v1503
    %v1542 = vmul.f32 %v1530, %v1503
    %v1543 = vmul.f32 %v1533, %v1503
    %v1544 = vmul.f32 %v1536, %v1503
    %v1545 = vmul.f32 %v1539, %v1503
    %v1546 = vadd.f32 %v1540, 1e-05
    %v1547 = vadd.f32 %v1541, 1e-05
    %v1548 = vadd.f32 %v1542, 1e-05
    %v1549 = vadd.f32 %v1543, 1e-05
    %v1550 = vadd.f32 %v1544, 1e-05
    %v1551 = vadd.f32 %v1545, 1e-05
    %v1552 = vrsqrt.pop %v1546
    %v1553 = vrsqrt.pop %v1547
    %v1554 = vrsqrt.pop %v1548
    %v1555 = vrsqrt.pop %v1549
    %v1556 = vrsqrt.pop %v1550
    %v1557 = vrsqrt.pop %v1551
    %v1558 = vmul.f32 %v1510, %v1552
    %v1559 = vmul.f32 %v1511, %v1553
    %v1560 = vmul.f32 %v1512, %v1554
    %v1561 = vmul.f32 %v1513, %v1555
    %v1562 = vmul.f32 %v1514, %v1556
    %v1563 = vmul.f32 %v1515, %v1557
    %v1565 = vlaneseq
    %v1566 = vshrl.u32 %v1565, 7
    %v1567 = vsub.s32 0, %v1566
    %v1568 = vrot.slane %v1483, %v1567
    %v1570 = vmul.f32 %v1558, %v1568
    %v1571 = vmul.f32 %v1559, %v1568
    %v1572 = vmul.f32 %v1560, %v1568
    %v1573 = vmul.f32 %v1561, %v1568
    %v1574 = vmul.f32 %v1562, %v1568
    %v1575 = vmul.f32 %v1563, %v1568
    %v1577 = vlaneseq
    %v1578 = vshrl.u32 %v1577, 7
    %v1579 = vsub.s32 0, %v1578
    %v1580 = vrot.slane %v1484, %v1579
    %v1582 = vadd.f32 %v1570, %v1580
    %v1583 = vadd.f32 %v1571, %v1580
    %v1584 = vadd.f32 %v1572, %v1580
    %v1585 = vadd.f32 %v1573, %v1580
    %v1586 = vadd.f32 %v1574, %v1580
    %v1587 = vadd.f32 %v1575, %v1580
    %v1588 = vadd.f32 %v1582, %v1584
    %v1589 = vadd.f32 %v1583, %v1585
    %v1590 = vadd.f32 %v1588, %v1586
    %v1591 = vadd.f32 %v1589, %v1587
    %v1592 = vmul.f32 %v1590, 0.33333334
    %v1593 = vmul.f32 %v1591, 0.33333334
    %v1594 = vpack.c.bf16 %v1593, %v1592
    %v1595 = vld [vmem:[#allocation18] sm:$0xf]
    %v1596 = vld [vmem:[#allocation18 + $0x4] sm:$0xf]
    %v1597 = vld [vmem:[#allocation18 + $0x8] sm:$0xf]
    %v1598 = vld [vmem:[#allocation18 + $0xc] sm:$0xf]
    %v1599 = vld [vmem:[%s10] sm:$0x1]
    %v1601 = vlaneseq
    %v1602 = vshrl.u32 %v1601, 7
    %v1603 = vsub.s32 0, %v1602
    %v1604 = vrot.slane %v1599, %v1603
    %v1610 = vunpack.c.l.b16 %v1595
    %v1611 = vunpack.c.l.b16 %v1596
    %v1612 = vunpack.c.l.b16 %v1597
    %v1613 = vunpack.c.l.b16 %v1598
    %v1614 = vpack.c.b16 %v1611, %v1610
    %v1615 = vpack.c.b16 %v1613, %v1612
    %v1619 = vsel %vm205, %v1594, 0
    %1621 = vmatprep.subr.bf16.mxu0 0
    %1622 = vmatpush1.bf16.msra.mxu0 0
    %1623 = vmatprep.subr.bf16.mxu0 0
    %1624 = vmatpush1.bf16.msra.mxu0 0
    %1625 = vmatprep.subr.bf16.mxu0 0
    %1626 = vmatpush1.bf16.msra.mxu0 0
    %1627 = vmatprep.subr.bf16.mxu0 0
    %1628 = vmatpush1.bf16.msra.mxu0 0
    %1629 = vmatprep.subr.bf16.mxu0 0
    %1630 = vmatpush1.bf16.msra.mxu0 0
    %1631 = vmatprep.subr.bf16.mxu0 0
    %1632 = vmatpush1.bf16.msra.mxu0 0
    %1633 = vmatprep.subr.bf16.mxu0 0
    %1634 = vmatpush1.bf16.msra.mxu0 %v1615
    %1635 = vmatprep.subr.bf16.mxu0 0
    %1636 = vmatpush1.bf16.msra.mxu0 %v1614
    %1637 = vmatprep.subr.bf16.mxu0 0
    %1638 = vmatpush2.bf16.msra.mxu0 0
    %1639 = vmatprep.subr.bf16.mxu0 0
    %1640 = vmatpush2.bf16.msra.mxu0 0
    %1641 = vmatprep.subr.bf16.mxu0 0
    %1642 = vmatpush2.bf16.msra.mxu0 0
    %1643 = vmatprep.subr.bf16.mxu0 0
    %1644 = vmatpush2.bf16.msra.mxu0 0
    %1645 = vmatprep.subr.bf16.mxu0 0
    %1646 = vmatpush2.bf16.msra.mxu0 0
    %1647 = vmatprep.subr.bf16.mxu0 0
    %1648 = vmatpush2.bf16.msra.mxu0 0
    %1649 = vmatprep.subr.bf16.mxu0 0
    %1650 = vmatpush2.bf16.msra.mxu0 0
    %1651 = vmatprep.subr.bf16.mxu0 0
    %1652 = vmatpush2.bf16.msra.mxu0 0
    %1653 = vmatprep.mubr.bf16.mxu0 0
    %1654 = vmatmul.mubr.bf16.gmra.mxu0 %v1619
    %v1655 = vpop.f32.mrf.mxu0
    %v1656 = vadd.f32 %v1604, %v1655
    %v1657 = vpop.f32.mrf.mxu0
    %v1658 = vpop.f32.mrf.mxu0
    %v1659 = vadd.f32 %v1604, %v1658
    %v1660 = vpop.f32.mrf.mxu0
    %1661 = vdwg.mxu0
    %v1662 = vmul.f32 %v1656, 0.5
    %v1663 = vmul.f32 %v1659, 0.5
    %v1664 = vmul.f32 %v1656, 0.70710677
    %v1665 = vmul.f32 %v1659, 0.70710677
    %vm1666 = vcmp.lt.f32.partialorder %v1664, 0.0
    %vm1667 = vcmp.lt.f32.partialorder %v1665, 0.0
    %v1668 = vsel %vm1666, -1.0, 1.0
    %v1669 = vsel %vm1667, -1.0, 1.0
    %v1670 = vand.u32 2147483647, %v1664
    %v1671 = vand.u32 2147483647, %v1665
    %v1672 = vmul.f32 %v1670, 0.3275911
    %v1673 = vmul.f32 %v1671, 0.3275911
    %v1674 = vadd.f32 %v1672, 1.0
    %v1675 = vadd.f32 %v1673, 1.0
    %v1676 = vrcp.pop %v1674
    %v1677 = vrcp.pop %v1675
    %v1678 = vmul.f32 %v1676, 1.0614054
    %v1679 = vmul.f32 %v1677, 1.0614054
    %v1680 = vadd.f32 %v1678, -1.4531521
    %v1681 = vadd.f32 %v1679, -1.4531521
    %v1682 = vmul.f32 %v1680, %v1676
    %v1683 = vmul.f32 %v1681, %v1677
    %v1684 = vadd.f32 %v1682, 1.4214138
    %v1685 = vadd.f32 %v1683, 1.4214138
    %v1686 = vmul.f32 %v1684, %v1676
    %v1687 = vmul.f32 %v1685, %v1677
    %v1688 = vadd.f32 %v1686, -0.28449672
    %v1689 = vadd.f32 %v1687, -0.28449672
    %v1690 = vmul.f32 %v1688, %v1676
    %v1691 = vmul.f32 %v1689, %v1677
    %v1692 = vadd.f32 %v1690, 0.2548296
    %v1693 = vadd.f32 %v1691, 0.2548296
    %v1694 = vmul.f32 %v1692, %v1676
    %v1695 = vmul.f32 %v1693, %v1677
    %v1696 = vsub.f32 0.0, %v1670
    %v1697 = vsub.f32 0.0, %v1671
    %v1698 = vmul.f32 %v1696, %v1670
    %v1699 = vmul.f32 %v1697, %v1671
    %v1700 = vmul.f32 %v1698, 1.442695
    %v1701 = vpow.pop %v1700
    %v1702 = vmul.f32 %v1699, 1.442695
    %v1703 = vpow.pop %v1702
    %v1704 = vmul.f32 %v1694, %v1701
    %v1705 = vmul.f32 %v1695, %v1703
    %v1706 = vsub.f32 1.0, %v1704
    %v1707 = vsub.f32 1.0, %v1705
    %v1708 = vmul.f32 %v1668, %v1706
    %v1709 = vmul.f32 %v1669, %v1707
    %v1710 = vadd.f32 %v1708, 1.0
    %v1711 = vadd.f32 %v1709, 1.0
    %v1712 = vmul.f32 %v1662, %v1710
    %v1713 = vmul.f32 %v1663, %v1711
    %1714 = vst [vmem:[#allocation20] sm:$0xff] %v1712
    %1715 = vst [vmem:[#allocation20 + $0x8] sm:$0xff] %v1713
    // Predicated region
    $region86: #{tpu_custom_call.1} parent=1 // pred_check
      _
    $region87: #{tpu_custom_call.1} parent=1 // pred_check_branch
      %1717 = sbr.rel (0) target = $region89
    $region88: #{tpu_custom_call.1} parent=1 // pred_region
      %s1719 = ssub.s32 256, 256
      %1720 = vsyncadd [#allocation8], %s1719
      %s1721 = sshll.u32 [#allocation20], 4
      %s1722 = int_to_ptr.vmem [resolvable:$true] %s1721
      %1727 = dma.vmem_to_hbm [thread:$0]  %s1722, 256, %s13, [#allocation8], 128, 128, 8
    $region89: #{tpu_custom_call.1} parent=1 // pred_fallthru
      _
    // Predicated region
    $region90: #{tpu_custom_call.1} parent=1 // pred_check
      _
    $region91: #{tpu_custom_call.1} parent=1 // pred_check_branch
      %1729 = sbr.rel (0) target = $region93
    $region92: #{tpu_custom_call.1} parent=1 // pred_region
      %1730 = dma.done [#allocation8], 256
    $region93: #{tpu_custom_call.1} parent=1 // pred_fallthru
      _
    %1731 = vsyncpa [#allocation7], 1
    %1732 = vsyncpa [#allocation10], 1
    %1733 = vsyncpa [#allocation13], 1
    %1734 = vsyncpa [#allocation16], 1
    %1735 = vsyncpa [#allocation19], 1
    %1736 = vsyncpa [#allocation8], 1

</llo_original>
